<compile_context>
chip_gen: v7x
topology: tpu7x:2x2x1
jax: 0.10.0
libtpu: 0.0.40
codegen_flags: <defaults>
</compile_context>

<pallas_src>
import jax
import jax.numpy as jnp
from jax.experimental import pallas as pl
from jax.experimental.pallas import tpu as pltpu

MATMUL_DTYPE = jnp.float32   # set to jnp.bfloat16 on v6e/v7x for a small extra win
PAD_ROWS = 8                 # data starts 8 sublanes in -> aligned stores into scratch


def _out_len(L, K, stride, pad):
    return (L + 2 * pad - K) // stride + 1


# --------------------------------------------------------------------- fused forward
def _fused_forward(x_nlc, params):
    """x_nlc: (N, L, Cin) float32 -> logits (N, num_classes)."""
    N, L0, Cin = x_nlc.shape
    O = params[-1].shape[-1]

    # static per-stage lengths
    L1 = _out_len(L0, 7, 2, 3)   # conv_pre (k=7, s=2, p=3)
    L2 = _out_len(L1, 3, 2, 1)   # maxpool  (k=3, s=2, p=1)
    L3 = _out_len(L2, 3, 2, 1)   # block1
    L4 = _out_len(L3, 3, 2, 1)   # block2
    L5 = _out_len(L4, 3, 2, 1)   # block3
    # mapping convs (k=1, s=2, p=0) must produce the same lengths as the main path
    assert _out_len(L2, 1, 2, 0) == L3
    assert _out_len(L3, 1, 2, 0) == L4
    assert _out_len(L4, 1, 2, 0) == L5
    C0, C1, C2, C3 = 32, 64, 128, 256

    # -------------------- in-kernel helpers (traced, fully unrolled) --------------------
    def _conv(buf, w_ref, sc_ref, sh_ref, L_out, K, stride, pad, relu):
        """Conv1d from a padded VMEM buffer + folded-BN affine + optional ReLU."""
        acc = None
        for k in range(K):                               # unrolled K-tap MXU accumulation
            start = PAD_ROWS - pad + k
            if stride == 1:
                win = buf[pl.ds(start, L_out), :]
            else:
                win = buf[pl.ds(start, L_out, stride=stride), :]
            d = jnp.dot(win.astype(MATMUL_DTYPE), w_ref[k].astype(MATMUL_DTYPE),
                        preferred_element_type=jnp.float32)
            acc = d if acc is None else acc + d
        out = acc * sc_ref[...] + sh_ref[...]            # bias already folded into shift
        if relu:
            out = jnp.maximum(out, 0.0)
        return out

    def _store_padded(buf, data, L, pad):
        """Write `data` at row PAD_ROWS and zero only the pad rows that get read."""
        C = buf.shape[1]
        if pad > 0:                                      # front pad margin
            buf[pl.ds(PAD_ROWS - pad, pad), :] = jnp.zeros((pad, C), jnp.float32)
        tail = buf.shape[0] - (PAD_ROWS + L)             # tail pad margin (static)
        if tail > 0:
            buf[pl.ds(PAD_ROWS + L, tail), :] = jnp.zeros((tail, C), jnp.float32)
        buf[pl.ds(PAD_ROWS, L), :] = data                # sublane-aligned data store

    def _maxpool(buf, L_out, K, stride, pad):
        # input is post-ReLU (>= 0), so zero padding is equivalent to PyTorch's -inf pad
        out = None
        for k in range(K):
            start = PAD_ROWS - pad + k
            win = buf[pl.ds(start, L_out, stride=stride), :]
            out = win if out is None else jnp.maximum(out, win)
        return out

    def kernel(x_ref,
               pw, ps, pt,
               m1w, m1s, m1t, a1w, a1s, a1t, b1w, b1s, b1t,
               m2w, m2s, m2t, a2w, a2s, a2t, b2w, b2s, b2t,
               m3w, m3s, m3t, a3w, a3s, a3t, b3w, b3s, b3t,
               fw, fb,
               o_ref,
               s_in, s_pre, s_pool, s_c1, s_o1, s_c2, s_o2, s_c3):
        # ---- stem: Conv(k=7,s=2,p=3) + BN + ReLU, then MaxPool(k=3,s=2,p=1)
        _store_padded(s_in, x_ref[0], L0, 3)
        pre = _conv(s_in, pw, ps, pt, L1, K=7, stride=2, pad=3, relu=True)
        _store_padded(s_pre, pre, L1, 1)
        pooled = _maxpool(s_pre, L2, K=3, stride=2, pad=1)
        _store_padded(s_pool, pooled, L2, 1)

        # ---- residual block: mapping(1x1,s2) ; conv3/s2+BN+ReLU ; conv3/s1+BN ; add ; ReLU
        def res_block(in_buf, L_out, mw, ms, mt, w1, s1, t1, w2, s2, t2, c_buf):
            identity = _conv(in_buf, mw, ms, mt, L_out, K=1, stride=2, pad=0, relu=False)
            h = _conv(in_buf, w1, s1, t1, L_out, K=3, stride=2, pad=1, relu=True)
            _store_padded(c_buf, h, L_out, 1)
            h = _conv(c_buf, w2, s2, t2, L_out, K=3, stride=1, pad=1, relu=False)
            return jnp.maximum(h + identity, 0.0)        # fused residual add + ReLU

        y = res_block(s_pool, L3, m1w, m1s, m1t, a1w, a1s, a1t, b1w, b1s, b1t, s_c1)
        _store_padded(s_o1, y, L3, 1)
        y = res_block(s_o1, L4, m2w, m2s, m2t, a2w, a2s, a2t, b2w, b2s, b2t, s_c2)
        _store_padded(s_o2, y, L4, 1)
        y = res_block(s_o2, L5, m3w, m3s, m3t, a3w, a3s, a3t, b3w, b3s, b3t, s_c3)

        # ---- head: AdaptiveAvgPool1d(1) + Flatten + Linear
        feat = jnp.mean(y, axis=0, keepdims=True)                             # (1, C3)
        logits = jnp.dot(feat.astype(MATMUL_DTYPE), fw[...].astype(MATMUL_DTYPE),
                         preferred_element_type=jnp.float32) + fb[...]        # (1, O)
        o_ref[0] = logits.astype(o_ref.dtype)

    # --------------------------------- pallas_call ---------------------------------
    def _param_spec(a):
        nd = a.ndim
        return pl.BlockSpec(a.shape, lambda n, _nd=nd: (0,) * _nd)   # VMEM-resident weight

    in_specs = [pl.BlockSpec((1, L0, Cin), lambda n: (n, 0, 0))]
    in_specs += [_param_spec(a) for a in params]

    scratch_shapes = [
        pltpu.VMEM((PAD_ROWS + L0 + 3, Cin), jnp.float32),   # padded input
        pltpu.VMEM((PAD_ROWS + L1 + 1, C0), jnp.float32),    # conv_pre out (pre-pool)
        pltpu.VMEM((PAD_ROWS + L2 + 1, C0), jnp.float32),    # pooled / block1 input
        pltpu.VMEM((PAD_ROWS + L3 + 1, C1), jnp.float32),    # block1 conv1 out
        pltpu.VMEM((PAD_ROWS + L3 + 1, C1), jnp.float32),    # block1 out / block2 input
        pltpu.VMEM((PAD_ROWS + L4 + 1, C2), jnp.float32),    # block2 conv1 out
        pltpu.VMEM((PAD_ROWS + L4 + 1, C2), jnp.float32),    # block2 out / block3 input
        pltpu.VMEM((PAD_ROWS + L5 + 1, C3), jnp.float32),    # block3 conv1 out
    ]

    out = pl.pallas_call(
        kernel,
        out_shape=jax.ShapeDtypeStruct((N, 1, O), jnp.float32),
        grid=(N,),
        in_specs=in_specs,
        out_specs=pl.BlockSpec((1, 1, O), lambda n: (n, 0, 0)),
        scratch_shapes=scratch_shapes,
        compiler_params=pltpu.CompilerParams(
            dimension_semantics=("parallel",)),    # v7x: the 2 TensorCores split the batch
    )(x_nlc, *params)
    return out.reshape(N, O)


# --------------------------------------------------------------------- parameter init
def _init_conv_bn(key, K, cin, cout, *, with_bn=True, eps=1e-5, wscale=0.05):
    kw, kb, kg, kbe = jax.random.split(key, 4)
    w = jax.random.normal(kw, (K, cin, cout), jnp.float32) * wscale
    b = jax.random.normal(kb, (1, cout), jnp.float32) * wscale
    if with_bn:
        gamma = 1.0 + 0.1 * jax.random.normal(kg, (1, cout), jnp.float32)
        beta = 0.1 * jax.random.normal(kbe, (1, cout), jnp.float32)
        rmean = jnp.zeros((1, cout), jnp.float32)    # fresh BN in eval mode
        rvar = jnp.ones((1, cout), jnp.float32)
        scale = gamma / jnp.sqrt(rvar + eps)
        shift = beta - rmean * scale + b * scale     # conv bias folded into BN shift
    else:
        scale = jnp.ones((1, cout), jnp.float32)
        shift = b
    return w, scale, shift


def init_params(key, input_size, output_size):
    ks = jax.random.split(key, 6)
    flat = list(_init_conv_bn(ks[0], 7, input_size, 32))                    # conv_pre + BN
    for i, (cin, cout) in enumerate(((32, 64), (64, 128), (128, 256))):
        kmap, k1, k2 = jax.random.split(ks[1 + i], 3)
        flat += list(_init_conv_bn(kmap, 1, cin, cout, with_bn=False))      # mapping (no BN)
        flat += list(_init_conv_bn(k1, 3, cin, cout))                       # bblock1 conv+BN
        flat += list(_init_conv_bn(k2, 3, cout, cout))                      # bblock2 conv+BN
    kw, kb = jax.random.split(ks[4])
    flat.append(jax.random.normal(kw, (256, output_size), jnp.float32) * 0.05)  # fc W (in,out)
    flat.append(jax.random.normal(kb, (1, output_size), jnp.float32) * 0.05)    # fc b
    return tuple(flat)


# ------------------------------------------------------------------------ full forward
@jax.jit
def cnn_surface_classifier(x_ncl, params):
    """x_ncl: PyTorch-layout (N, C, L) -> logits (N, num_classes)."""
    x_nlc = jnp.transpose(x_ncl, (0, 2, 1)).astype(jnp.float32)   # NCL -> NLC (one XLA op)
    return _fused_forward(x_nlc, params)


if __name__ == "__main__":
    key = jax.random.PRNGKey(0)
    kx, kp = jax.random.split(key)

    N, C_in, L, n_classes = 2, 4, 64, 5
    x = jax.random.normal(kx, (N, C_in, L), jnp.float32)   # PyTorch NCL layout
    params = init_params(kp, input_size=C_in, output_size=n_classes)

    logits = cnn_surface_classifier(x, params)
    jax.block_until_ready(logits)
    assert logits.shape == (N, n_classes), logits.shape
    print("KERNEL_OK")
</pallas_src>

<mosaic_0001>
module attributes {stable_mosaic.version = 11 : i64} {
  func.func @kernel(%arg0: i32, %arg1: memref<1x64x4xf32, #tpu.memory_space<vmem>>, %arg2: memref<7x4x32xf32, #tpu.memory_space<vmem>>, %arg3: memref<1x32xf32, #tpu.memory_space<vmem>>, %arg4: memref<1x32xf32, #tpu.memory_space<vmem>>, %arg5: memref<1x32x64xf32, #tpu.memory_space<vmem>>, %arg6: memref<1x64xf32, #tpu.memory_space<vmem>>, %arg7: memref<1x64xf32, #tpu.memory_space<vmem>>, %arg8: memref<3x32x64xf32, #tpu.memory_space<vmem>>, %arg9: memref<1x64xf32, #tpu.memory_space<vmem>>, %arg10: memref<1x64xf32, #tpu.memory_space<vmem>>, %arg11: memref<3x64x64xf32, #tpu.memory_space<vmem>>, %arg12: memref<1x64xf32, #tpu.memory_space<vmem>>, %arg13: memref<1x64xf32, #tpu.memory_space<vmem>>, %arg14: memref<1x64x128xf32, #tpu.memory_space<vmem>>, %arg15: memref<1x128xf32, #tpu.memory_space<vmem>>, %arg16: memref<1x128xf32, #tpu.memory_space<vmem>>, %arg17: memref<3x64x128xf32, #tpu.memory_space<vmem>>, %arg18: memref<1x128xf32, #tpu.memory_space<vmem>>, %arg19: memref<1x128xf32, #tpu.memory_space<vmem>>, %arg20: memref<3x128x128xf32, #tpu.memory_space<vmem>>, %arg21: memref<1x128xf32, #tpu.memory_space<vmem>>, %arg22: memref<1x128xf32, #tpu.memory_space<vmem>>, %arg23: memref<1x128x256xf32, #tpu.memory_space<vmem>>, %arg24: memref<1x256xf32, #tpu.memory_space<vmem>>, %arg25: memref<1x256xf32, #tpu.memory_space<vmem>>, %arg26: memref<3x128x256xf32, #tpu.memory_space<vmem>>, %arg27: memref<1x256xf32, #tpu.memory_space<vmem>>, %arg28: memref<1x256xf32, #tpu.memory_space<vmem>>, %arg29: memref<3x256x256xf32, #tpu.memory_space<vmem>>, %arg30: memref<1x256xf32, #tpu.memory_space<vmem>>, %arg31: memref<1x256xf32, #tpu.memory_space<vmem>>, %arg32: memref<256x5xf32, #tpu.memory_space<vmem>>, %arg33: memref<1x5xf32, #tpu.memory_space<vmem>>, %arg34: memref<1x1x5xf32, #tpu.memory_space<vmem>>, %arg35: memref<75x4xf32, #tpu.memory_space<vmem>>, %arg36: memref<41x32xf32, #tpu.memory_space<vmem>>, %arg37: memref<25x32xf32, #tpu.memory_space<vmem>>, %arg38: memref<17x64xf32, #tpu.memory_space<vmem>>, %arg39: memref<17x64xf32, #tpu.memory_space<vmem>>, %arg40: memref<13x128xf32, #tpu.memory_space<vmem>>, %arg41: memref<13x128xf32, #tpu.memory_space<vmem>>, %arg42: memref<11x256xf32, #tpu.memory_space<vmem>>) attributes {dimension_semantics = [#tpu.dimension_semantics<parallel>], iteration_bounds = array<i64: 2>, scalar_prefetch = 0 : i64, scratch_operands = 8 : i64, tpu.core_type = #tpu.core_type<tc>, window_params = [{transform_indices = @transform_0, window_bounds = array<i64: 1, 64, 4>}, {pipeline_mode = #tpu.pipeline_mode<synchronous>, transform_indices = @transform_1, window_bounds = array<i64: 7, 4, 32>}, {pipeline_mode = #tpu.pipeline_mode<synchronous>, transform_indices = @transform_2, window_bounds = array<i64: 1, 32>}, {pipeline_mode = #tpu.pipeline_mode<synchronous>, transform_indices = @transform_3, window_bounds = array<i64: 1, 32>}, {pipeline_mode = #tpu.pipeline_mode<synchronous>, transform_indices = @transform_4, window_bounds = array<i64: 1, 32, 64>}, {pipeline_mode = #tpu.pipeline_mode<synchronous>, transform_indices = @transform_5, window_bounds = array<i64: 1, 64>}, {pipeline_mode = #tpu.pipeline_mode<synchronous>, transform_indices = @transform_6, window_bounds = array<i64: 1, 64>}, {pipeline_mode = #tpu.pipeline_mode<synchronous>, transform_indices = @transform_7, window_bounds = array<i64: 3, 32, 64>}, {pipeline_mode = #tpu.pipeline_mode<synchronous>, transform_indices = @transform_8, window_bounds = array<i64: 1, 64>}, {pipeline_mode = #tpu.pipeline_mode<synchronous>, transform_indices = @transform_9, window_bounds = array<i64: 1, 64>}, {pipeline_mode = #tpu.pipeline_mode<synchronous>, transform_indices = @transform_10, window_bounds = array<i64: 3, 64, 64>}, {pipeline_mode = #tpu.pipeline_mode<synchronous>, transform_indices = @transform_11, window_bounds = array<i64: 1, 64>}, {pipeline_mode = #tpu.pipeline_mode<synchronous>, transform_indices = @transform_12, window_bounds = array<i64: 1, 64>}, {pipeline_mode = #tpu.pipeline_mode<synchronous>, transform_indices = @transform_13, window_bounds = array<i64: 1, 64, 128>}, {pipeline_mode = #tpu.pipeline_mode<synchronous>, transform_indices = @transform_14, window_bounds = array<i64: 1, 128>}, {pipeline_mode = #tpu.pipeline_mode<synchronous>, transform_indices = @transform_15, window_bounds = array<i64: 1, 128>}, {pipeline_mode = #tpu.pipeline_mode<synchronous>, transform_indices = @transform_16, window_bounds = array<i64: 3, 64, 128>}, {pipeline_mode = #tpu.pipeline_mode<synchronous>, transform_indices = @transform_17, window_bounds = array<i64: 1, 128>}, {pipeline_mode = #tpu.pipeline_mode<synchronous>, transform_indices = @transform_18, window_bounds = array<i64: 1, 128>}, {pipeline_mode = #tpu.pipeline_mode<synchronous>, transform_indices = @transform_19, window_bounds = array<i64: 3, 128, 128>}, {pipeline_mode = #tpu.pipeline_mode<synchronous>, transform_indices = @transform_20, window_bounds = array<i64: 1, 128>}, {pipeline_mode = #tpu.pipeline_mode<synchronous>, transform_indices = @transform_21, window_bounds = array<i64: 1, 128>}, {pipeline_mode = #tpu.pipeline_mode<synchronous>, transform_indices = @transform_22, window_bounds = array<i64: 1, 128, 256>}, {pipeline_mode = #tpu.pipeline_mode<synchronous>, transform_indices = @transform_23, window_bounds = array<i64: 1, 256>}, {pipeline_mode = #tpu.pipeline_mode<synchronous>, transform_indices = @transform_24, window_bounds = array<i64: 1, 256>}, {pipeline_mode = #tpu.pipeline_mode<synchronous>, transform_indices = @transform_25, window_bounds = array<i64: 3, 128, 256>}, {pipeline_mode = #tpu.pipeline_mode<synchronous>, transform_indices = @transform_26, window_bounds = array<i64: 1, 256>}, {pipeline_mode = #tpu.pipeline_mode<synchronous>, transform_indices = @transform_27, window_bounds = array<i64: 1, 256>}, {pipeline_mode = #tpu.pipeline_mode<synchronous>, transform_indices = @transform_28, window_bounds = array<i64: 3, 256, 256>}, {pipeline_mode = #tpu.pipeline_mode<synchronous>, transform_indices = @transform_29, window_bounds = array<i64: 1, 256>}, {pipeline_mode = #tpu.pipeline_mode<synchronous>, transform_indices = @transform_30, window_bounds = array<i64: 1, 256>}, {pipeline_mode = #tpu.pipeline_mode<synchronous>, transform_indices = @transform_31, window_bounds = array<i64: 256, 5>}, {pipeline_mode = #tpu.pipeline_mode<synchronous>, transform_indices = @transform_32, window_bounds = array<i64: 1, 5>}, {transform_indices = @transform_33, window_bounds = array<i64: 1, 1, 5>}]} {
    %c0 = arith.constant 0 : index
    %c0_0 = arith.constant 0 : index
    %c0_1 = arith.constant 0 : index
    %0 = vector.load %arg1[%c0, %c0_0, %c0_1] : memref<1x64x4xf32, #tpu.memory_space<vmem>>, vector<1x64x4xf32>
    %1 = vector.shape_cast %0 : vector<1x64x4xf32> to vector<64x4xf32>
    %cst = arith.constant 0.000000e+00 : f32
    %2 = vector.broadcast %cst : f32 to vector<3x4xf32>
    %c5 = arith.constant 5 : index
    %c0_2 = arith.constant 0 : index
    %3 = vector.load %arg35[%c5, %c0_2] : memref<75x4xf32, #tpu.memory_space<vmem>>, vector<3x4xf32>
    tpu.vector_store %arg35[%c5, %c0_2], %2 {strides = array<i32>} : memref<75x4xf32, #tpu.memory_space<vmem>>, vector<3x4xf32>,
    %cst_3 = arith.constant 0.000000e+00 : f32
    %4 = vector.broadcast %cst_3 : f32 to vector<3x4xf32>
    %c72 = arith.constant 72 : index
    %c0_4 = arith.constant 0 : index
    %5 = vector.load %arg35[%c72, %c0_4] : memref<75x4xf32, #tpu.memory_space<vmem>>, vector<3x4xf32>
    tpu.vector_store %arg35[%c72, %c0_4], %4 {strides = array<i32>} : memref<75x4xf32, #tpu.memory_space<vmem>>, vector<3x4xf32>,
    %c8 = arith.constant 8 : index
    %c0_5 = arith.constant 0 : index
    %6 = vector.load %arg35[%c8, %c0_5] : memref<75x4xf32, #tpu.memory_space<vmem>>, vector<64x4xf32>
    tpu.vector_store %arg35[%c8, %c0_5], %1 {strides = array<i32>} : memref<75x4xf32, #tpu.memory_space<vmem>>, vector<64x4xf32>,
    %c5_6 = arith.constant 5 : index
    %c0_7 = arith.constant 0 : index
    %7 = tpu.strided_load %arg35[%c5_6, %c0_7] {strides = array<i32: 2, 1>} : memref<75x4xf32, #tpu.memory_space<vmem>>, vector<32x4xf32>
    %c0_8 = arith.constant 0 : index
    %c0_9 = arith.constant 0 : index
    %c0_10 = arith.constant 0 : index
    %8 = vector.load %arg2[%c0_8, %c0_9, %c0_10] : memref<7x4x32xf32, #tpu.memory_space<vmem>>, vector<1x4x32xf32>
    %9 = vector.shape_cast %8 : vector<1x4x32xf32> to vector<4x32xf32>
    %cst_11 = arith.constant dense<0.000000e+00> : vector<32x32xf32>
    %10 = tpu.matmul %7, %9, %cst_11 {dimension_numbers = #tpu.dot_dimension_numbers<[1], [0], [0], [1], [0, 0, 1, 1], [], []>} : vector<32x4xf32>, vector<4x32xf32>, vector<32x32xf32> -> vector<32x32xf32>
    %c6 = arith.constant 6 : index
    %c0_12 = arith.constant 0 : index
    %11 = tpu.strided_load %arg35[%c6, %c0_12] {strides = array<i32: 2, 1>} : memref<75x4xf32, #tpu.memory_space<vmem>>, vector<32x4xf32>
    %c1 = arith.constant 1 : index
    %c0_13 = arith.constant 0 : index
    %c0_14 = arith.constant 0 : index
    %12 = vector.load %arg2[%c1, %c0_13, %c0_14] : memref<7x4x32xf32, #tpu.memory_space<vmem>>, vector<1x4x32xf32>
    %13 = vector.shape_cast %12 : vector<1x4x32xf32> to vector<4x32xf32>
    %cst_15 = arith.constant dense<0.000000e+00> : vector<32x32xf32>
    %14 = tpu.matmul %11, %13, %cst_15 {dimension_numbers = #tpu.dot_dimension_numbers<[1], [0], [0], [1], [0, 0, 1, 1], [], []>} : vector<32x4xf32>, vector<4x32xf32>, vector<32x32xf32> -> vector<32x32xf32>
    %15 = arith.addf %10, %14 : vector<32x32xf32>
    %c7 = arith.constant 7 : index
    %c0_16 = arith.constant 0 : index
    %16 = tpu.strided_load %arg35[%c7, %c0_16] {strides = array<i32: 2, 1>} : memref<75x4xf32, #tpu.memory_space<vmem>>, vector<32x4xf32>
    %c2 = arith.constant 2 : index
    %c0_17 = arith.constant 0 : index
    %c0_18 = arith.constant 0 : index
    %17 = vector.load %arg2[%c2, %c0_17, %c0_18] : memref<7x4x32xf32, #tpu.memory_space<vmem>>, vector<1x4x32xf32>
    %18 = vector.shape_cast %17 : vector<1x4x32xf32> to vector<4x32xf32>
    %cst_19 = arith.constant dense<0.000000e+00> : vector<32x32xf32>
    %19 = tpu.matmul %16, %18, %cst_19 {dimension_numbers = #tpu.dot_dimension_numbers<[1], [0], [0], [1], [0, 0, 1, 1], [], []>} : vector<32x4xf32>, vector<4x32xf32>, vector<32x32xf32> -> vector<32x32xf32>
    %20 = arith.addf %15, %19 : vector<32x32xf32>
    %c8_20 = arith.constant 8 : index
    %c0_21 = arith.constant 0 : index
    %21 = tpu.strided_load %arg35[%c8_20, %c0_21] {strides = array<i32: 2, 1>} : memref<75x4xf32, #tpu.memory_space<vmem>>, vector<32x4xf32>
    %c3 = arith.constant 3 : index
    %c0_22 = arith.constant 0 : index
    %c0_23 = arith.constant 0 : index
    %22 = vector.load %arg2[%c3, %c0_22, %c0_23] : memref<7x4x32xf32, #tpu.memory_space<vmem>>, vector<1x4x32xf32>
    %23 = vector.shape_cast %22 : vector<1x4x32xf32> to vector<4x32xf32>
    %cst_24 = arith.constant dense<0.000000e+00> : vector<32x32xf32>
    %24 = tpu.matmul %21, %23, %cst_24 {dimension_numbers = #tpu.dot_dimension_numbers<[1], [0], [0], [1], [0, 0, 1, 1], [], []>} : vector<32x4xf32>, vector<4x32xf32>, vector<32x32xf32> -> vector<32x32xf32>
    %25 = arith.addf %20, %24 : vector<32x32xf32>
    %c9 = arith.constant 9 : index
    %c0_25 = arith.constant 0 : index
    %26 = tpu.strided_load %arg35[%c9, %c0_25] {strides = array<i32: 2, 1>} : memref<75x4xf32, #tpu.memory_space<vmem>>, vector<32x4xf32>
    %c4 = arith.constant 4 : index
    %c0_26 = arith.constant 0 : index
    %c0_27 = arith.constant 0 : index
    %27 = vector.load %arg2[%c4, %c0_26, %c0_27] : memref<7x4x32xf32, #tpu.memory_space<vmem>>, vector<1x4x32xf32>
    %28 = vector.shape_cast %27 : vector<1x4x32xf32> to vector<4x32xf32>
    %cst_28 = arith.constant dense<0.000000e+00> : vector<32x32xf32>
    %29 = tpu.matmul %26, %28, %cst_28 {dimension_numbers = #tpu.dot_dimension_numbers<[1], [0], [0], [1], [0, 0, 1, 1], [], []>} : vector<32x4xf32>, vector<4x32xf32>, vector<32x32xf32> -> vector<32x32xf32>
    %30 = arith.addf %25, %29 : vector<32x32xf32>
    %c10 = arith.constant 10 : index
    %c0_29 = arith.constant 0 : index
    %31 = tpu.strided_load %arg35[%c10, %c0_29] {strides = array<i32: 2, 1>} : memref<75x4xf32, #tpu.memory_space<vmem>>, vector<32x4xf32>
    %c5_30 = arith.constant 5 : index
    %c0_31 = arith.constant 0 : index
    %c0_32 = arith.constant 0 : index
    %32 = vector.load %arg2[%c5_30, %c0_31, %c0_32] : memref<7x4x32xf32, #tpu.memory_space<vmem>>, vector<1x4x32xf32>
    %33 = vector.shape_cast %32 : vector<1x4x32xf32> to vector<4x32xf32>
    %cst_33 = arith.constant dense<0.000000e+00> : vector<32x32xf32>
    %34 = tpu.matmul %31, %33, %cst_33 {dimension_numbers = #tpu.dot_dimension_numbers<[1], [0], [0], [1], [0, 0, 1, 1], [], []>} : vector<32x4xf32>, vector<4x32xf32>, vector<32x32xf32> -> vector<32x32xf32>
    %35 = arith.addf %30, %34 : vector<32x32xf32>
    %c11 = arith.constant 11 : index
    %c0_34 = arith.constant 0 : index
    %36 = tpu.strided_load %arg35[%c11, %c0_34] {strides = array<i32: 2, 1>} : memref<75x4xf32, #tpu.memory_space<vmem>>, vector<32x4xf32>
    %c6_35 = arith.constant 6 : index
    %c0_36 = arith.constant 0 : index
    %c0_37 = arith.constant 0 : index
    %37 = vector.load %arg2[%c6_35, %c0_36, %c0_37] : memref<7x4x32xf32, #tpu.memory_space<vmem>>, vector<1x4x32xf32>
    %38 = vector.shape_cast %37 : vector<1x4x32xf32> to vector<4x32xf32>
    %cst_38 = arith.constant dense<0.000000e+00> : vector<32x32xf32>
    %39 = tpu.matmul %36, %38, %cst_38 {dimension_numbers = #tpu.dot_dimension_numbers<[1], [0], [0], [1], [0, 0, 1, 1], [], []>} : vector<32x4xf32>, vector<4x32xf32>, vector<32x32xf32> -> vector<32x32xf32>
    %40 = arith.addf %35, %39 : vector<32x32xf32>
    %c0_39 = arith.constant 0 : index
    %c0_40 = arith.constant 0 : index
    %41 = vector.load %arg3[%c0_39, %c0_40] : memref<1x32xf32, #tpu.memory_space<vmem>>, vector<1x32xf32>
    %42 = vector.broadcast %41 : vector<1x32xf32> to vector<32x32xf32>
    %43 = arith.mulf %40, %42 : vector<32x32xf32>
    %c0_41 = arith.constant 0 : index
    %c0_42 = arith.constant 0 : index
    %44 = vector.load %arg4[%c0_41, %c0_42] : memref<1x32xf32, #tpu.memory_space<vmem>>, vector<1x32xf32>
    %45 = vector.broadcast %44 : vector<1x32xf32> to vector<32x32xf32>
    %46 = arith.addf %43, %45 : vector<32x32xf32>
    %cst_43 = arith.constant 0.000000e+00 : f32
    %47 = vector.broadcast %cst_43 : f32 to vector<32x32xf32>
    %48 = arith.maximumf %46, %47 : vector<32x32xf32>
    %cst_44 = arith.constant 0.000000e+00 : f32
    %49 = vector.broadcast %cst_44 : f32 to vector<1x32xf32>
    %c7_45 = arith.constant 7 : index
    %c0_46 = arith.constant 0 : index
    %50 = vector.load %arg36[%c7_45, %c0_46] : memref<41x32xf32, #tpu.memory_space<vmem>>, vector<1x32xf32>
    tpu.vector_store %arg36[%c7_45, %c0_46], %49 {strides = array<i32>} : memref<41x32xf32, #tpu.memory_space<vmem>>, vector<1x32xf32>,
    %cst_47 = arith.constant 0.000000e+00 : f32
    %51 = vector.broadcast %cst_47 : f32 to vector<1x32xf32>
    %c40 = arith.constant 40 : index
    %c0_48 = arith.constant 0 : index
    %52 = vector.load %arg36[%c40, %c0_48] : memref<41x32xf32, #tpu.memory_space<vmem>>, vector<1x32xf32>
    tpu.vector_store %arg36[%c40, %c0_48], %51 {strides = array<i32>} : memref<41x32xf32, #tpu.memory_space<vmem>>, vector<1x32xf32>,
    %c8_49 = arith.constant 8 : index
    %c0_50 = arith.constant 0 : index
    %53 = vector.load %arg36[%c8_49, %c0_50] : memref<41x32xf32, #tpu.memory_space<vmem>>, vector<32x32xf32>
    tpu.vector_store %arg36[%c8_49, %c0_50], %48 {strides = array<i32>} : memref<41x32xf32, #tpu.memory_space<vmem>>, vector<32x32xf32>,
    %c7_51 = arith.constant 7 : index
    %c0_52 = arith.constant 0 : index
    %54 = tpu.strided_load %arg36[%c7_51, %c0_52] {strides = array<i32: 2, 1>} : memref<41x32xf32, #tpu.memory_space<vmem>>, vector<16x32xf32>
    %c8_53 = arith.constant 8 : index
    %c0_54 = arith.constant 0 : index
    %55 = tpu.strided_load %arg36[%c8_53, %c0_54] {strides = array<i32: 2, 1>} : memref<41x32xf32, #tpu.memory_space<vmem>>, vector<16x32xf32>
    %56 = arith.maximumf %54, %55 : vector<16x32xf32>
    %c9_55 = arith.constant 9 : index
    %c0_56 = arith.constant 0 : index
    %57 = tpu.strided_load %arg36[%c9_55, %c0_56] {strides = array<i32: 2, 1>} : memref<41x32xf32, #tpu.memory_space<vmem>>, vector<16x32xf32>
    %58 = arith.maximumf %56, %57 : vector<16x32xf32>
    %cst_57 = arith.constant 0.000000e+00 : f32
    %59 = vector.broadcast %cst_57 : f32 to vector<1x32xf32>
    %c7_58 = arith.constant 7 : index
    %c0_59 = arith.constant 0 : index
    %60 = vector.load %arg37[%c7_58, %c0_59] : memref<25x32xf32, #tpu.memory_space<vmem>>, vector<1x32xf32>
    tpu.vector_store %arg37[%c7_58, %c0_59], %59 {strides = array<i32>} : memref<25x32xf32, #tpu.memory_space<vmem>>, vector<1x32xf32>,
    %cst_60 = arith.constant 0.000000e+00 : f32
    %61 = vector.broadcast %cst_60 : f32 to vector<1x32xf32>
    %c24 = arith.constant 24 : index
    %c0_61 = arith.constant 0 : index
    %62 = vector.load %arg37[%c24, %c0_61] : memref<25x32xf32, #tpu.memory_space<vmem>>, vector<1x32xf32>
    tpu.vector_store %arg37[%c24, %c0_61], %61 {strides = array<i32>} : memref<25x32xf32, #tpu.memory_space<vmem>>, vector<1x32xf32>,
    %c8_62 = arith.constant 8 : index
    %c0_63 = arith.constant 0 : index
    %63 = vector.load %arg37[%c8_62, %c0_63] : memref<25x32xf32, #tpu.memory_space<vmem>>, vector<16x32xf32>
    tpu.vector_store %arg37[%c8_62, %c0_63], %58 {strides = array<i32>} : memref<25x32xf32, #tpu.memory_space<vmem>>, vector<16x32xf32>,
    %c8_64 = arith.constant 8 : index
    %c0_65 = arith.constant 0 : index
    %64 = tpu.strided_load %arg37[%c8_64, %c0_65] {strides = array<i32: 2, 1>} : memref<25x32xf32, #tpu.memory_space<vmem>>, vector<8x32xf32>
    %c0_66 = arith.constant 0 : index
    %c0_67 = arith.constant 0 : index
    %c0_68 = arith.constant 0 : index
    %65 = vector.load %arg5[%c0_66, %c0_67, %c0_68] : memref<1x32x64xf32, #tpu.memory_space<vmem>>, vector<1x32x64xf32>
    %66 = vector.shape_cast %65 : vector<1x32x64xf32> to vector<32x64xf32>
    %cst_69 = arith.constant dense<0.000000e+00> : vector<8x64xf32>
    %67 = tpu.matmul %64, %66, %cst_69 {dimension_numbers = #tpu.dot_dimension_numbers<[1], [0], [0], [1], [0, 0, 1, 1], [], []>} : vector<8x32xf32>, vector<32x64xf32>, vector<8x64xf32> -> vector<8x64xf32>
    %c0_70 = arith.constant 0 : index
    %c0_71 = arith.constant 0 : index
    %68 = vector.load %arg6[%c0_70, %c0_71] : memref<1x64xf32, #tpu.memory_space<vmem>>, vector<1x64xf32>
    %69 = vector.broadcast %68 : vector<1x64xf32> to vector<8x64xf32>
    %70 = arith.mulf %67, %69 : vector<8x64xf32>
    %c0_72 = arith.constant 0 : index
    %c0_73 = arith.constant 0 : index
    %71 = vector.load %arg7[%c0_72, %c0_73] : memref<1x64xf32, #tpu.memory_space<vmem>>, vector<1x64xf32>
    %72 = vector.broadcast %71 : vector<1x64xf32> to vector<8x64xf32>
    %73 = arith.addf %70, %72 : vector<8x64xf32>
    %c7_74 = arith.constant 7 : index
    %c0_75 = arith.constant 0 : index
    %74 = tpu.strided_load %arg37[%c7_74, %c0_75] {strides = array<i32: 2, 1>} : memref<25x32xf32, #tpu.memory_space<vmem>>, vector<8x32xf32>
    %c0_76 = arith.constant 0 : index
    %c0_77 = arith.constant 0 : index
    %c0_78 = arith.constant 0 : index
    %75 = vector.load %arg8[%c0_76, %c0_77, %c0_78] : memref<3x32x64xf32, #tpu.memory_space<vmem>>, vector<1x32x64xf32>
    %76 = vector.shape_cast %75 : vector<1x32x64xf32> to vector<32x64xf32>
    %cst_79 = arith.constant dense<0.000000e+00> : vector<8x64xf32>
    %77 = tpu.matmul %74, %76, %cst_79 {dimension_numbers = #tpu.dot_dimension_numbers<[1], [0], [0], [1], [0, 0, 1, 1], [], []>} : vector<8x32xf32>, vector<32x64xf32>, vector<8x64xf32> -> vector<8x64xf32>
    %c8_80 = arith.constant 8 : index
    %c0_81 = arith.constant 0 : index
    %78 = tpu.strided_load %arg37[%c8_80, %c0_81] {strides = array<i32: 2, 1>} : memref<25x32xf32, #tpu.memory_space<vmem>>, vector<8x32xf32>
    %c1_82 = arith.constant 1 : index
    %c0_83 = arith.constant 0 : index
    %c0_84 = arith.constant 0 : index
    %79 = vector.load %arg8[%c1_82, %c0_83, %c0_84] : memref<3x32x64xf32, #tpu.memory_space<vmem>>, vector<1x32x64xf32>
    %80 = vector.shape_cast %79 : vector<1x32x64xf32> to vector<32x64xf32>
    %cst_85 = arith.constant dense<0.000000e+00> : vector<8x64xf32>
    %81 = tpu.matmul %78, %80, %cst_85 {dimension_numbers = #tpu.dot_dimension_numbers<[1], [0], [0], [1], [0, 0, 1, 1], [], []>} : vector<8x32xf32>, vector<32x64xf32>, vector<8x64xf32> -> vector<8x64xf32>
    %82 = arith.addf %77, %81 : vector<8x64xf32>
    %c9_86 = arith.constant 9 : index
    %c0_87 = arith.constant 0 : index
    %83 = tpu.strided_load %arg37[%c9_86, %c0_87] {strides = array<i32: 2, 1>} : memref<25x32xf32, #tpu.memory_space<vmem>>, vector<8x32xf32>
    %c2_88 = arith.constant 2 : index
    %c0_89 = arith.constant 0 : index
    %c0_90 = arith.constant 0 : index
    %84 = vector.load %arg8[%c2_88, %c0_89, %c0_90] : memref<3x32x64xf32, #tpu.memory_space<vmem>>, vector<1x32x64xf32>
    %85 = vector.shape_cast %84 : vector<1x32x64xf32> to vector<32x64xf32>
    %cst_91 = arith.constant dense<0.000000e+00> : vector<8x64xf32>
    %86 = tpu.matmul %83, %85, %cst_91 {dimension_numbers = #tpu.dot_dimension_numbers<[1], [0], [0], [1], [0, 0, 1, 1], [], []>} : vector<8x32xf32>, vector<32x64xf32>, vector<8x64xf32> -> vector<8x64xf32>
    %87 = arith.addf %82, %86 : vector<8x64xf32>
    %c0_92 = arith.constant 0 : index
    %c0_93 = arith.constant 0 : index
    %88 = vector.load %arg9[%c0_92, %c0_93] : memref<1x64xf32, #tpu.memory_space<vmem>>, vector<1x64xf32>
    %89 = vector.broadcast %88 : vector<1x64xf32> to vector<8x64xf32>
    %90 = arith.mulf %87, %89 : vector<8x64xf32>
    %c0_94 = arith.constant 0 : index
    %c0_95 = arith.constant 0 : index
    %91 = vector.load %arg10[%c0_94, %c0_95] : memref<1x64xf32, #tpu.memory_space<vmem>>, vector<1x64xf32>
    %92 = vector.broadcast %91 : vector<1x64xf32> to vector<8x64xf32>
    %93 = arith.addf %90, %92 : vector<8x64xf32>
    %cst_96 = arith.constant 0.000000e+00 : f32
    %94 = vector.broadcast %cst_96 : f32 to vector<8x64xf32>
    %95 = arith.maximumf %93, %94 : vector<8x64xf32>
    %cst_97 = arith.constant 0.000000e+00 : f32
    %96 = vector.broadcast %cst_97 : f32 to vector<1x64xf32>
    %c7_98 = arith.constant 7 : index
    %c0_99 = arith.constant 0 : index
    %97 = vector.load %arg38[%c7_98, %c0_99] : memref<17x64xf32, #tpu.memory_space<vmem>>, vector<1x64xf32>
    tpu.vector_store %arg38[%c7_98, %c0_99], %96 {strides = array<i32>} : memref<17x64xf32, #tpu.memory_space<vmem>>, vector<1x64xf32>,
    %cst_100 = arith.constant 0.000000e+00 : f32
    %98 = vector.broadcast %cst_100 : f32 to vector<1x64xf32>
    %c16 = arith.constant 16 : index
    %c0_101 = arith.constant 0 : index
    %99 = vector.load %arg38[%c16, %c0_101] : memref<17x64xf32, #tpu.memory_space<vmem>>, vector<1x64xf32>
    tpu.vector_store %arg38[%c16, %c0_101], %98 {strides = array<i32>} : memref<17x64xf32, #tpu.memory_space<vmem>>, vector<1x64xf32>,
    %c8_102 = arith.constant 8 : index
    %c0_103 = arith.constant 0 : index
    %100 = vector.load %arg38[%c8_102, %c0_103] : memref<17x64xf32, #tpu.memory_space<vmem>>, vector<8x64xf32>
    tpu.vector_store %arg38[%c8_102, %c0_103], %95 {strides = array<i32>} : memref<17x64xf32, #tpu.memory_space<vmem>>, vector<8x64xf32>,
    %c7_104 = arith.constant 7 : index
    %c0_105 = arith.constant 0 : index
    %101 = vector.load %arg38[%c7_104, %c0_105] : memref<17x64xf32, #tpu.memory_space<vmem>>, vector<8x64xf32>
    %c0_106 = arith.constant 0 : index
    %c0_107 = arith.constant 0 : index
    %c0_108 = arith.constant 0 : index
    %102 = vector.load %arg11[%c0_106, %c0_107, %c0_108] : memref<3x64x64xf32, #tpu.memory_space<vmem>>, vector<1x64x64xf32>
    %103 = vector.shape_cast %102 : vector<1x64x64xf32> to vector<64x64xf32>
    %cst_109 = arith.constant dense<0.000000e+00> : vector<8x64xf32>
    %104 = tpu.matmul %101, %103, %cst_109 {dimension_numbers = #tpu.dot_dimension_numbers<[1], [0], [0], [1], [0, 0, 1, 1], [], []>} : vector<8x64xf32>, vector<64x64xf32>, vector<8x64xf32> -> vector<8x64xf32>
    %c8_110 = arith.constant 8 : index
    %c0_111 = arith.constant 0 : index
    %105 = vector.load %arg38[%c8_110, %c0_111] : memref<17x64xf32, #tpu.memory_space<vmem>>, vector<8x64xf32>
    %c1_112 = arith.constant 1 : index
    %c0_113 = arith.constant 0 : index
    %c0_114 = arith.constant 0 : index
    %106 = vector.load %arg11[%c1_112, %c0_113, %c0_114] : memref<3x64x64xf32, #tpu.memory_space<vmem>>, vector<1x64x64xf32>
    %107 = vector.shape_cast %106 : vector<1x64x64xf32> to vector<64x64xf32>
    %cst_115 = arith.constant dense<0.000000e+00> : vector<8x64xf32>
    %108 = tpu.matmul %105, %107, %cst_115 {dimension_numbers = #tpu.dot_dimension_numbers<[1], [0], [0], [1], [0, 0, 1, 1], [], []>} : vector<8x64xf32>, vector<64x64xf32>, vector<8x64xf32> -> vector<8x64xf32>
    %109 = arith.addf %104, %108 : vector<8x64xf32>
    %c9_116 = arith.constant 9 : index
    %c0_117 = arith.constant 0 : index
    %110 = vector.load %arg38[%c9_116, %c0_117] : memref<17x64xf32, #tpu.memory_space<vmem>>, vector<8x64xf32>
    %c2_118 = arith.constant 2 : index
    %c0_119 = arith.constant 0 : index
    %c0_120 = arith.constant 0 : index
    %111 = vector.load %arg11[%c2_118, %c0_119, %c0_120] : memref<3x64x64xf32, #tpu.memory_space<vmem>>, vector<1x64x64xf32>
    %112 = vector.shape_cast %111 : vector<1x64x64xf32> to vector<64x64xf32>
    %cst_121 = arith.constant dense<0.000000e+00> : vector<8x64xf32>
    %113 = tpu.matmul %110, %112, %cst_121 {dimension_numbers = #tpu.dot_dimension_numbers<[1], [0], [0], [1], [0, 0, 1, 1], [], []>} : vector<8x64xf32>, vector<64x64xf32>, vector<8x64xf32> -> vector<8x64xf32>
    %114 = arith.addf %109, %113 : vector<8x64xf32>
    %c0_122 = arith.constant 0 : index
    %c0_123 = arith.constant 0 : index
    %115 = vector.load %arg12[%c0_122, %c0_123] : memref<1x64xf32, #tpu.memory_space<vmem>>, vector<1x64xf32>
    %116 = vector.broadcast %115 : vector<1x64xf32> to vector<8x64xf32>
    %117 = arith.mulf %114, %116 : vector<8x64xf32>
    %c0_124 = arith.constant 0 : index
    %c0_125 = arith.constant 0 : index
    %118 = vector.load %arg13[%c0_124, %c0_125] : memref<1x64xf32, #tpu.memory_space<vmem>>, vector<1x64xf32>
    %119 = vector.broadcast %118 : vector<1x64xf32> to vector<8x64xf32>
    %120 = arith.addf %117, %119 : vector<8x64xf32>
    %121 = arith.addf %120, %73 : vector<8x64xf32>
    %cst_126 = arith.constant 0.000000e+00 : f32
    %122 = vector.broadcast %cst_126 : f32 to vector<8x64xf32>
    %123 = arith.maximumf %121, %122 : vector<8x64xf32>
    %cst_127 = arith.constant 0.000000e+00 : f32
    %124 = vector.broadcast %cst_127 : f32 to vector<1x64xf32>
    %c7_128 = arith.constant 7 : index
    %c0_129 = arith.constant 0 : index
    %125 = vector.load %arg39[%c7_128, %c0_129] : memref<17x64xf32, #tpu.memory_space<vmem>>, vector<1x64xf32>
    tpu.vector_store %arg39[%c7_128, %c0_129], %124 {strides = array<i32>} : memref<17x64xf32, #tpu.memory_space<vmem>>, vector<1x64xf32>,
    %cst_130 = arith.constant 0.000000e+00 : f32
    %126 = vector.broadcast %cst_130 : f32 to vector<1x64xf32>
    %c16_131 = arith.constant 16 : index
    %c0_132 = arith.constant 0 : index
    %127 = vector.load %arg39[%c16_131, %c0_132] : memref<17x64xf32, #tpu.memory_space<vmem>>, vector<1x64xf32>
    tpu.vector_store %arg39[%c16_131, %c0_132], %126 {strides = array<i32>} : memref<17x64xf32, #tpu.memory_space<vmem>>, vector<1x64xf32>,
    %c8_133 = arith.constant 8 : index
    %c0_134 = arith.constant 0 : index
    %128 = vector.load %arg39[%c8_133, %c0_134] : memref<17x64xf32, #tpu.memory_space<vmem>>, vector<8x64xf32>
    tpu.vector_store %arg39[%c8_133, %c0_134], %123 {strides = array<i32>} : memref<17x64xf32, #tpu.memory_space<vmem>>, vector<8x64xf32>,
    %c8_135 = arith.constant 8 : index
    %c0_136 = arith.constant 0 : index
    %129 = tpu.strided_load %arg39[%c8_135, %c0_136] {strides = array<i32: 2, 1>} : memref<17x64xf32, #tpu.memory_space<vmem>>, vector<4x64xf32>
    %c0_137 = arith.constant 0 : index
    %c0_138 = arith.constant 0 : index
    %c0_139 = arith.constant 0 : index
    %130 = vector.load %arg14[%c0_137, %c0_138, %c0_139] : memref<1x64x128xf32, #tpu.memory_space<vmem>>, vector<1x64x128xf32>
    %131 = vector.shape_cast %130 : vector<1x64x128xf32> to vector<64x128xf32>
    %cst_140 = arith.constant dense<0.000000e+00> : vector<4x128xf32>
    %132 = tpu.matmul %129, %131, %cst_140 {dimension_numbers = #tpu.dot_dimension_numbers<[1], [0], [0], [1], [0, 0, 1, 1], [], []>} : vector<4x64xf32>, vector<64x128xf32>, vector<4x128xf32> -> vector<4x128xf32>
    %c0_141 = arith.constant 0 : index
    %c0_142 = arith.constant 0 : index
    %133 = vector.load %arg15[%c0_141, %c0_142] : memref<1x128xf32, #tpu.memory_space<vmem>>, vector<1x128xf32>
    %134 = vector.broadcast %133 : vector<1x128xf32> to vector<4x128xf32>
    %135 = arith.mulf %132, %134 : vector<4x128xf32>
    %c0_143 = arith.constant 0 : index
    %c0_144 = arith.constant 0 : index
    %136 = vector.load %arg16[%c0_143, %c0_144] : memref<1x128xf32, #tpu.memory_space<vmem>>, vector<1x128xf32>
    %137 = vector.broadcast %136 : vector<1x128xf32> to vector<4x128xf32>
    %138 = arith.addf %135, %137 : vector<4x128xf32>
    %c7_145 = arith.constant 7 : index
    %c0_146 = arith.constant 0 : index
    %139 = tpu.strided_load %arg39[%c7_145, %c0_146] {strides = array<i32: 2, 1>} : memref<17x64xf32, #tpu.memory_space<vmem>>, vector<4x64xf32>
    %c0_147 = arith.constant 0 : index
    %c0_148 = arith.constant 0 : index
    %c0_149 = arith.constant 0 : index
    %140 = vector.load %arg17[%c0_147, %c0_148, %c0_149] : memref<3x64x128xf32, #tpu.memory_space<vmem>>, vector<1x64x128xf32>
    %141 = vector.shape_cast %140 : vector<1x64x128xf32> to vector<64x128xf32>
    %cst_150 = arith.constant dense<0.000000e+00> : vector<4x128xf32>
    %142 = tpu.matmul %139, %141, %cst_150 {dimension_numbers = #tpu.dot_dimension_numbers<[1], [0], [0], [1], [0, 0, 1, 1], [], []>} : vector<4x64xf32>, vector<64x128xf32>, vector<4x128xf32> -> vector<4x128xf32>
    %c8_151 = arith.constant 8 : index
    %c0_152 = arith.constant 0 : index
    %143 = tpu.strided_load %arg39[%c8_151, %c0_152] {strides = array<i32: 2, 1>} : memref<17x64xf32, #tpu.memory_space<vmem>>, vector<4x64xf32>
    %c1_153 = arith.constant 1 : index
    %c0_154 = arith.constant 0 : index
    %c0_155 = arith.constant 0 : index
    %144 = vector.load %arg17[%c1_153, %c0_154, %c0_155] : memref<3x64x128xf32, #tpu.memory_space<vmem>>, vector<1x64x128xf32>
    %145 = vector.shape_cast %144 : vector<1x64x128xf32> to vector<64x128xf32>
    %cst_156 = arith.constant dense<0.000000e+00> : vector<4x128xf32>
    %146 = tpu.matmul %143, %145, %cst_156 {dimension_numbers = #tpu.dot_dimension_numbers<[1], [0], [0], [1], [0, 0, 1, 1], [], []>} : vector<4x64xf32>, vector<64x128xf32>, vector<4x128xf32> -> vector<4x128xf32>
    %147 = arith.addf %142, %146 : vector<4x128xf32>
    %c9_157 = arith.constant 9 : index
    %c0_158 = arith.constant 0 : index
    %148 = tpu.strided_load %arg39[%c9_157, %c0_158] {strides = array<i32: 2, 1>} : memref<17x64xf32, #tpu.memory_space<vmem>>, vector<4x64xf32>
    %c2_159 = arith.constant 2 : index
    %c0_160 = arith.constant 0 : index
    %c0_161 = arith.constant 0 : index
    %149 = vector.load %arg17[%c2_159, %c0_160, %c0_161] : memref<3x64x128xf32, #tpu.memory_space<vmem>>, vector<1x64x128xf32>
    %150 = vector.shape_cast %149 : vector<1x64x128xf32> to vector<64x128xf32>
    %cst_162 = arith.constant dense<0.000000e+00> : vector<4x128xf32>
    %151 = tpu.matmul %148, %150, %cst_162 {dimension_numbers = #tpu.dot_dimension_numbers<[1], [0], [0], [1], [0, 0, 1, 1], [], []>} : vector<4x64xf32>, vector<64x128xf32>, vector<4x128xf32> -> vector<4x128xf32>
    %152 = arith.addf %147, %151 : vector<4x128xf32>
    %c0_163 = arith.constant 0 : index
    %c0_164 = arith.constant 0 : index
    %153 = vector.load %arg18[%c0_163, %c0_164] : memref<1x128xf32, #tpu.memory_space<vmem>>, vector<1x128xf32>
    %154 = vector.broadcast %153 : vector<1x128xf32> to vector<4x128xf32>
    %155 = arith.mulf %152, %154 : vector<4x128xf32>
    %c0_165 = arith.constant 0 : index
    %c0_166 = arith.constant 0 : index
    %156 = vector.load %arg19[%c0_165, %c0_166] : memref<1x128xf32, #tpu.memory_space<vmem>>, vector<1x128xf32>
    %157 = vector.broadcast %156 : vector<1x128xf32> to vector<4x128xf32>
    %158 = arith.addf %155, %157 : vector<4x128xf32>
    %cst_167 = arith.constant 0.000000e+00 : f32
    %159 = vector.broadcast %cst_167 : f32 to vector<4x128xf32>
    %160 = arith.maximumf %158, %159 : vector<4x128xf32>
    %cst_168 = arith.constant 0.000000e+00 : f32
    %161 = vector.broadcast %cst_168 : f32 to vector<1x128xf32>
    %c7_169 = arith.constant 7 : index
    %c0_170 = arith.constant 0 : index
    %162 = vector.load %arg40[%c7_169, %c0_170] : memref<13x128xf32, #tpu.memory_space<vmem>>, vector<1x128xf32>
    tpu.vector_store %arg40[%c7_169, %c0_170], %161 {strides = array<i32>} : memref<13x128xf32, #tpu.memory_space<vmem>>, vector<1x128xf32>,
    %cst_171 = arith.constant 0.000000e+00 : f32
    %163 = vector.broadcast %cst_171 : f32 to vector<1x128xf32>
    %c12 = arith.constant 12 : index
    %c0_172 = arith.constant 0 : index
    %164 = vector.load %arg40[%c12, %c0_172] : memref<13x128xf32, #tpu.memory_space<vmem>>, vector<1x128xf32>
    tpu.vector_store %arg40[%c12, %c0_172], %163 {strides = array<i32>} : memref<13x128xf32, #tpu.memory_space<vmem>>, vector<1x128xf32>,
    %c8_173 = arith.constant 8 : index
    %c0_174 = arith.constant 0 : index
    %165 = vector.load %arg40[%c8_173, %c0_174] : memref<13x128xf32, #tpu.memory_space<vmem>>, vector<4x128xf32>
    tpu.vector_store %arg40[%c8_173, %c0_174], %160 {strides = array<i32>} : memref<13x128xf32, #tpu.memory_space<vmem>>, vector<4x128xf32>,
    %c7_175 = arith.constant 7 : index
    %c0_176 = arith.constant 0 : index
    %166 = vector.load %arg40[%c7_175, %c0_176] : memref<13x128xf32, #tpu.memory_space<vmem>>, vector<4x128xf32>
    %c0_177 = arith.constant 0 : index
    %c0_178 = arith.constant 0 : index
    %c0_179 = arith.constant 0 : index
    %167 = vector.load %arg20[%c0_177, %c0_178, %c0_179] : memref<3x128x128xf32, #tpu.memory_space<vmem>>, vector<1x128x128xf32>
    %168 = vector.shape_cast %167 : vector<1x128x128xf32> to vector<128x128xf32>
    %cst_180 = arith.constant dense<0.000000e+00> : vector<4x128xf32>
    %169 = tpu.matmul %166, %168, %cst_180 {dimension_numbers = #tpu.dot_dimension_numbers<[1], [0], [0], [1], [0, 0, 1, 1], [], []>} : vector<4x128xf32>, vector<128x128xf32>, vector<4x128xf32> -> vector<4x128xf32>
    %c8_181 = arith.constant 8 : index
    %c0_182 = arith.constant 0 : index
    %170 = vector.load %arg40[%c8_181, %c0_182] : memref<13x128xf32, #tpu.memory_space<vmem>>, vector<4x128xf32>
    %c1_183 = arith.constant 1 : index
    %c0_184 = arith.constant 0 : index
    %c0_185 = arith.constant 0 : index
    %171 = vector.load %arg20[%c1_183, %c0_184, %c0_185] : memref<3x128x128xf32, #tpu.memory_space<vmem>>, vector<1x128x128xf32>
    %172 = vector.shape_cast %171 : vector<1x128x128xf32> to vector<128x128xf32>
    %cst_186 = arith.constant dense<0.000000e+00> : vector<4x128xf32>
    %173 = tpu.matmul %170, %172, %cst_186 {dimension_numbers = #tpu.dot_dimension_numbers<[1], [0], [0], [1], [0, 0, 1, 1], [], []>} : vector<4x128xf32>, vector<128x128xf32>, vector<4x128xf32> -> vector<4x128xf32>
    %174 = arith.addf %169, %173 : vector<4x128xf32>
    %c9_187 = arith.constant 9 : index
    %c0_188 = arith.constant 0 : index
    %175 = vector.load %arg40[%c9_187, %c0_188] : memref<13x128xf32, #tpu.memory_space<vmem>>, vector<4x128xf32>
    %c2_189 = arith.constant 2 : index
    %c0_190 = arith.constant 0 : index
    %c0_191 = arith.constant 0 : index
    %176 = vector.load %arg20[%c2_189, %c0_190, %c0_191] : memref<3x128x128xf32, #tpu.memory_space<vmem>>, vector<1x128x128xf32>
    %177 = vector.shape_cast %176 : vector<1x128x128xf32> to vector<128x128xf32>
    %cst_192 = arith.constant dense<0.000000e+00> : vector<4x128xf32>
    %178 = tpu.matmul %175, %177, %cst_192 {dimension_numbers = #tpu.dot_dimension_numbers<[1], [0], [0], [1], [0, 0, 1, 1], [], []>} : vector<4x128xf32>, vector<128x128xf32>, vector<4x128xf32> -> vector<4x128xf32>
    %179 = arith.addf %174, %178 : vector<4x128xf32>
    %c0_193 = arith.constant 0 : index
    %c0_194 = arith.constant 0 : index
    %180 = vector.load %arg21[%c0_193, %c0_194] : memref<1x128xf32, #tpu.memory_space<vmem>>, vector<1x128xf32>
    %181 = vector.broadcast %180 : vector<1x128xf32> to vector<4x128xf32>
    %182 = arith.mulf %179, %181 : vector<4x128xf32>
    %c0_195 = arith.constant 0 : index
    %c0_196 = arith.constant 0 : index
    %183 = vector.load %arg22[%c0_195, %c0_196] : memref<1x128xf32, #tpu.memory_space<vmem>>, vector<1x128xf32>
    %184 = vector.broadcast %183 : vector<1x128xf32> to vector<4x128xf32>
    %185 = arith.addf %182, %184 : vector<4x128xf32>
    %186 = arith.addf %185, %138 : vector<4x128xf32>
    %cst_197 = arith.constant 0.000000e+00 : f32
    %187 = vector.broadcast %cst_197 : f32 to vector<4x128xf32>
    %188 = arith.maximumf %186, %187 : vector<4x128xf32>
    %cst_198 = arith.constant 0.000000e+00 : f32
    %189 = vector.broadcast %cst_198 : f32 to vector<1x128xf32>
    %c7_199 = arith.constant 7 : index
    %c0_200 = arith.constant 0 : index
    %190 = vector.load %arg41[%c7_199, %c0_200] : memref<13x128xf32, #tpu.memory_space<vmem>>, vector<1x128xf32>
    tpu.vector_store %arg41[%c7_199, %c0_200], %189 {strides = array<i32>} : memref<13x128xf32, #tpu.memory_space<vmem>>, vector<1x128xf32>,
    %cst_201 = arith.constant 0.000000e+00 : f32
    %191 = vector.broadcast %cst_201 : f32 to vector<1x128xf32>
    %c12_202 = arith.constant 12 : index
    %c0_203 = arith.constant 0 : index
    %192 = vector.load %arg41[%c12_202, %c0_203] : memref<13x128xf32, #tpu.memory_space<vmem>>, vector<1x128xf32>
    tpu.vector_store %arg41[%c12_202, %c0_203], %191 {strides = array<i32>} : memref<13x128xf32, #tpu.memory_space<vmem>>, vector<1x128xf32>,
    %c8_204 = arith.constant 8 : index
    %c0_205 = arith.constant 0 : index
    %193 = vector.load %arg41[%c8_204, %c0_205] : memref<13x128xf32, #tpu.memory_space<vmem>>, vector<4x128xf32>
    tpu.vector_store %arg41[%c8_204, %c0_205], %188 {strides = array<i32>} : memref<13x128xf32, #tpu.memory_space<vmem>>, vector<4x128xf32>,
    %c8_206 = arith.constant 8 : index
    %c0_207 = arith.constant 0 : index
    %194 = tpu.strided_load %arg41[%c8_206, %c0_207] {strides = array<i32: 2, 1>} : memref<13x128xf32, #tpu.memory_space<vmem>>, vector<2x128xf32>
    %c0_208 = arith.constant 0 : index
    %c0_209 = arith.constant 0 : index
    %c0_210 = arith.constant 0 : index
    %195 = vector.load %arg23[%c0_208, %c0_209, %c0_210] : memref<1x128x256xf32, #tpu.memory_space<vmem>>, vector<1x128x256xf32>
    %196 = vector.shape_cast %195 : vector<1x128x256xf32> to vector<128x256xf32>
    %cst_211 = arith.constant dense<0.000000e+00> : vector<2x256xf32>
    %197 = tpu.matmul %194, %196, %cst_211 {dimension_numbers = #tpu.dot_dimension_numbers<[1], [0], [0], [1], [0, 0, 1, 1], [], []>} : vector<2x128xf32>, vector<128x256xf32>, vector<2x256xf32> -> vector<2x256xf32>
    %c0_212 = arith.constant 0 : index
    %c0_213 = arith.constant 0 : index
    %198 = vector.load %arg24[%c0_212, %c0_213] : memref<1x256xf32, #tpu.memory_space<vmem>>, vector<1x256xf32>
    %199 = vector.broadcast %198 : vector<1x256xf32> to vector<2x256xf32>
    %200 = arith.mulf %197, %199 : vector<2x256xf32>
    %c0_214 = arith.constant 0 : index
    %c0_215 = arith.constant 0 : index
    %201 = vector.load %arg25[%c0_214, %c0_215] : memref<1x256xf32, #tpu.memory_space<vmem>>, vector<1x256xf32>
    %202 = vector.broadcast %201 : vector<1x256xf32> to vector<2x256xf32>
    %203 = arith.addf %200, %202 : vector<2x256xf32>
    %c7_216 = arith.constant 7 : index
    %c0_217 = arith.constant 0 : index
    %204 = tpu.strided_load %arg41[%c7_216, %c0_217] {strides = array<i32: 2, 1>} : memref<13x128xf32, #tpu.memory_space<vmem>>, vector<2x128xf32>
    %c0_218 = arith.constant 0 : index
    %c0_219 = arith.constant 0 : index
    %c0_220 = arith.constant 0 : index
    %205 = vector.load %arg26[%c0_218, %c0_219, %c0_220] : memref<3x128x256xf32, #tpu.memory_space<vmem>>, vector<1x128x256xf32>
    %206 = vector.shape_cast %205 : vector<1x128x256xf32> to vector<128x256xf32>
    %cst_221 = arith.constant dense<0.000000e+00> : vector<2x256xf32>
    %207 = tpu.matmul %204, %206, %cst_221 {dimension_numbers = #tpu.dot_dimension_numbers<[1], [0], [0], [1], [0, 0, 1, 1], [], []>} : vector<2x128xf32>, vector<128x256xf32>, vector<2x256xf32> -> vector<2x256xf32>
    %c8_222 = arith.constant 8 : index
    %c0_223 = arith.constant 0 : index
    %208 = tpu.strided_load %arg41[%c8_222, %c0_223] {strides = array<i32: 2, 1>} : memref<13x128xf32, #tpu.memory_space<vmem>>, vector<2x128xf32>
    %c1_224 = arith.constant 1 : index
    %c0_225 = arith.constant 0 : index
    %c0_226 = arith.constant 0 : index
    %209 = vector.load %arg26[%c1_224, %c0_225, %c0_226] : memref<3x128x256xf32, #tpu.memory_space<vmem>>, vector<1x128x256xf32>
    %210 = vector.shape_cast %209 : vector<1x128x256xf32> to vector<128x256xf32>
    %cst_227 = arith.constant dense<0.000000e+00> : vector<2x256xf32>
    %211 = tpu.matmul %208, %210, %cst_227 {dimension_numbers = #tpu.dot_dimension_numbers<[1], [0], [0], [1], [0, 0, 1, 1], [], []>} : vector<2x128xf32>, vector<128x256xf32>, vector<2x256xf32> -> vector<2x256xf32>
    %212 = arith.addf %207, %211 : vector<2x256xf32>
    %c9_228 = arith.constant 9 : index
    %c0_229 = arith.constant 0 : index
    %213 = tpu.strided_load %arg41[%c9_228, %c0_229] {strides = array<i32: 2, 1>} : memref<13x128xf32, #tpu.memory_space<vmem>>, vector<2x128xf32>
    %c2_230 = arith.constant 2 : index
    %c0_231 = arith.constant 0 : index
    %c0_232 = arith.constant 0 : index
    %214 = vector.load %arg26[%c2_230, %c0_231, %c0_232] : memref<3x128x256xf32, #tpu.memory_space<vmem>>, vector<1x128x256xf32>
    %215 = vector.shape_cast %214 : vector<1x128x256xf32> to vector<128x256xf32>
    %cst_233 = arith.constant dense<0.000000e+00> : vector<2x256xf32>
    %216 = tpu.matmul %213, %215, %cst_233 {dimension_numbers = #tpu.dot_dimension_numbers<[1], [0], [0], [1], [0, 0, 1, 1], [], []>} : vector<2x128xf32>, vector<128x256xf32>, vector<2x256xf32> -> vector<2x256xf32>
    %217 = arith.addf %212, %216 : vector<2x256xf32>
    %c0_234 = arith.constant 0 : index
    %c0_235 = arith.constant 0 : index
    %218 = vector.load %arg27[%c0_234, %c0_235] : memref<1x256xf32, #tpu.memory_space<vmem>>, vector<1x256xf32>
    %219 = vector.broadcast %218 : vector<1x256xf32> to vector<2x256xf32>
    %220 = arith.mulf %217, %219 : vector<2x256xf32>
    %c0_236 = arith.constant 0 : index
    %c0_237 = arith.constant 0 : index
    %221 = vector.load %arg28[%c0_236, %c0_237] : memref<1x256xf32, #tpu.memory_space<vmem>>, vector<1x256xf32>
    %222 = vector.broadcast %221 : vector<1x256xf32> to vector<2x256xf32>
    %223 = arith.addf %220, %222 : vector<2x256xf32>
    %cst_238 = arith.constant 0.000000e+00 : f32
    %224 = vector.broadcast %cst_238 : f32 to vector<2x256xf32>
    %225 = arith.maximumf %223, %224 : vector<2x256xf32>
    %cst_239 = arith.constant 0.000000e+00 : f32
    %226 = vector.broadcast %cst_239 : f32 to vector<1x256xf32>
    %c7_240 = arith.constant 7 : index
    %c0_241 = arith.constant 0 : index
    %227 = vector.load %arg42[%c7_240, %c0_241] : memref<11x256xf32, #tpu.memory_space<vmem>>, vector<1x256xf32>
    tpu.vector_store %arg42[%c7_240, %c0_241], %226 {strides = array<i32>} : memref<11x256xf32, #tpu.memory_space<vmem>>, vector<1x256xf32>,
    %cst_242 = arith.constant 0.000000e+00 : f32
    %228 = vector.broadcast %cst_242 : f32 to vector<1x256xf32>
    %c10_243 = arith.constant 10 : index
    %c0_244 = arith.constant 0 : index
    %229 = vector.load %arg42[%c10_243, %c0_244] : memref<11x256xf32, #tpu.memory_space<vmem>>, vector<1x256xf32>
    tpu.vector_store %arg42[%c10_243, %c0_244], %228 {strides = array<i32>} : memref<11x256xf32, #tpu.memory_space<vmem>>, vector<1x256xf32>,
    %c8_245 = arith.constant 8 : index
    %c0_246 = arith.constant 0 : index
    %230 = vector.load %arg42[%c8_245, %c0_246] : memref<11x256xf32, #tpu.memory_space<vmem>>, vector<2x256xf32>
    tpu.vector_store %arg42[%c8_245, %c0_246], %225 {strides = array<i32>} : memref<11x256xf32, #tpu.memory_space<vmem>>, vector<2x256xf32>,
    %c7_247 = arith.constant 7 : index
    %c0_248 = arith.constant 0 : index
    %231 = vector.load %arg42[%c7_247, %c0_248] : memref<11x256xf32, #tpu.memory_space<vmem>>, vector<2x256xf32>
    %c0_249 = arith.constant 0 : index
    %c0_250 = arith.constant 0 : index
    %c0_251 = arith.constant 0 : index
    %232 = vector.load %arg29[%c0_249, %c0_250, %c0_251] : memref<3x256x256xf32, #tpu.memory_space<vmem>>, vector<1x256x256xf32>
    %233 = vector.shape_cast %232 : vector<1x256x256xf32> to vector<256x256xf32>
    %cst_252 = arith.constant dense<0.000000e+00> : vector<2x256xf32>
    %234 = tpu.matmul %231, %233, %cst_252 {dimension_numbers = #tpu.dot_dimension_numbers<[1], [0], [0], [1], [0, 0, 1, 1], [], []>} : vector<2x256xf32>, vector<256x256xf32>, vector<2x256xf32> -> vector<2x256xf32>
    %c8_253 = arith.constant 8 : index
    %c0_254 = arith.constant 0 : index
    %235 = vector.load %arg42[%c8_253, %c0_254] : memref<11x256xf32, #tpu.memory_space<vmem>>, vector<2x256xf32>
    %c1_255 = arith.constant 1 : index
    %c0_256 = arith.constant 0 : index
    %c0_257 = arith.constant 0 : index
    %236 = vector.load %arg29[%c1_255, %c0_256, %c0_257] : memref<3x256x256xf32, #tpu.memory_space<vmem>>, vector<1x256x256xf32>
    %237 = vector.shape_cast %236 : vector<1x256x256xf32> to vector<256x256xf32>
    %cst_258 = arith.constant dense<0.000000e+00> : vector<2x256xf32>
    %238 = tpu.matmul %235, %237, %cst_258 {dimension_numbers = #tpu.dot_dimension_numbers<[1], [0], [0], [1], [0, 0, 1, 1], [], []>} : vector<2x256xf32>, vector<256x256xf32>, vector<2x256xf32> -> vector<2x256xf32>
    %239 = arith.addf %234, %238 : vector<2x256xf32>
    %c9_259 = arith.constant 9 : index
    %c0_260 = arith.constant 0 : index
    %240 = vector.load %arg42[%c9_259, %c0_260] : memref<11x256xf32, #tpu.memory_space<vmem>>, vector<2x256xf32>
    %c2_261 = arith.constant 2 : index
    %c0_262 = arith.constant 0 : index
    %c0_263 = arith.constant 0 : index
    %241 = vector.load %arg29[%c2_261, %c0_262, %c0_263] : memref<3x256x256xf32, #tpu.memory_space<vmem>>, vector<1x256x256xf32>
    %242 = vector.shape_cast %241 : vector<1x256x256xf32> to vector<256x256xf32>
    %cst_264 = arith.constant dense<0.000000e+00> : vector<2x256xf32>
    %243 = tpu.matmul %240, %242, %cst_264 {dimension_numbers = #tpu.dot_dimension_numbers<[1], [0], [0], [1], [0, 0, 1, 1], [], []>} : vector<2x256xf32>, vector<256x256xf32>, vector<2x256xf32> -> vector<2x256xf32>
    %244 = arith.addf %239, %243 : vector<2x256xf32>
    %c0_265 = arith.constant 0 : index
    %c0_266 = arith.constant 0 : index
    %245 = vector.load %arg30[%c0_265, %c0_266] : memref<1x256xf32, #tpu.memory_space<vmem>>, vector<1x256xf32>
    %246 = vector.broadcast %245 : vector<1x256xf32> to vector<2x256xf32>
    %247 = arith.mulf %244, %246 : vector<2x256xf32>
    %c0_267 = arith.constant 0 : index
    %c0_268 = arith.constant 0 : index
    %248 = vector.load %arg31[%c0_267, %c0_268] : memref<1x256xf32, #tpu.memory_space<vmem>>, vector<1x256xf32>
    %249 = vector.broadcast %248 : vector<1x256xf32> to vector<2x256xf32>
    %250 = arith.addf %247, %249 : vector<2x256xf32>
    %251 = arith.addf %250, %203 : vector<2x256xf32>
    %cst_269 = arith.constant 0.000000e+00 : f32
    %252 = vector.broadcast %cst_269 : f32 to vector<2x256xf32>
    %253 = arith.maximumf %251, %252 : vector<2x256xf32>
    %cst_270 = arith.constant dense<0.000000e+00> : vector<256xf32>
    %254 = vector.multi_reduction <add>, %253, %cst_270 [0] : vector<2x256xf32> to vector<256xf32>
    %255 = vector.shape_cast %254 : vector<256xf32> to vector<1x256xf32>
    %cst_271 = arith.constant 2.000000e+00 : f32
    %256 = vector.broadcast %cst_271 : f32 to vector<1x256xf32>
    %257 = arith.divf %255, %256 : vector<1x256xf32>
    %c0_272 = arith.constant 0 : index
    %c0_273 = arith.constant 0 : index
    %258 = vector.load %arg32[%c0_272, %c0_273] : memref<256x5xf32, #tpu.memory_space<vmem>>, vector<256x5xf32>
    %cst_274 = arith.constant dense<0.000000e+00> : vector<1x5xf32>
    %259 = tpu.matmul %257, %258, %cst_274 {dimension_numbers = #tpu.dot_dimension_numbers<[1], [0], [0], [1], [0, 0, 1, 1], [], []>} : vector<1x256xf32>, vector<256x5xf32>, vector<1x5xf32> -> vector<1x5xf32>
    %c0_275 = arith.constant 0 : index
    %c0_276 = arith.constant 0 : index
    %260 = vector.load %arg33[%c0_275, %c0_276] : memref<1x5xf32, #tpu.memory_space<vmem>>, vector<1x5xf32>
    %261 = arith.addf %259, %260 : vector<1x5xf32>
    %c0_277 = arith.constant 0 : index
    %c0_278 = arith.constant 0 : index
    %c0_279 = arith.constant 0 : index
    %262 = vector.load %arg34[%c0_277, %c0_278, %c0_279] : memref<1x1x5xf32, #tpu.memory_space<vmem>>, vector<1x1x5xf32>
    %263 = vector.shape_cast %262 : vector<1x1x5xf32> to vector<1x5xf32>
    %264 = vector.shape_cast %261 : vector<1x5xf32> to vector<1x1x5xf32>
    tpu.vector_store %arg34[%c0_277, %c0_278, %c0_279], %264 {strides = array<i32>} : memref<1x1x5xf32, #tpu.memory_space<vmem>>, vector<1x1x5xf32>,
    return
  }
  func.func @transform_0(%arg0: i32) -> (i32, i32, i32) {
    %c0_i32 = arith.constant 0 : i32
    %c0_i32_0 = arith.constant 0 : i32
    %c0_i32_1 = arith.constant 0 : i32
    return %arg0, %c0_i32, %c0_i32_0 : i32, i32, i32
  }
  func.func @transform_1(%arg0: i32) -> (i32, i32, i32) {
    %c0_i32 = arith.constant 0 : i32
    %c0_i32_0 = arith.constant 0 : i32
    %c0_i32_1 = arith.constant 0 : i32
    %c0_i32_2 = arith.constant 0 : i32
    return %c0_i32, %c0_i32_0, %c0_i32_1 : i32, i32, i32
  }
  func.func @transform_2(%arg0: i32) -> (i32, i32) {
    %c0_i32 = arith.constant 0 : i32
    %c0_i32_0 = arith.constant 0 : i32
    %c0_i32_1 = arith.constant 0 : i32
    return %c0_i32, %c0_i32_0 : i32, i32
  }
  func.func @transform_3(%arg0: i32) -> (i32, i32) {
    %c0_i32 = arith.constant 0 : i32
    %c0_i32_0 = arith.constant 0 : i32
    %c0_i32_1 = arith.constant 0 : i32
    return %c0_i32, %c0_i32_0 : i32, i32
  }
  func.func @transform_4(%arg0: i32) -> (i32, i32, i32) {
    %c0_i32 = arith.constant 0 : i32
    %c0_i32_0 = arith.constant 0 : i32
    %c0_i32_1 = arith.constant 0 : i32
    %c0_i32_2 = arith.constant 0 : i32
    return %c0_i32, %c0_i32_0, %c0_i32_1 : i32, i32, i32
  }
  func.func @transform_5(%arg0: i32) -> (i32, i32) {
    %c0_i32 = arith.constant 0 : i32
    %c0_i32_0 = arith.constant 0 : i32
    %c0_i32_1 = arith.constant 0 : i32
    return %c0_i32, %c0_i32_0 : i32, i32
  }
  func.func @transform_6(%arg0: i32) -> (i32, i32) {
    %c0_i32 = arith.constant 0 : i32
    %c0_i32_0 = arith.constant 0 : i32
    %c0_i32_1 = arith.constant 0 : i32
    return %c0_i32, %c0_i32_0 : i32, i32
  }
  func.func @transform_7(%arg0: i32) -> (i32, i32, i32) {
    %c0_i32 = arith.constant 0 : i32
    %c0_i32_0 = arith.constant 0 : i32
    %c0_i32_1 = arith.constant 0 : i32
    %c0_i32_2 = arith.constant 0 : i32
    return %c0_i32, %c0_i32_0, %c0_i32_1 : i32, i32, i32
  }
  func.func @transform_8(%arg0: i32) -> (i32, i32) {
    %c0_i32 = arith.constant 0 : i32
    %c0_i32_0 = arith.constant 0 : i32
    %c0_i32_1 = arith.constant 0 : i32
    return %c0_i32, %c0_i32_0 : i32, i32
  }
  func.func @transform_9(%arg0: i32) -> (i32, i32) {
    %c0_i32 = arith.constant 0 : i32
    %c0_i32_0 = arith.constant 0 : i32
    %c0_i32_1 = arith.constant 0 : i32
    return %c0_i32, %c0_i32_0 : i32, i32
  }
  func.func @transform_10(%arg0: i32) -> (i32, i32, i32) {
    %c0_i32 = arith.constant 0 : i32
    %c0_i32_0 = arith.constant 0 : i32
    %c0_i32_1 = arith.constant 0 : i32
    %c0_i32_2 = arith.constant 0 : i32
    return %c0_i32, %c0_i32_0, %c0_i32_1 : i32, i32, i32
  }
  func.func @transform_11(%arg0: i32) -> (i32, i32) {
    %c0_i32 = arith.constant 0 : i32
    %c0_i32_0 = arith.constant 0 : i32
    %c0_i32_1 = arith.constant 0 : i32
    return %c0_i32, %c0_i32_0 : i32, i32
  }
  func.func @transform_12(%arg0: i32) -> (i32, i32) {
    %c0_i32 = arith.constant 0 : i32
    %c0_i32_0 = arith.constant 0 : i32
    %c0_i32_1 = arith.constant 0 : i32
    return %c0_i32, %c0_i32_0 : i32, i32
  }
  func.func @transform_13(%arg0: i32) -> (i32, i32, i32) {
    %c0_i32 = arith.constant 0 : i32
    %c0_i32_0 = arith.constant 0 : i32
    %c0_i32_1 = arith.constant 0 : i32
    %c0_i32_2 = arith.constant 0 : i32
    return %c0_i32, %c0_i32_0, %c0_i32_1 : i32, i32, i32
  }
  func.func @transform_14(%arg0: i32) -> (i32, i32) {
    %c0_i32 = arith.constant 0 : i32
    %c0_i32_0 = arith.constant 0 : i32
    %c0_i32_1 = arith.constant 0 : i32
    return %c0_i32, %c0_i32_0 : i32, i32
  }
  func.func @transform_15(%arg0: i32) -> (i32, i32) {
    %c0_i32 = arith.constant 0 : i32
    %c0_i32_0 = arith.constant 0 : i32
    %c0_i32_1 = arith.constant 0 : i32
    return %c0_i32, %c0_i32_0 : i32, i32
  }
  func.func @transform_16(%arg0: i32) -> (i32, i32, i32) {
    %c0_i32 = arith.constant 0 : i32
    %c0_i32_0 = arith.constant 0 : i32
    %c0_i32_1 = arith.constant 0 : i32
    %c0_i32_2 = arith.constant 0 : i32
    return %c0_i32, %c0_i32_0, %c0_i32_1 : i32, i32, i32
  }
  func.func @transform_17(%arg0: i32) -> (i32, i32) {
    %c0_i32 = arith.constant 0 : i32
    %c0_i32_0 = arith.constant 0 : i32
    %c0_i32_1 = arith.constant 0 : i32
    return %c0_i32, %c0_i32_0 : i32, i32
  }
  func.func @transform_18(%arg0: i32) -> (i32, i32) {
    %c0_i32 = arith.constant 0 : i32
    %c0_i32_0 = arith.constant 0 : i32
    %c0_i32_1 = arith.constant 0 : i32
    return %c0_i32, %c0_i32_0 : i32, i32
  }
  func.func @transform_19(%arg0: i32) -> (i32, i32, i32) {
    %c0_i32 = arith.constant 0 : i32
    %c0_i32_0 = arith.constant 0 : i32
    %c0_i32_1 = arith.constant 0 : i32
    %c0_i32_2 = arith.constant 0 : i32
    return %c0_i32, %c0_i32_0, %c0_i32_1 : i32, i32, i32
  }
  func.func @transform_20(%arg0: i32) -> (i32, i32) {
    %c0_i32 = arith.constant 0 : i32
    %c0_i32_0 = arith.constant 0 : i32
    %c0_i32_1 = arith.constant 0 : i32
    return %c0_i32, %c0_i32_0 : i32, i32
  }
  func.func @transform_21(%arg0: i32) -> (i32, i32) {
    %c0_i32 = arith.constant 0 : i32
    %c0_i32_0 = arith.constant 0 : i32
    %c0_i32_1 = arith.constant 0 : i32
    return %c0_i32, %c0_i32_0 : i32, i32
  }
  func.func @transform_22(%arg0: i32) -> (i32, i32, i32) {
    %c0_i32 = arith.constant 0 : i32
    %c0_i32_0 = arith.constant 0 : i32
    %c0_i32_1 = arith.constant 0 : i32
    %c0_i32_2 = arith.constant 0 : i32
    return %c0_i32, %c0_i32_0, %c0_i32_1 : i32, i32, i32
  }
  func.func @transform_23(%arg0: i32) -> (i32, i32) {
    %c0_i32 = arith.constant 0 : i32
    %c0_i32_0 = arith.constant 0 : i32
    %c0_i32_1 = arith.constant 0 : i32
    return %c0_i32, %c0_i32_0 : i32, i32
  }
  func.func @transform_24(%arg0: i32) -> (i32, i32) {
    %c0_i32 = arith.constant 0 : i32
    %c0_i32_0 = arith.constant 0 : i32
    %c0_i32_1 = arith.constant 0 : i32
    return %c0_i32, %c0_i32_0 : i32, i32
  }
  func.func @transform_25(%arg0: i32) -> (i32, i32, i32) {
    %c0_i32 = arith.constant 0 : i32
    %c0_i32_0 = arith.constant 0 : i32
    %c0_i32_1 = arith.constant 0 : i32
    %c0_i32_2 = arith.constant 0 : i32
    return %c0_i32, %c0_i32_0, %c0_i32_1 : i32, i32, i32
  }
  func.func @transform_26(%arg0: i32) -> (i32, i32) {
    %c0_i32 = arith.constant 0 : i32
    %c0_i32_0 = arith.constant 0 : i32
    %c0_i32_1 = arith.constant 0 : i32
    return %c0_i32, %c0_i32_0 : i32, i32
  }
  func.func @transform_27(%arg0: i32) -> (i32, i32) {
    %c0_i32 = arith.constant 0 : i32
    %c0_i32_0 = arith.constant 0 : i32
    %c0_i32_1 = arith.constant 0 : i32
    return %c0_i32, %c0_i32_0 : i32, i32
  }
  func.func @transform_28(%arg0: i32) -> (i32, i32, i32) {
    %c0_i32 = arith.constant 0 : i32
    %c0_i32_0 = arith.constant 0 : i32
    %c0_i32_1 = arith.constant 0 : i32
    %c0_i32_2 = arith.constant 0 : i32
    return %c0_i32, %c0_i32_0, %c0_i32_1 : i32, i32, i32
  }
  func.func @transform_29(%arg0: i32) -> (i32, i32) {
    %c0_i32 = arith.constant 0 : i32
    %c0_i32_0 = arith.constant 0 : i32
    %c0_i32_1 = arith.constant 0 : i32
    return %c0_i32, %c0_i32_0 : i32, i32
  }
  func.func @transform_30(%arg0: i32) -> (i32, i32) {
    %c0_i32 = arith.constant 0 : i32
    %c0_i32_0 = arith.constant 0 : i32
    %c0_i32_1 = arith.constant 0 : i32
    return %c0_i32, %c0_i32_0 : i32, i32
  }
  func.func @transform_31(%arg0: i32) -> (i32, i32) {
    %c0_i32 = arith.constant 0 : i32
    %c0_i32_0 = arith.constant 0 : i32
    %c0_i32_1 = arith.constant 0 : i32
    return %c0_i32, %c0_i32_0 : i32, i32
  }
  func.func @transform_32(%arg0: i32) -> (i32, i32) {
    %c0_i32 = arith.constant 0 : i32
    %c0_i32_0 = arith.constant 0 : i32
    %c0_i32_1 = arith.constant 0 : i32
    return %c0_i32, %c0_i32_0 : i32, i32
  }
  func.func @transform_33(%arg0: i32) -> (i32, i32, i32) {
    %c0_i32 = arith.constant 0 : i32
    %c0_i32_0 = arith.constant 0 : i32
    %c0_i32_1 = arith.constant 0 : i32
    return %arg0, %c0_i32, %c0_i32_0 : i32, i32, i32
  }
}

</mosaic_0001>

<llo_original>
// kernel: cnn_surface_classifier.1
$region0: #{cnn_surface_classifier.1}
  #allocation0 [shape = 'u32[]', space=smem, size = 0x4, offset = 0x4, fixed_abs, tag = 'smem constant byte address 0x4 - core index']
  #allocation1 [shape = 'u32[144,128]{1,0:T(1,128)}', space=vmem, size = 0x12000, scoped, tag = 'internal scratch']
  #allocation2 [shape = 'f32[75,4]{1,0:T(8,128)}', space=vmem, size = 0xa000, scoped, tag = 'scratch operand']
  #allocation3 [shape = 'f32[41,32]{1,0:T(8,128)}', space=vmem, size = 0x6000, scoped, tag = 'scratch operand']
  #allocation4 [shape = 'f32[25,32]{1,0:T(8,128)}', space=vmem, size = 0x4000, scoped, tag = 'scratch operand']
  #allocation5 [shape = 'f32[17,64]{1,0:T(8,128)}', space=vmem, size = 0x3000, scoped, tag = 'scratch operand']
  #allocation6 [shape = 'f32[17,64]{1,0:T(8,128)}', space=vmem, size = 0x3000, scoped, tag = 'scratch operand']
  #allocation7 [shape = 'f32[13,128]{1,0:T(8,128)}', space=vmem, size = 0x2000, scoped, tag = 'scratch operand']
  #allocation8 [shape = 'f32[13,128]{1,0:T(8,128)}', space=vmem, size = 0x2000, scoped, tag = 'scratch operand']
  #allocation9 [shape = 'f32[11,256]{1,0:T(8,128)}', space=vmem, size = 0x4000, scoped, tag = 'scratch operand']
  %s0 = inlined_call_operand.smem [shape: u32[34], index: -1, kind: input, shape index: {}]
  %s1 = sld [smem:[%s0]]
  %s2 = scalar_lea.smem %s0, 1
  %s3 = sld [smem:[%s2]]
  %s4 = scalar_lea.smem %s0, 2
  %s5 = sld [smem:[%s4]]
  %s6 = scalar_lea.smem %s0, 3
  %s7 = sld [smem:[%s6]]
  %s8 = scalar_lea.smem %s0, 4
  %s9 = sld [smem:[%s8]]
  %s10 = scalar_lea.smem %s0, 5
  %s11 = sld [smem:[%s10]]
  %s12 = scalar_lea.smem %s0, 6
  %s13 = sld [smem:[%s12]]
  %s14 = scalar_lea.smem %s0, 7
  %s15 = sld [smem:[%s14]]
  %s16 = scalar_lea.smem %s0, 8
  %s17 = sld [smem:[%s16]]
  %s18 = scalar_lea.smem %s0, 9
  %s19 = sld [smem:[%s18]]
  %s20 = scalar_lea.smem %s0, 10
  %s21 = sld [smem:[%s20]]
  %s22 = scalar_lea.smem %s0, 11
  %s23 = sld [smem:[%s22]]
  %s24 = scalar_lea.smem %s0, 12
  %s25 = sld [smem:[%s24]]
  %s26 = scalar_lea.smem %s0, 13
  %s27 = sld [smem:[%s26]]
  %s28 = scalar_lea.smem %s0, 14
  %s29 = sld [smem:[%s28]]
  %s30 = scalar_lea.smem %s0, 15
  %s31 = sld [smem:[%s30]]
  %s32 = scalar_lea.smem %s0, 16
  %s33 = sld [smem:[%s32]]
  %s34 = scalar_lea.smem %s0, 17
  %s35 = sld [smem:[%s34]]
  %s36 = scalar_lea.smem %s0, 18
  %s37 = sld [smem:[%s36]]
  %s38 = scalar_lea.smem %s0, 19
  %s39 = sld [smem:[%s38]]
  %s40 = scalar_lea.smem %s0, 20
  %s41 = sld [smem:[%s40]]
  %s42 = scalar_lea.smem %s0, 21
  %s43 = sld [smem:[%s42]]
  %s44 = scalar_lea.smem %s0, 22
  %s45 = sld [smem:[%s44]]
  %s46 = scalar_lea.smem %s0, 23
  %s47 = sld [smem:[%s46]]
  %s48 = scalar_lea.smem %s0, 24
  %s49 = sld [smem:[%s48]]
  %s50 = scalar_lea.smem %s0, 25
  %s51 = sld [smem:[%s50]]
  %s52 = scalar_lea.smem %s0, 26
  %s53 = sld [smem:[%s52]]
  %s54 = scalar_lea.smem %s0, 27
  %s55 = sld [smem:[%s54]]
  %s56 = scalar_lea.smem %s0, 28
  %s57 = sld [smem:[%s56]]
  %s58 = scalar_lea.smem %s0, 29
  %s59 = sld [smem:[%s58]]
  %s60 = scalar_lea.smem %s0, 30
  %s61 = sld [smem:[%s60]]
  %s62 = scalar_lea.smem %s0, 31
  %s63 = sld [smem:[%s62]]
  %s64 = scalar_lea.smem %s0, 32
  %s65 = sld [smem:[%s64]]
  %s66 = scalar_lea.smem %s0, 33
  %s67 = sld [smem:[%s66]]
  %s68 = sld [smem:[#allocation0]]
  $region253: #{cnn_surface_classifier.1} parent=0
    _
  %s70 = ssub.s32 1, %s68
  %s71 = scalar_select 0, %s70, %s68
  $region1: #{cnn_surface_classifier.1} parent=0
    #allocation10 [shape = 'u8[14336]{0}', space=vmem, size = 0x3800, scoped, tag = 'input window, operand 1, single buffered']
    #allocation11 [shape = 's32[2]{0}', space=sflag, size = 0x8, scoped, tag = 'scoped memory for cnn_surface_classifier.1']
    #allocation12 [shape = 's32[2]{0}', space=sflag, size = 0x8, scoped, tag = 'scoped memory for cnn_surface_classifier.1']
    #allocation13 [shape = 'u8[512]{0}', space=vmem, size = 0x400, scoped, tag = 'input window, operand 2, single buffered']
    #allocation14 [shape = 's32[1]{0}', space=sflag, size = 0x4, scoped, tag = 'scoped memory for cnn_surface_classifier.1']
    #allocation15 [shape = 'u8[512]{0}', space=vmem, size = 0x400, scoped, tag = 'input window, operand 3, single buffered']
    #allocation16 [shape = 'u8[16384]{0}', space=vmem, size = 0x4000, scoped, tag = 'input window, operand 4, single buffered']
    #allocation17 [shape = 's32[1]{0}', space=sflag, size = 0x4, scoped, tag = 'scoped memory for cnn_surface_classifier.1']
    #allocation18 [shape = 'u8[512]{0}', space=vmem, size = 0x400, scoped, tag = 'input window, operand 5, single buffered']
    #allocation19 [shape = 'u8[512]{0}', space=vmem, size = 0x400, scoped, tag = 'input window, operand 6, single buffered']
    #allocation20 [shape = 's32[1]{0}', space=sflag, size = 0x4, scoped, tag = 'scoped memory for cnn_surface_classifier.1']
    #allocation21 [shape = 'u8[512]{0}', space=vmem, size = 0x400, scoped, tag = 'input window, operand 8, single buffered']
    #allocation22 [shape = 'u8[512]{0}', space=vmem, size = 0x400, scoped, tag = 'input window, operand 9, single buffered']
    #allocation23 [shape = 's32[1]{0}', space=sflag, size = 0x4, scoped, tag = 'scoped memory for cnn_surface_classifier.1']
    #allocation24 [shape = 'u8[98304]{0}', space=vmem, size = 0x18000, scoped, tag = 'input window, operand 10, single buffered']
    #allocation25 [shape = 'u8[512]{0}', space=vmem, size = 0x400, scoped, tag = 'input window, operand 11, single buffered']
    #allocation26 [shape = 's32[1]{0}', space=sflag, size = 0x4, scoped, tag = 'scoped memory for cnn_surface_classifier.1']
    #allocation27 [shape = 'u8[512]{0}', space=vmem, size = 0x400, scoped, tag = 'input window, operand 12, single buffered']
    #allocation28 [shape = 'u8[32768]{0}', space=vmem, size = 0x8000, scoped, tag = 'input window, operand 13, single buffered']
    #allocation29 [shape = 's32[1]{0}', space=sflag, size = 0x4, scoped, tag = 'scoped memory for cnn_surface_classifier.1']
    #allocation30 [shape = 'u8[512]{0}', space=vmem, size = 0x400, scoped, tag = 'input window, operand 14, single buffered']
    #allocation31 [shape = 'u8[512]{0}', space=vmem, size = 0x400, scoped, tag = 'input window, operand 15, single buffered']
    #allocation32 [shape = 's32[1]{0}', space=sflag, size = 0x4, scoped, tag = 'scoped memory for cnn_surface_classifier.1']
    #allocation33 [shape = 'u8[98304]{0}', space=vmem, size = 0x18000, scoped, tag = 'input window, operand 16, single buffered']
    #allocation34 [shape = 'u8[512]{0}', space=vmem, size = 0x400, scoped, tag = 'input window, operand 17, single buffered']
    #allocation35 [shape = 's32[1]{0}', space=sflag, size = 0x4, scoped, tag = 'scoped memory for cnn_surface_classifier.1']
    #allocation36 [shape = 'u8[512]{0}', space=vmem, size = 0x400, scoped, tag = 'input window, operand 18, single buffered']
    #allocation37 [shape = 'u8[512]{0}', space=vmem, size = 0x400, scoped, tag = 'input window, operand 20, single buffered']
    #allocation38 [shape = 's32[1]{0}', space=sflag, size = 0x4, scoped, tag = 'scoped memory for cnn_surface_classifier.1']
    #allocation39 [shape = 'u8[512]{0}', space=vmem, size = 0x400, scoped, tag = 'input window, operand 21, single buffered']
    #allocation40 [shape = 'u8[131072]{0}', space=vmem, size = 0x20000, scoped, tag = 'input window, operand 22, single buffered']
    #allocation41 [shape = 's32[1]{0}', space=sflag, size = 0x4, scoped, tag = 'scoped memory for cnn_surface_classifier.1']
    #allocation42 [shape = 'u8[393216]{0}', space=vmem, size = 0x60000, scoped, tag = 'input window, operand 25, single buffered']
    #allocation43 [shape = 'u8[786432]{0}', space=vmem, size = 0xc0000, scoped, tag = 'input window, operand 28, single buffered']
    #allocation44 [shape = 's32[1]{0}', space=sflag, size = 0x4, scoped, tag = 'scoped memory for cnn_surface_classifier.1']
    #allocation45 [shape = 'u8[1024]{0}', space=vmem, size = 0x400, scoped, tag = 'output window, operand 0']
    %72 = vsyncpa [#allocation11], 0
    %73 = vsyncpa [#allocation14], 0
    %74 = vsyncpa [#allocation17], 0
    %75 = vsyncpa [#allocation20], 0
    %76 = vsyncpa [#allocation23], 0
    %77 = vsyncpa [#allocation26], 0
    %78 = vsyncpa [#allocation29], 0
    %79 = vsyncpa [#allocation32], 0
    %80 = vsyncpa [#allocation35], 0
    %81 = vsyncpa [#allocation38], 0
    %82 = vsyncpa [#allocation41], 0
    %83 = vsyncpa [#allocation44], 0
    %84 = vsyncpa [#allocation12], 0
    %s85 = scalar_lea.sflag [#allocation12], 1
    %86 = vsyncpa %s85, 0
    loop: start=0, step=1, limit=4
    $region2: #{cnn_surface_classifier.1} parent=1 // loop_pre_header
      _
    $region3: #{cnn_surface_classifier.1} parent=1 // loop_header
      %s88 = sphi 0, %s92
      %p89 = scmp.ge.s32.totalorder %s88, 4
      %s98 = sphi 0, %s100
      %s101 = sphi 0, %s98
      %s102 = sphi 0, %s101
      %s118 = sphi 0, %s102
      %s122 = sphi 0, %s122
      %s124 = sphi 0, %s122
      %s125 = sphi 0, %s124
      %s139 = sphi 0, %s125
      %s143 = sphi 0, %s143
      %s145 = sphi 0, %s143
      %s146 = sphi 0, %s145
      %s160 = sphi 0, %s146
      %s164 = sphi 0, %s164
      %s166 = sphi 0, %s164
      %s167 = sphi 0, %s166
      %s181 = sphi 0, %s167
      %s185 = sphi 0, %s185
      %s187 = sphi 0, %s185
      %s188 = sphi 0, %s187
      %s202 = sphi 0, %s188
      %s206 = sphi 0, %s206
      %s208 = sphi 0, %s206
      %s209 = sphi 0, %s208
      %s223 = sphi 0, %s209
      %s227 = sphi 0, %s227
      %s229 = sphi 0, %s227
      %s230 = sphi 0, %s229
      %s244 = sphi 0, %s230
      %s248 = sphi 0, %s248
      %s250 = sphi 0, %s248
      %s251 = sphi 0, %s250
      %s265 = sphi 0, %s251
      %s269 = sphi 0, %s269
      %s271 = sphi 0, %s269
      %s272 = sphi 0, %s271
      %s286 = sphi 0, %s272
      %s290 = sphi 0, %s290
      %s292 = sphi 0, %s290
      %s293 = sphi 0, %s292
      %s307 = sphi 0, %s293
      %s311 = sphi 0, %s311
      %s313 = sphi 0, %s311
      %s314 = sphi 0, %s313
      %s328 = sphi 0, %s314
      %s332 = sphi 0, %s332
      %s334 = sphi 0, %s332
      %s335 = sphi 0, %s334
      %s349 = sphi 0, %s335
      %s353 = sphi 0, %s353
      %s355 = sphi 0, %s353
      %s356 = sphi 0, %s355
      %s370 = sphi 0, %s356
      %s374 = sphi 0, %s374
      %s376 = sphi 0, %s374
      %s377 = sphi 0, %s376
      %s391 = sphi 0, %s377
      %s395 = sphi 0, %s395
      %s397 = sphi 0, %s395
      %s398 = sphi 0, %s397
      %s412 = sphi 0, %s398
      %s416 = sphi 0, %s416
      %s418 = sphi 0, %s416
      %s419 = sphi 0, %s418
      %s433 = sphi 0, %s419
      %s437 = sphi 0, %s437
      %s439 = sphi 0, %s437
      %s440 = sphi 0, %s439
      %s454 = sphi 0, %s440
      %s458 = sphi 0, %s458
      %s460 = sphi 0, %s458
      %s461 = sphi 0, %s460
      %s475 = sphi 0, %s461
      %s479 = sphi 0, %s479
      %s481 = sphi 0, %s479
      %s482 = sphi 0, %s481
      %s496 = sphi 0, %s482
      %s500 = sphi 0, %s500
      %s502 = sphi 0, %s500
      %s503 = sphi 0, %s502
      %s517 = sphi 0, %s503
      %s521 = sphi 0, %s521
      %s523 = sphi 0, %s521
      %s524 = sphi 0, %s523
      %s538 = sphi 0, %s524
      %s542 = sphi 0, %s542
      %s544 = sphi 0, %s542
      %s545 = sphi 0, %s544
      %s559 = sphi 0, %s545
      %s563 = sphi 0, %s563
      %s565 = sphi 0, %s563
      %s566 = sphi 0, %s565
      %s580 = sphi 0, %s566
      %s584 = sphi 0, %s584
      %s586 = sphi 0, %s584
      %s587 = sphi 0, %s586
      %s601 = sphi 0, %s587
      %s605 = sphi 0, %s605
      %s607 = sphi 0, %s605
      %s608 = sphi 0, %s607
      %s622 = sphi 0, %s608
      %s626 = sphi 0, %s626
      %s628 = sphi 0, %s626
      %s629 = sphi 0, %s628
      %s643 = sphi 0, %s629
      %s647 = sphi 0, %s647
      %s649 = sphi 0, %s647
      %s650 = sphi 0, %s649
      %s664 = sphi 0, %s650
      %s668 = sphi 0, %s668
      %s670 = sphi 0, %s668
      %s671 = sphi 0, %s670
      %s685 = sphi 0, %s671
      %s689 = sphi 0, %s689
      %s691 = sphi 0, %s689
      %s692 = sphi 0, %s691
      %s706 = sphi 0, %s692
      %s710 = sphi 0, %s710
      %s712 = sphi 0, %s710
      %s713 = sphi 0, %s712
      %s727 = sphi 0, %s713
      %s731 = sphi 0, %s731
      %s733 = sphi 0, %s731
      %s734 = sphi 0, %s733
      %s748 = sphi 0, %s734
      %s752 = sphi 0, %s752
      %s754 = sphi 0, %s752
      %s755 = sphi 0, %s754
      %s769 = sphi 0, %s755
      %s773 = sphi 0, %s773
      %s775 = sphi 0, %s773
      %s776 = sphi 0, %s775
      %s790 = sphi 0, %s776
      %s796 = sphi 0, %s798
      %s799 = sphi 0, %s796
      %s800 = sphi 0, %s799
      %s816 = sphi 0, %s800
    $region4: #{cnn_surface_classifier.1} parent=1 // loop_header_branch
      %91 = sbr.rel (%p89) target = $region8
    $region5: #{cnn_surface_classifier.1} parent=1 // loop_body
      %s93 = ssub.s32 %s88, 1
      %s94 = ssub.s32 %s88, 2
      %s95 = sadd.s32 %s88, 1
      %s96 = ssub.s32 %s88, %s95
      %p97 = scmp.eq.s32.totalorder %s96, 0
      %s99 = sadd.s32 %s98, 1
      %s100 = scalar_select %p97, %s98, %s99
      %p103 = pneg %p97
      %p104 = scmp.eq.s32.totalorder %s88, 1
      %p105 = por %p103, %p104
      %p106 = scmp.ne.s32.totalorder %s98, %s101
      %p107 = scmp.eq.s32.totalorder %s88, 0
      %p108 = por %p106, %p107
      %p109 = scmp.ne.s32.totalorder %s98, %s101
      %p110 = scmp.eq.s32.totalorder %s93, 1
      %p111 = por %p109, %p110
      %p112 = scmp.ne.s32.totalorder %s101, %s102
      %p113 = scmp.eq.s32.totalorder %s93, 0
      %p114 = por %p112, %p113
      %p115 = scmp.ne.s32.totalorder %s101, %s102
      %p116 = scmp.eq.s32.totalorder %s94, 1
      %p117 = por %p115, %p116
      %p119 = scmp.ne.s32.totalorder %s102, %s118
      %p120 = scmp.eq.s32.totalorder %s94, 0
      %p121 = por %p119, %p120
      %s123 = sadd.s32 %s122, 1
      %p126 = scmp.eq.s32.totalorder %s88, 1
      %p127 = scmp.ne.s32.totalorder %s122, %s124
      %p128 = scmp.eq.s32.totalorder %s88, 0
      %p129 = por %p127, %p128
      %p130 = scmp.ne.s32.totalorder %s122, %s124
      %p131 = scmp.eq.s32.totalorder %s93, 1
      %p132 = por %p130, %p131
      %p133 = scmp.ne.s32.totalorder %s124, %s125
      %p134 = scmp.eq.s32.totalorder %s93, 0
      %p135 = por %p133, %p134
      %p136 = scmp.ne.s32.totalorder %s124, %s125
      %p137 = scmp.eq.s32.totalorder %s94, 1
      %p138 = por %p136, %p137
      %p140 = scmp.ne.s32.totalorder %s125, %s139
      %p141 = scmp.eq.s32.totalorder %s94, 0
      %p142 = por %p140, %p141
      %s144 = sadd.s32 %s143, 1
      %p147 = scmp.eq.s32.totalorder %s88, 1
      %p148 = scmp.ne.s32.totalorder %s143, %s145
      %p149 = scmp.eq.s32.totalorder %s88, 0
      %p150 = por %p148, %p149
      %p151 = scmp.ne.s32.totalorder %s143, %s145
      %p152 = scmp.eq.s32.totalorder %s93, 1
      %p153 = por %p151, %p152
      %p154 = scmp.ne.s32.totalorder %s145, %s146
      %p155 = scmp.eq.s32.totalorder %s93, 0
      %p156 = por %p154, %p155
      %p157 = scmp.ne.s32.totalorder %s145, %s146
      %p158 = scmp.eq.s32.totalorder %s94, 1
      %p159 = por %p157, %p158
      %p161 = scmp.ne.s32.totalorder %s146, %s160
      %p162 = scmp.eq.s32.totalorder %s94, 0
      %p163 = por %p161, %p162
      %s165 = sadd.s32 %s164, 1
      %p168 = scmp.eq.s32.totalorder %s88, 1
      %p169 = scmp.ne.s32.totalorder %s164, %s166
      %p170 = scmp.eq.s32.totalorder %s88, 0
      %p171 = por %p169, %p170
      %p172 = scmp.ne.s32.totalorder %s164, %s166
      %p173 = scmp.eq.s32.totalorder %s93, 1
      %p174 = por %p172, %p173
      %p175 = scmp.ne.s32.totalorder %s166, %s167
      %p176 = scmp.eq.s32.totalorder %s93, 0
      %p177 = por %p175, %p176
      %p178 = scmp.ne.s32.totalorder %s166, %s167
      %p179 = scmp.eq.s32.totalorder %s94, 1
      %p180 = por %p178, %p179
      %p182 = scmp.ne.s32.totalorder %s167, %s181
      %p183 = scmp.eq.s32.totalorder %s94, 0
      %p184 = por %p182, %p183
      %s186 = sadd.s32 %s185, 1
      %p189 = scmp.eq.s32.totalorder %s88, 1
      %p190 = scmp.ne.s32.totalorder %s185, %s187
      %p191 = scmp.eq.s32.totalorder %s88, 0
      %p192 = por %p190, %p191
      %p193 = scmp.ne.s32.totalorder %s185, %s187
      %p194 = scmp.eq.s32.totalorder %s93, 1
      %p195 = por %p193, %p194
      %p196 = scmp.ne.s32.totalorder %s187, %s188
      %p197 = scmp.eq.s32.totalorder %s93, 0
      %p198 = por %p196, %p197
      %p199 = scmp.ne.s32.totalorder %s187, %s188
      %p200 = scmp.eq.s32.totalorder %s94, 1
      %p201 = por %p199, %p200
      %p203 = scmp.ne.s32.totalorder %s188, %s202
      %p204 = scmp.eq.s32.totalorder %s94, 0
      %p205 = por %p203, %p204
      %s207 = sadd.s32 %s206, 1
      %p210 = scmp.eq.s32.totalorder %s88, 1
      %p211 = scmp.ne.s32.totalorder %s206, %s208
      %p212 = scmp.eq.s32.totalorder %s88, 0
      %p213 = por %p211, %p212
      %p214 = scmp.ne.s32.totalorder %s206, %s208
      %p215 = scmp.eq.s32.totalorder %s93, 1
      %p216 = por %p214, %p215
      %p217 = scmp.ne.s32.totalorder %s208, %s209
      %p218 = scmp.eq.s32.totalorder %s93, 0
      %p219 = por %p217, %p218
      %p220 = scmp.ne.s32.totalorder %s208, %s209
      %p221 = scmp.eq.s32.totalorder %s94, 1
      %p222 = por %p220, %p221
      %p224 = scmp.ne.s32.totalorder %s209, %s223
      %p225 = scmp.eq.s32.totalorder %s94, 0
      %p226 = por %p224, %p225
      %s228 = sadd.s32 %s227, 1
      %p231 = scmp.eq.s32.totalorder %s88, 1
      %p232 = scmp.ne.s32.totalorder %s227, %s229
      %p233 = scmp.eq.s32.totalorder %s88, 0
      %p234 = por %p232, %p233
      %p235 = scmp.ne.s32.totalorder %s227, %s229
      %p236 = scmp.eq.s32.totalorder %s93, 1
      %p237 = por %p235, %p236
      %p238 = scmp.ne.s32.totalorder %s229, %s230
      %p239 = scmp.eq.s32.totalorder %s93, 0
      %p240 = por %p238, %p239
      %p241 = scmp.ne.s32.totalorder %s229, %s230
      %p242 = scmp.eq.s32.totalorder %s94, 1
      %p243 = por %p241, %p242
      %p245 = scmp.ne.s32.totalorder %s230, %s244
      %p246 = scmp.eq.s32.totalorder %s94, 0
      %p247 = por %p245, %p246
      %s249 = sadd.s32 %s248, 1
      %p252 = scmp.eq.s32.totalorder %s88, 1
      %p253 = scmp.ne.s32.totalorder %s248, %s250
      %p254 = scmp.eq.s32.totalorder %s88, 0
      %p255 = por %p253, %p254
      %p256 = scmp.ne.s32.totalorder %s248, %s250
      %p257 = scmp.eq.s32.totalorder %s93, 1
      %p258 = por %p256, %p257
      %p259 = scmp.ne.s32.totalorder %s250, %s251
      %p260 = scmp.eq.s32.totalorder %s93, 0
      %p261 = por %p259, %p260
      %p262 = scmp.ne.s32.totalorder %s250, %s251
      %p263 = scmp.eq.s32.totalorder %s94, 1
      %p264 = por %p262, %p263
      %p266 = scmp.ne.s32.totalorder %s251, %s265
      %p267 = scmp.eq.s32.totalorder %s94, 0
      %p268 = por %p266, %p267
      %s270 = sadd.s32 %s269, 1
      %p273 = scmp.eq.s32.totalorder %s88, 1
      %p274 = scmp.ne.s32.totalorder %s269, %s271
      %p275 = scmp.eq.s32.totalorder %s88, 0
      %p276 = por %p274, %p275
      %p277 = scmp.ne.s32.totalorder %s269, %s271
      %p278 = scmp.eq.s32.totalorder %s93, 1
      %p279 = por %p277, %p278
      %p280 = scmp.ne.s32.totalorder %s271, %s272
      %p281 = scmp.eq.s32.totalorder %s93, 0
      %p282 = por %p280, %p281
      %p283 = scmp.ne.s32.totalorder %s271, %s272
      %p284 = scmp.eq.s32.totalorder %s94, 1
      %p285 = por %p283, %p284
      %p287 = scmp.ne.s32.totalorder %s272, %s286
      %p288 = scmp.eq.s32.totalorder %s94, 0
      %p289 = por %p287, %p288
      %s291 = sadd.s32 %s290, 1
      %p294 = scmp.eq.s32.totalorder %s88, 1
      %p295 = scmp.ne.s32.totalorder %s290, %s292
      %p296 = scmp.eq.s32.totalorder %s88, 0
      %p297 = por %p295, %p296
      %p298 = scmp.ne.s32.totalorder %s290, %s292
      %p299 = scmp.eq.s32.totalorder %s93, 1
      %p300 = por %p298, %p299
      %p301 = scmp.ne.s32.totalorder %s292, %s293
      %p302 = scmp.eq.s32.totalorder %s93, 0
      %p303 = por %p301, %p302
      %p304 = scmp.ne.s32.totalorder %s292, %s293
      %p305 = scmp.eq.s32.totalorder %s94, 1
      %p306 = por %p304, %p305
      %p308 = scmp.ne.s32.totalorder %s293, %s307
      %p309 = scmp.eq.s32.totalorder %s94, 0
      %p310 = por %p308, %p309
      %s312 = sadd.s32 %s311, 1
      %p315 = scmp.eq.s32.totalorder %s88, 1
      %p316 = scmp.ne.s32.totalorder %s311, %s313
      %p317 = scmp.eq.s32.totalorder %s88, 0
      %p318 = por %p316, %p317
      %p319 = scmp.ne.s32.totalorder %s311, %s313
      %p320 = scmp.eq.s32.totalorder %s93, 1
      %p321 = por %p319, %p320
      %p322 = scmp.ne.s32.totalorder %s313, %s314
      %p323 = scmp.eq.s32.totalorder %s93, 0
      %p324 = por %p322, %p323
      %p325 = scmp.ne.s32.totalorder %s313, %s314
      %p326 = scmp.eq.s32.totalorder %s94, 1
      %p327 = por %p325, %p326
      %p329 = scmp.ne.s32.totalorder %s314, %s328
      %p330 = scmp.eq.s32.totalorder %s94, 0
      %p331 = por %p329, %p330
      %s333 = sadd.s32 %s332, 1
      %p336 = scmp.eq.s32.totalorder %s88, 1
      %p337 = scmp.ne.s32.totalorder %s332, %s334
      %p338 = scmp.eq.s32.totalorder %s88, 0
      %p339 = por %p337, %p338
      %p340 = scmp.ne.s32.totalorder %s332, %s334
      %p341 = scmp.eq.s32.totalorder %s93, 1
      %p342 = por %p340, %p341
      %p343 = scmp.ne.s32.totalorder %s334, %s335
      %p344 = scmp.eq.s32.totalorder %s93, 0
      %p345 = por %p343, %p344
      %p346 = scmp.ne.s32.totalorder %s334, %s335
      %p347 = scmp.eq.s32.totalorder %s94, 1
      %p348 = por %p346, %p347
      %p350 = scmp.ne.s32.totalorder %s335, %s349
      %p351 = scmp.eq.s32.totalorder %s94, 0
      %p352 = por %p350, %p351
      %s354 = sadd.s32 %s353, 1
      %p357 = scmp.eq.s32.totalorder %s88, 1
      %p358 = scmp.ne.s32.totalorder %s353, %s355
      %p359 = scmp.eq.s32.totalorder %s88, 0
      %p360 = por %p358, %p359
      %p361 = scmp.ne.s32.totalorder %s353, %s355
      %p362 = scmp.eq.s32.totalorder %s93, 1
      %p363 = por %p361, %p362
      %p364 = scmp.ne.s32.totalorder %s355, %s356
      %p365 = scmp.eq.s32.totalorder %s93, 0
      %p366 = por %p364, %p365
      %p367 = scmp.ne.s32.totalorder %s355, %s356
      %p368 = scmp.eq.s32.totalorder %s94, 1
      %p369 = por %p367, %p368
      %p371 = scmp.ne.s32.totalorder %s356, %s370
      %p372 = scmp.eq.s32.totalorder %s94, 0
      %p373 = por %p371, %p372
      %s375 = sadd.s32 %s374, 1
      %p378 = scmp.eq.s32.totalorder %s88, 1
      %p379 = scmp.ne.s32.totalorder %s374, %s376
      %p380 = scmp.eq.s32.totalorder %s88, 0
      %p381 = por %p379, %p380
      %p382 = scmp.ne.s32.totalorder %s374, %s376
      %p383 = scmp.eq.s32.totalorder %s93, 1
      %p384 = por %p382, %p383
      %p385 = scmp.ne.s32.totalorder %s376, %s377
      %p386 = scmp.eq.s32.totalorder %s93, 0
      %p387 = por %p385, %p386
      %p388 = scmp.ne.s32.totalorder %s376, %s377
      %p389 = scmp.eq.s32.totalorder %s94, 1
      %p390 = por %p388, %p389
      %p392 = scmp.ne.s32.totalorder %s377, %s391
      %p393 = scmp.eq.s32.totalorder %s94, 0
      %p394 = por %p392, %p393
      %s396 = sadd.s32 %s395, 1
      %p399 = scmp.eq.s32.totalorder %s88, 1
      %p400 = scmp.ne.s32.totalorder %s395, %s397
      %p401 = scmp.eq.s32.totalorder %s88, 0
      %p402 = por %p400, %p401
      %p403 = scmp.ne.s32.totalorder %s395, %s397
      %p404 = scmp.eq.s32.totalorder %s93, 1
      %p405 = por %p403, %p404
      %p406 = scmp.ne.s32.totalorder %s397, %s398
      %p407 = scmp.eq.s32.totalorder %s93, 0
      %p408 = por %p406, %p407
      %p409 = scmp.ne.s32.totalorder %s397, %s398
      %p410 = scmp.eq.s32.totalorder %s94, 1
      %p411 = por %p409, %p410
      %p413 = scmp.ne.s32.totalorder %s398, %s412
      %p414 = scmp.eq.s32.totalorder %s94, 0
      %p415 = por %p413, %p414
      %s417 = sadd.s32 %s416, 1
      %p420 = scmp.eq.s32.totalorder %s88, 1
      %p421 = scmp.ne.s32.totalorder %s416, %s418
      %p422 = scmp.eq.s32.totalorder %s88, 0
      %p423 = por %p421, %p422
      %p424 = scmp.ne.s32.totalorder %s416, %s418
      %p425 = scmp.eq.s32.totalorder %s93, 1
      %p426 = por %p424, %p425
      %p427 = scmp.ne.s32.totalorder %s418, %s419
      %p428 = scmp.eq.s32.totalorder %s93, 0
      %p429 = por %p427, %p428
      %p430 = scmp.ne.s32.totalorder %s418, %s419
      %p431 = scmp.eq.s32.totalorder %s94, 1
      %p432 = por %p430, %p431
      %p434 = scmp.ne.s32.totalorder %s419, %s433
      %p435 = scmp.eq.s32.totalorder %s94, 0
      %p436 = por %p434, %p435
      %s438 = sadd.s32 %s437, 1
      %p441 = scmp.eq.s32.totalorder %s88, 1
      %p442 = scmp.ne.s32.totalorder %s437, %s439
      %p443 = scmp.eq.s32.totalorder %s88, 0
      %p444 = por %p442, %p443
      %p445 = scmp.ne.s32.totalorder %s437, %s439
      %p446 = scmp.eq.s32.totalorder %s93, 1
      %p447 = por %p445, %p446
      %p448 = scmp.ne.s32.totalorder %s439, %s440
      %p449 = scmp.eq.s32.totalorder %s93, 0
      %p450 = por %p448, %p449
      %p451 = scmp.ne.s32.totalorder %s439, %s440
      %p452 = scmp.eq.s32.totalorder %s94, 1
      %p453 = por %p451, %p452
      %p455 = scmp.ne.s32.totalorder %s440, %s454
      %p456 = scmp.eq.s32.totalorder %s94, 0
      %p457 = por %p455, %p456
      %s459 = sadd.s32 %s458, 1
      %p462 = scmp.eq.s32.totalorder %s88, 1
      %p463 = scmp.ne.s32.totalorder %s458, %s460
      %p464 = scmp.eq.s32.totalorder %s88, 0
      %p465 = por %p463, %p464
      %p466 = scmp.ne.s32.totalorder %s458, %s460
      %p467 = scmp.eq.s32.totalorder %s93, 1
      %p468 = por %p466, %p467
      %p469 = scmp.ne.s32.totalorder %s460, %s461
      %p470 = scmp.eq.s32.totalorder %s93, 0
      %p471 = por %p469, %p470
      %p472 = scmp.ne.s32.totalorder %s460, %s461
      %p473 = scmp.eq.s32.totalorder %s94, 1
      %p474 = por %p472, %p473
      %p476 = scmp.ne.s32.totalorder %s461, %s475
      %p477 = scmp.eq.s32.totalorder %s94, 0
      %p478 = por %p476, %p477
      %s480 = sadd.s32 %s479, 1
      %p483 = scmp.eq.s32.totalorder %s88, 1
      %p484 = scmp.ne.s32.totalorder %s479, %s481
      %p485 = scmp.eq.s32.totalorder %s88, 0
      %p486 = por %p484, %p485
      %p487 = scmp.ne.s32.totalorder %s479, %s481
      %p488 = scmp.eq.s32.totalorder %s93, 1
      %p489 = por %p487, %p488
      %p490 = scmp.ne.s32.totalorder %s481, %s482
      %p491 = scmp.eq.s32.totalorder %s93, 0
      %p492 = por %p490, %p491
      %p493 = scmp.ne.s32.totalorder %s481, %s482
      %p494 = scmp.eq.s32.totalorder %s94, 1
      %p495 = por %p493, %p494
      %p497 = scmp.ne.s32.totalorder %s482, %s496
      %p498 = scmp.eq.s32.totalorder %s94, 0
      %p499 = por %p497, %p498
      %s501 = sadd.s32 %s500, 1
      %p504 = scmp.eq.s32.totalorder %s88, 1
      %p505 = scmp.ne.s32.totalorder %s500, %s502
      %p506 = scmp.eq.s32.totalorder %s88, 0
      %p507 = por %p505, %p506
      %p508 = scmp.ne.s32.totalorder %s500, %s502
      %p509 = scmp.eq.s32.totalorder %s93, 1
      %p510 = por %p508, %p509
      %p511 = scmp.ne.s32.totalorder %s502, %s503
      %p512 = scmp.eq.s32.totalorder %s93, 0
      %p513 = por %p511, %p512
      %p514 = scmp.ne.s32.totalorder %s502, %s503
      %p515 = scmp.eq.s32.totalorder %s94, 1
      %p516 = por %p514, %p515
      %p518 = scmp.ne.s32.totalorder %s503, %s517
      %p519 = scmp.eq.s32.totalorder %s94, 0
      %p520 = por %p518, %p519
      %s522 = sadd.s32 %s521, 1
      %p525 = scmp.eq.s32.totalorder %s88, 1
      %p526 = scmp.ne.s32.totalorder %s521, %s523
      %p527 = scmp.eq.s32.totalorder %s88, 0
      %p528 = por %p526, %p527
      %p529 = scmp.ne.s32.totalorder %s521, %s523
      %p530 = scmp.eq.s32.totalorder %s93, 1
      %p531 = por %p529, %p530
      %p532 = scmp.ne.s32.totalorder %s523, %s524
      %p533 = scmp.eq.s32.totalorder %s93, 0
      %p534 = por %p532, %p533
      %p535 = scmp.ne.s32.totalorder %s523, %s524
      %p536 = scmp.eq.s32.totalorder %s94, 1
      %p537 = por %p535, %p536
      %p539 = scmp.ne.s32.totalorder %s524, %s538
      %p540 = scmp.eq.s32.totalorder %s94, 0
      %p541 = por %p539, %p540
      %s543 = sadd.s32 %s542, 1
      %p546 = scmp.eq.s32.totalorder %s88, 1
      %p547 = scmp.ne.s32.totalorder %s542, %s544
      %p548 = scmp.eq.s32.totalorder %s88, 0
      %p549 = por %p547, %p548
      %p550 = scmp.ne.s32.totalorder %s542, %s544
      %p551 = scmp.eq.s32.totalorder %s93, 1
      %p552 = por %p550, %p551
      %p553 = scmp.ne.s32.totalorder %s544, %s545
      %p554 = scmp.eq.s32.totalorder %s93, 0
      %p555 = por %p553, %p554
      %p556 = scmp.ne.s32.totalorder %s544, %s545
      %p557 = scmp.eq.s32.totalorder %s94, 1
      %p558 = por %p556, %p557
      %p560 = scmp.ne.s32.totalorder %s545, %s559
      %p561 = scmp.eq.s32.totalorder %s94, 0
      %p562 = por %p560, %p561
      %s564 = sadd.s32 %s563, 1
      %p567 = scmp.eq.s32.totalorder %s88, 1
      %p568 = scmp.ne.s32.totalorder %s563, %s565
      %p569 = scmp.eq.s32.totalorder %s88, 0
      %p570 = por %p568, %p569
      %p571 = scmp.ne.s32.totalorder %s563, %s565
      %p572 = scmp.eq.s32.totalorder %s93, 1
      %p573 = por %p571, %p572
      %p574 = scmp.ne.s32.totalorder %s565, %s566
      %p575 = scmp.eq.s32.totalorder %s93, 0
      %p576 = por %p574, %p575
      %p577 = scmp.ne.s32.totalorder %s565, %s566
      %p578 = scmp.eq.s32.totalorder %s94, 1
      %p579 = por %p577, %p578
      %p581 = scmp.ne.s32.totalorder %s566, %s580
      %p582 = scmp.eq.s32.totalorder %s94, 0
      %p583 = por %p581, %p582
      %s585 = sadd.s32 %s584, 1
      %p588 = scmp.eq.s32.totalorder %s88, 1
      %p589 = scmp.ne.s32.totalorder %s584, %s586
      %p590 = scmp.eq.s32.totalorder %s88, 0
      %p591 = por %p589, %p590
      %p592 = scmp.ne.s32.totalorder %s584, %s586
      %p593 = scmp.eq.s32.totalorder %s93, 1
      %p594 = por %p592, %p593
      %p595 = scmp.ne.s32.totalorder %s586, %s587
      %p596 = scmp.eq.s32.totalorder %s93, 0
      %p597 = por %p595, %p596
      %p598 = scmp.ne.s32.totalorder %s586, %s587
      %p599 = scmp.eq.s32.totalorder %s94, 1
      %p600 = por %p598, %p599
      %p602 = scmp.ne.s32.totalorder %s587, %s601
      %p603 = scmp.eq.s32.totalorder %s94, 0
      %p604 = por %p602, %p603
      %s606 = sadd.s32 %s605, 1
      %p609 = scmp.eq.s32.totalorder %s88, 1
      %p610 = scmp.ne.s32.totalorder %s605, %s607
      %p611 = scmp.eq.s32.totalorder %s88, 0
      %p612 = por %p610, %p611
      %p613 = scmp.ne.s32.totalorder %s605, %s607
      %p614 = scmp.eq.s32.totalorder %s93, 1
      %p615 = por %p613, %p614
      %p616 = scmp.ne.s32.totalorder %s607, %s608
      %p617 = scmp.eq.s32.totalorder %s93, 0
      %p618 = por %p616, %p617
      %p619 = scmp.ne.s32.totalorder %s607, %s608
      %p620 = scmp.eq.s32.totalorder %s94, 1
      %p621 = por %p619, %p620
      %p623 = scmp.ne.s32.totalorder %s608, %s622
      %p624 = scmp.eq.s32.totalorder %s94, 0
      %p625 = por %p623, %p624
      %s627 = sadd.s32 %s626, 1
      %p630 = scmp.eq.s32.totalorder %s88, 1
      %p631 = scmp.ne.s32.totalorder %s626, %s628
      %p632 = scmp.eq.s32.totalorder %s88, 0
      %p633 = por %p631, %p632
      %p634 = scmp.ne.s32.totalorder %s626, %s628
      %p635 = scmp.eq.s32.totalorder %s93, 1
      %p636 = por %p634, %p635
      %p637 = scmp.ne.s32.totalorder %s628, %s629
      %p638 = scmp.eq.s32.totalorder %s93, 0
      %p639 = por %p637, %p638
      %p640 = scmp.ne.s32.totalorder %s628, %s629
      %p641 = scmp.eq.s32.totalorder %s94, 1
      %p642 = por %p640, %p641
      %p644 = scmp.ne.s32.totalorder %s629, %s643
      %p645 = scmp.eq.s32.totalorder %s94, 0
      %p646 = por %p644, %p645
      %s648 = sadd.s32 %s647, 1
      %p651 = scmp.eq.s32.totalorder %s88, 1
      %p652 = scmp.ne.s32.totalorder %s647, %s649
      %p653 = scmp.eq.s32.totalorder %s88, 0
      %p654 = por %p652, %p653
      %p655 = scmp.ne.s32.totalorder %s647, %s649
      %p656 = scmp.eq.s32.totalorder %s93, 1
      %p657 = por %p655, %p656
      %p658 = scmp.ne.s32.totalorder %s649, %s650
      %p659 = scmp.eq.s32.totalorder %s93, 0
      %p660 = por %p658, %p659
      %p661 = scmp.ne.s32.totalorder %s649, %s650
      %p662 = scmp.eq.s32.totalorder %s94, 1
      %p663 = por %p661, %p662
      %p665 = scmp.ne.s32.totalorder %s650, %s664
      %p666 = scmp.eq.s32.totalorder %s94, 0
      %p667 = por %p665, %p666
      %s669 = sadd.s32 %s668, 1
      %p672 = scmp.eq.s32.totalorder %s88, 1
      %p673 = scmp.ne.s32.totalorder %s668, %s670
      %p674 = scmp.eq.s32.totalorder %s88, 0
      %p675 = por %p673, %p674
      %p676 = scmp.ne.s32.totalorder %s668, %s670
      %p677 = scmp.eq.s32.totalorder %s93, 1
      %p678 = por %p676, %p677
      %p679 = scmp.ne.s32.totalorder %s670, %s671
      %p680 = scmp.eq.s32.totalorder %s93, 0
      %p681 = por %p679, %p680
      %p682 = scmp.ne.s32.totalorder %s670, %s671
      %p683 = scmp.eq.s32.totalorder %s94, 1
      %p684 = por %p682, %p683
      %p686 = scmp.ne.s32.totalorder %s671, %s685
      %p687 = scmp.eq.s32.totalorder %s94, 0
      %p688 = por %p686, %p687
      %s690 = sadd.s32 %s689, 1
      %p693 = scmp.eq.s32.totalorder %s88, 1
      %p694 = scmp.ne.s32.totalorder %s689, %s691
      %p695 = scmp.eq.s32.totalorder %s88, 0
      %p696 = por %p694, %p695
      %p697 = scmp.ne.s32.totalorder %s689, %s691
      %p698 = scmp.eq.s32.totalorder %s93, 1
      %p699 = por %p697, %p698
      %p700 = scmp.ne.s32.totalorder %s691, %s692
      %p701 = scmp.eq.s32.totalorder %s93, 0
      %p702 = por %p700, %p701
      %p703 = scmp.ne.s32.totalorder %s691, %s692
      %p704 = scmp.eq.s32.totalorder %s94, 1
      %p705 = por %p703, %p704
      %p707 = scmp.ne.s32.totalorder %s692, %s706
      %p708 = scmp.eq.s32.totalorder %s94, 0
      %p709 = por %p707, %p708
      %s711 = sadd.s32 %s710, 1
      %p714 = scmp.eq.s32.totalorder %s88, 1
      %p715 = scmp.ne.s32.totalorder %s710, %s712
      %p716 = scmp.eq.s32.totalorder %s88, 0
      %p717 = por %p715, %p716
      %p718 = scmp.ne.s32.totalorder %s710, %s712
      %p719 = scmp.eq.s32.totalorder %s93, 1
      %p720 = por %p718, %p719
      %p721 = scmp.ne.s32.totalorder %s712, %s713
      %p722 = scmp.eq.s32.totalorder %s93, 0
      %p723 = por %p721, %p722
      %p724 = scmp.ne.s32.totalorder %s712, %s713
      %p725 = scmp.eq.s32.totalorder %s94, 1
      %p726 = por %p724, %p725
      %p728 = scmp.ne.s32.totalorder %s713, %s727
      %p729 = scmp.eq.s32.totalorder %s94, 0
      %p730 = por %p728, %p729
      %s732 = sadd.s32 %s731, 1
      %p735 = scmp.eq.s32.totalorder %s88, 1
      %p736 = scmp.ne.s32.totalorder %s731, %s733
      %p737 = scmp.eq.s32.totalorder %s88, 0
      %p738 = por %p736, %p737
      %p739 = scmp.ne.s32.totalorder %s731, %s733
      %p740 = scmp.eq.s32.totalorder %s93, 1
      %p741 = por %p739, %p740
      %p742 = scmp.ne.s32.totalorder %s733, %s734
      %p743 = scmp.eq.s32.totalorder %s93, 0
      %p744 = por %p742, %p743
      %p745 = scmp.ne.s32.totalorder %s733, %s734
      %p746 = scmp.eq.s32.totalorder %s94, 1
      %p747 = por %p745, %p746
      %p749 = scmp.ne.s32.totalorder %s734, %s748
      %p750 = scmp.eq.s32.totalorder %s94, 0
      %p751 = por %p749, %p750
      %s753 = sadd.s32 %s752, 1
      %p756 = scmp.eq.s32.totalorder %s88, 1
      %p757 = scmp.ne.s32.totalorder %s752, %s754
      %p758 = scmp.eq.s32.totalorder %s88, 0
      %p759 = por %p757, %p758
      %p760 = scmp.ne.s32.totalorder %s752, %s754
      %p761 = scmp.eq.s32.totalorder %s93, 1
      %p762 = por %p760, %p761
      %p763 = scmp.ne.s32.totalorder %s754, %s755
      %p764 = scmp.eq.s32.totalorder %s93, 0
      %p765 = por %p763, %p764
      %p766 = scmp.ne.s32.totalorder %s754, %s755
      %p767 = scmp.eq.s32.totalorder %s94, 1
      %p768 = por %p766, %p767
      %p770 = scmp.ne.s32.totalorder %s755, %s769
      %p771 = scmp.eq.s32.totalorder %s94, 0
      %p772 = por %p770, %p771
      %s774 = sadd.s32 %s773, 1
      %p777 = scmp.eq.s32.totalorder %s88, 1
      %p778 = scmp.ne.s32.totalorder %s773, %s775
      %p779 = scmp.eq.s32.totalorder %s88, 0
      %p780 = por %p778, %p779
      %p781 = scmp.ne.s32.totalorder %s773, %s775
      %p782 = scmp.eq.s32.totalorder %s93, 1
      %p783 = por %p781, %p782
      %p784 = scmp.ne.s32.totalorder %s775, %s776
      %p785 = scmp.eq.s32.totalorder %s93, 0
      %p786 = por %p784, %p785
      %p787 = scmp.ne.s32.totalorder %s775, %s776
      %p788 = scmp.eq.s32.totalorder %s94, 1
      %p789 = por %p787, %p788
      %p791 = scmp.ne.s32.totalorder %s776, %s790
      %p792 = scmp.eq.s32.totalorder %s94, 0
      %p793 = por %p791, %p792
      %s794 = ssub.s32 %s88, %s95
      %p795 = scmp.eq.s32.totalorder %s794, 0
      %s797 = sadd.s32 %s796, 1
      %s798 = scalar_select %p795, %s796, %s797
      %p801 = pneg %p795
      %p802 = scmp.eq.s32.totalorder %s88, 1
      %p803 = por %p801, %p802
      %p804 = scmp.ne.s32.totalorder %s796, %s799
      %p805 = scmp.eq.s32.totalorder %s88, 0
      %p806 = por %p804, %p805
      %p807 = scmp.ne.s32.totalorder %s796, %s799
      %p808 = scmp.eq.s32.totalorder %s93, 1
      %p809 = por %p807, %p808
      %p810 = scmp.ne.s32.totalorder %s799, %s800
      %p811 = scmp.eq.s32.totalorder %s93, 0
      %p812 = por %p810, %p811
      %p813 = scmp.ne.s32.totalorder %s799, %s800
      %p814 = scmp.eq.s32.totalorder %s94, 1
      %p815 = por %p813, %p814
      %p817 = scmp.ne.s32.totalorder %s800, %s816
      %p818 = scmp.eq.s32.totalorder %s94, 0
      %p819 = por %p817, %p818
      %p820 = scmp.le.s32.totalorder 1, %s88
      %p821 = scmp.lt.s32.totalorder %s88, 3
      %p822 = pnand %p820, %p821
      %p823 = pneg %p822
      // Predicated region
      $region9: #{cnn_surface_classifier.1} parent=5 // pred_check
        _
      $region10: #{cnn_surface_classifier.1} parent=5 // pred_check_branch
        %825 = sbr.rel (%p822) target = $region12
      $region11: #{cnn_surface_classifier.1} parent=5 // pred_region
        %s826 = ssub.s32 %s88, 1
        // Predicated region
        $region13: #{cnn_surface_classifier.1} parent=11 // pred_check
          %p827 = pneg %p135
        $region14: #{cnn_surface_classifier.1} parent=11 // pred_check_branch
          %829 = sbr.rel (%p827) target = $region16
        $region15: #{cnn_surface_classifier.1} parent=11 // pred_region
          %s831 = ssub.s32 448, 448
          %832 = vsyncadd [#allocation11], %s831
          %s833 = sshll.u32 [#allocation10], 4
          %s834 = int_to_ptr.vmem [resolvable:$true] %s833
          %839 = dma.hbm_to_vmem [thread:$0]  %s3, 448, %s834, [#allocation11], 64, 64, 4
        $region16: #{cnn_surface_classifier.1} parent=11 // pred_fallthru
          _
        // Predicated region
        $region17: #{cnn_surface_classifier.1} parent=11 // pred_check
          %p840 = pneg %p156
        $region18: #{cnn_surface_classifier.1} parent=11 // pred_check_branch
          %842 = sbr.rel (%p840) target = $region20
        $region19: #{cnn_surface_classifier.1} parent=11 // pred_region
          %s844 = ssub.s32 16, 16
          %845 = vsyncadd [#allocation14], %s844
          %s847 = sshll.u32 [#allocation13], 4
          %s848 = int_to_ptr.vmem [resolvable:$true] %s847
          %850 = dma.hbm_to_vmem [thread:$0]  %s5, 16, %s848, [#allocation14]
        $region20: #{cnn_surface_classifier.1} parent=11 // pred_fallthru
          _
        // Predicated region
        $region21: #{cnn_surface_classifier.1} parent=11 // pred_check
          %p851 = pneg %p177
        $region22: #{cnn_surface_classifier.1} parent=11 // pred_check_branch
          %853 = sbr.rel (%p851) target = $region24
        $region23: #{cnn_surface_classifier.1} parent=11 // pred_region
          %s855 = ssub.s32 16, 16
          %856 = vsyncadd [#allocation14], %s855
          %s858 = sshll.u32 [#allocation15], 4
          %s859 = int_to_ptr.vmem [resolvable:$true] %s858
          %861 = dma.hbm_to_vmem [thread:$0]  %s7, 16, %s859, [#allocation14]
        $region24: #{cnn_surface_classifier.1} parent=11 // pred_fallthru
          _
        // Predicated region
        $region25: #{cnn_surface_classifier.1} parent=11 // pred_check
          %p862 = pneg %p198
        $region26: #{cnn_surface_classifier.1} parent=11 // pred_check_branch
          %864 = sbr.rel (%p862) target = $region28
        $region27: #{cnn_surface_classifier.1} parent=11 // pred_region
          %s866 = ssub.s32 512, 512
          %867 = vsyncadd [#allocation17], %s866
          %s868 = sshll.u32 [#allocation16], 4
          %s869 = int_to_ptr.vmem [resolvable:$true] %s868
          %874 = dma.hbm_to_vmem [thread:$0]  %s9, 512, %s869, [#allocation17], 128, 128, 8
        $region28: #{cnn_surface_classifier.1} parent=11 // pred_fallthru
          _
        // Predicated region
        $region29: #{cnn_surface_classifier.1} parent=11 // pred_check
          %p875 = pneg %p219
        $region30: #{cnn_surface_classifier.1} parent=11 // pred_check_branch
          %877 = sbr.rel (%p875) target = $region32
        $region31: #{cnn_surface_classifier.1} parent=11 // pred_region
          %s879 = ssub.s32 16, 16
          %880 = vsyncadd [#allocation17], %s879
          %s882 = sshll.u32 [#allocation18], 4
          %s883 = int_to_ptr.vmem [resolvable:$true] %s882
          %885 = dma.hbm_to_vmem [thread:$0]  %s11, 16, %s883, [#allocation17]
        $region32: #{cnn_surface_classifier.1} parent=11 // pred_fallthru
          _
        // Predicated region
        $region33: #{cnn_surface_classifier.1} parent=11 // pred_check
          %p886 = pneg %p240
        $region34: #{cnn_surface_classifier.1} parent=11 // pred_check_branch
          %888 = sbr.rel (%p886) target = $region36
        $region35: #{cnn_surface_classifier.1} parent=11 // pred_region
          %s890 = ssub.s32 16, 16
          %891 = vsyncadd [#allocation20], %s890
          %s893 = sshll.u32 [#allocation19], 4
          %s894 = int_to_ptr.vmem [resolvable:$true] %s893
          %896 = dma.hbm_to_vmem [thread:$0]  %s13, 16, %s894, [#allocation20]
        $region36: #{cnn_surface_classifier.1} parent=11 // pred_fallthru
          _
        // Predicated region
        $region37: #{cnn_surface_classifier.1} parent=11 // pred_check
          %p897 = pneg %p261
        $region38: #{cnn_surface_classifier.1} parent=11 // pred_check_branch
          %899 = sbr.rel (%p897) target = $region40
        $region39: #{cnn_surface_classifier.1} parent=11 // pred_region
          _
        $region40: #{cnn_surface_classifier.1} parent=11 // pred_fallthru
          _
        // Predicated region
        $region41: #{cnn_surface_classifier.1} parent=11 // pred_check
          %p900 = pneg %p282
        $region42: #{cnn_surface_classifier.1} parent=11 // pred_check_branch
          %902 = sbr.rel (%p900) target = $region44
        $region43: #{cnn_surface_classifier.1} parent=11 // pred_region
          %s904 = ssub.s32 16, 16
          %905 = vsyncadd [#allocation20], %s904
          %s907 = sshll.u32 [#allocation21], 4
          %s908 = int_to_ptr.vmem [resolvable:$true] %s907
          %910 = dma.hbm_to_vmem [thread:$0]  %s17, 16, %s908, [#allocation20]
        $region44: #{cnn_surface_classifier.1} parent=11 // pred_fallthru
          _
        // Predicated region
        $region45: #{cnn_surface_classifier.1} parent=11 // pred_check
          %p911 = pneg %p303
        $region46: #{cnn_surface_classifier.1} parent=11 // pred_check_branch
          %913 = sbr.rel (%p911) target = $region48
        $region47: #{cnn_surface_classifier.1} parent=11 // pred_region
          %s915 = ssub.s32 16, 16
          %916 = vsyncadd [#allocation23], %s915
          %s918 = sshll.u32 [#allocation22], 4
          %s919 = int_to_ptr.vmem [resolvable:$true] %s918
          %921 = dma.hbm_to_vmem [thread:$0]  %s19, 16, %s919, [#allocation23]
        $region48: #{cnn_surface_classifier.1} parent=11 // pred_fallthru
          _
        // Predicated region
        $region49: #{cnn_surface_classifier.1} parent=11 // pred_check
          %p922 = pneg %p324
        $region50: #{cnn_surface_classifier.1} parent=11 // pred_check_branch
          %924 = sbr.rel (%p922) target = $region52
        $region51: #{cnn_surface_classifier.1} parent=11 // pred_region
          %s926 = ssub.s32 3072, 3072
          %927 = vsyncadd [#allocation23], %s926
          %s928 = sshll.u32 [#allocation24], 4
          %s929 = int_to_ptr.vmem [resolvable:$true] %s928
          %934 = dma.hbm_to_vmem [thread:$0]  %s21, 3072, %s929, [#allocation23], 128, 128, 8
        $region52: #{cnn_surface_classifier.1} parent=11 // pred_fallthru
          _
        // Predicated region
        $region53: #{cnn_surface_classifier.1} parent=11 // pred_check
          %p935 = pneg %p345
        $region54: #{cnn_surface_classifier.1} parent=11 // pred_check_branch
          %937 = sbr.rel (%p935) target = $region56
        $region55: #{cnn_surface_classifier.1} parent=11 // pred_region
          %s939 = ssub.s32 16, 16
          %940 = vsyncadd [#allocation26], %s939
          %s942 = sshll.u32 [#allocation25], 4
          %s943 = int_to_ptr.vmem [resolvable:$true] %s942
          %945 = dma.hbm_to_vmem [thread:$0]  %s23, 16, %s943, [#allocation26]
        $region56: #{cnn_surface_classifier.1} parent=11 // pred_fallthru
          _
        // Predicated region
        $region57: #{cnn_surface_classifier.1} parent=11 // pred_check
          %p946 = pneg %p366
        $region58: #{cnn_surface_classifier.1} parent=11 // pred_check_branch
          %948 = sbr.rel (%p946) target = $region60
        $region59: #{cnn_surface_classifier.1} parent=11 // pred_region
          %s950 = ssub.s32 16, 16
          %951 = vsyncadd [#allocation26], %s950
          %s953 = sshll.u32 [#allocation27], 4
          %s954 = int_to_ptr.vmem [resolvable:$true] %s953
          %956 = dma.hbm_to_vmem [thread:$0]  %s25, 16, %s954, [#allocation26]
        $region60: #{cnn_surface_classifier.1} parent=11 // pred_fallthru
          _
        // Predicated region
        $region61: #{cnn_surface_classifier.1} parent=11 // pred_check
          %p957 = pneg %p387
        $region62: #{cnn_surface_classifier.1} parent=11 // pred_check_branch
          %959 = sbr.rel (%p957) target = $region64
        $region63: #{cnn_surface_classifier.1} parent=11 // pred_region
          %s961 = ssub.s32 1024, 1024
          %962 = vsyncadd [#allocation29], %s961
          %s963 = sshll.u32 [#allocation28], 4
          %s964 = int_to_ptr.vmem [resolvable:$true] %s963
          %969 = dma.hbm_to_vmem [thread:$0]  %s27, 1024, %s964, [#allocation29], 128, 128, 8
        $region64: #{cnn_surface_classifier.1} parent=11 // pred_fallthru
          _
        // Predicated region
        $region65: #{cnn_surface_classifier.1} parent=11 // pred_check
          %p970 = pneg %p408
        $region66: #{cnn_surface_classifier.1} parent=11 // pred_check_branch
          %972 = sbr.rel (%p970) target = $region68
        $region67: #{cnn_surface_classifier.1} parent=11 // pred_region
          %s974 = ssub.s32 16, 16
          %975 = vsyncadd [#allocation29], %s974
          %s977 = sshll.u32 [#allocation30], 4
          %s978 = int_to_ptr.vmem [resolvable:$true] %s977
          %980 = dma.hbm_to_vmem [thread:$0]  %s29, 16, %s978, [#allocation29]
        $region68: #{cnn_surface_classifier.1} parent=11 // pred_fallthru
          _
        // Predicated region
        $region69: #{cnn_surface_classifier.1} parent=11 // pred_check
          %p981 = pneg %p429
        $region70: #{cnn_surface_classifier.1} parent=11 // pred_check_branch
          %983 = sbr.rel (%p981) target = $region72
        $region71: #{cnn_surface_classifier.1} parent=11 // pred_region
          %s985 = ssub.s32 16, 16
          %986 = vsyncadd [#allocation32], %s985
          %s988 = sshll.u32 [#allocation31], 4
          %s989 = int_to_ptr.vmem [resolvable:$true] %s988
          %991 = dma.hbm_to_vmem [thread:$0]  %s31, 16, %s989, [#allocation32]
        $region72: #{cnn_surface_classifier.1} parent=11 // pred_fallthru
          _
        // Predicated region
        $region73: #{cnn_surface_classifier.1} parent=11 // pred_check
          %p992 = pneg %p450
        $region74: #{cnn_surface_classifier.1} parent=11 // pred_check_branch
          %994 = sbr.rel (%p992) target = $region76
        $region75: #{cnn_surface_classifier.1} parent=11 // pred_region
          %s996 = ssub.s32 3072, 3072
          %997 = vsyncadd [#allocation32], %s996
          %s998 = sshll.u32 [#allocation33], 4
          %s999 = int_to_ptr.vmem [resolvable:$true] %s998
          %1004 = dma.hbm_to_vmem [thread:$0]  %s33, 3072, %s999, [#allocation32], 128, 128, 8
        $region76: #{cnn_surface_classifier.1} parent=11 // pred_fallthru
          _
        // Predicated region
        $region77: #{cnn_surface_classifier.1} parent=11 // pred_check
          %p1005 = pneg %p471
        $region78: #{cnn_surface_classifier.1} parent=11 // pred_check_branch
          %1007 = sbr.rel (%p1005) target = $region80
        $region79: #{cnn_surface_classifier.1} parent=11 // pred_region
          %s1009 = ssub.s32 16, 16
          %1010 = vsyncadd [#allocation35], %s1009
          %s1012 = sshll.u32 [#allocation34], 4
          %s1013 = int_to_ptr.vmem [resolvable:$true] %s1012
          %1015 = dma.hbm_to_vmem [thread:$0]  %s35, 16, %s1013, [#allocation35]
        $region80: #{cnn_surface_classifier.1} parent=11 // pred_fallthru
          _
        // Predicated region
        $region81: #{cnn_surface_classifier.1} parent=11 // pred_check
          %p1016 = pneg %p492
        $region82: #{cnn_surface_classifier.1} parent=11 // pred_check_branch
          %1018 = sbr.rel (%p1016) target = $region84
        $region83: #{cnn_surface_classifier.1} parent=11 // pred_region
          %s1020 = ssub.s32 16, 16
          %1021 = vsyncadd [#allocation35], %s1020
          %s1023 = sshll.u32 [#allocation36], 4
          %s1024 = int_to_ptr.vmem [resolvable:$true] %s1023
          %1026 = dma.hbm_to_vmem [thread:$0]  %s37, 16, %s1024, [#allocation35]
        $region84: #{cnn_surface_classifier.1} parent=11 // pred_fallthru
          _
        // Predicated region
        $region85: #{cnn_surface_classifier.1} parent=11 // pred_check
          %p1027 = pneg %p513
        $region86: #{cnn_surface_classifier.1} parent=11 // pred_check_branch
          %1029 = sbr.rel (%p1027) target = $region88
        $region87: #{cnn_surface_classifier.1} parent=11 // pred_region
          _
        $region88: #{cnn_surface_classifier.1} parent=11 // pred_fallthru
          _
        // Predicated region
        $region89: #{cnn_surface_classifier.1} parent=11 // pred_check
          %p1030 = pneg %p534
        $region90: #{cnn_surface_classifier.1} parent=11 // pred_check_branch
          %1032 = sbr.rel (%p1030) target = $region92
        $region91: #{cnn_surface_classifier.1} parent=11 // pred_region
          %s1034 = ssub.s32 16, 16
          %1035 = vsyncadd [#allocation38], %s1034
          %s1037 = sshll.u32 [#allocation37], 4
          %s1038 = int_to_ptr.vmem [resolvable:$true] %s1037
          %1040 = dma.hbm_to_vmem [thread:$0]  %s41, 16, %s1038, [#allocation38]
        $region92: #{cnn_surface_classifier.1} parent=11 // pred_fallthru
          _
        // Predicated region
        $region93: #{cnn_surface_classifier.1} parent=11 // pred_check
          %p1041 = pneg %p555
        $region94: #{cnn_surface_classifier.1} parent=11 // pred_check_branch
          %1043 = sbr.rel (%p1041) target = $region96
        $region95: #{cnn_surface_classifier.1} parent=11 // pred_region
          %s1045 = ssub.s32 16, 16
          %1046 = vsyncadd [#allocation38], %s1045
          %s1048 = sshll.u32 [#allocation39], 4
          %s1049 = int_to_ptr.vmem [resolvable:$true] %s1048
          %1051 = dma.hbm_to_vmem [thread:$0]  %s43, 16, %s1049, [#allocation38]
        $region96: #{cnn_surface_classifier.1} parent=11 // pred_fallthru
          _
        // Predicated region
        $region97: #{cnn_surface_classifier.1} parent=11 // pred_check
          %p1052 = pneg %p576
        $region98: #{cnn_surface_classifier.1} parent=11 // pred_check_branch
          %1054 = sbr.rel (%p1052) target = $region100
        $region99: #{cnn_surface_classifier.1} parent=11 // pred_region
          %s1056 = ssub.s32 4096, 4096
          %1057 = vsyncadd [#allocation41], %s1056
          %s1058 = sshll.u32 [#allocation40], 4
          %s1059 = int_to_ptr.vmem [resolvable:$true] %s1058
          %1064 = dma.hbm_to_vmem [thread:$0]  %s45, 4096, %s1059, [#allocation41], 256, 256, 16
        $region100: #{cnn_surface_classifier.1} parent=11 // pred_fallthru
          _
        // Predicated region
        $region101: #{cnn_surface_classifier.1} parent=11 // pred_check
          %p1065 = pneg %p597
        $region102: #{cnn_surface_classifier.1} parent=11 // pred_check_branch
          %1067 = sbr.rel (%p1065) target = $region104
        $region103: #{cnn_surface_classifier.1} parent=11 // pred_region
          _
        $region104: #{cnn_surface_classifier.1} parent=11 // pred_fallthru
          _
        // Predicated region
        $region105: #{cnn_surface_classifier.1} parent=11 // pred_check
          %p1068 = pneg %p618
        $region106: #{cnn_surface_classifier.1} parent=11 // pred_check_branch
          %1070 = sbr.rel (%p1068) target = $region108
        $region107: #{cnn_surface_classifier.1} parent=11 // pred_region
          _
        $region108: #{cnn_surface_classifier.1} parent=11 // pred_fallthru
          _
        // Predicated region
        $region109: #{cnn_surface_classifier.1} parent=11 // pred_check
          %p1071 = pneg %p639
        $region110: #{cnn_surface_classifier.1} parent=11 // pred_check_branch
          %1073 = sbr.rel (%p1071) target = $region112
        $region111: #{cnn_surface_classifier.1} parent=11 // pred_region
          %s1075 = ssub.s32 12288, 12288
          %1076 = vsyncadd [#allocation41], %s1075
          %s1077 = sshll.u32 [#allocation42], 4
          %s1078 = int_to_ptr.vmem [resolvable:$true] %s1077
          %1083 = dma.hbm_to_vmem [thread:$0]  %s51, 12288, %s1078, [#allocation41], 256, 256, 16
        $region112: #{cnn_surface_classifier.1} parent=11 // pred_fallthru
          _
        // Predicated region
        $region113: #{cnn_surface_classifier.1} parent=11 // pred_check
          %p1084 = pneg %p660
        $region114: #{cnn_surface_classifier.1} parent=11 // pred_check_branch
          %1086 = sbr.rel (%p1084) target = $region116
        $region115: #{cnn_surface_classifier.1} parent=11 // pred_region
          _
        $region116: #{cnn_surface_classifier.1} parent=11 // pred_fallthru
          _
        // Predicated region
        $region117: #{cnn_surface_classifier.1} parent=11 // pred_check
          %p1087 = pneg %p681
        $region118: #{cnn_surface_classifier.1} parent=11 // pred_check_branch
          %1089 = sbr.rel (%p1087) target = $region120
        $region119: #{cnn_surface_classifier.1} parent=11 // pred_region
          _
        $region120: #{cnn_surface_classifier.1} parent=11 // pred_fallthru
          _
        // Predicated region
        $region121: #{cnn_surface_classifier.1} parent=11 // pred_check
          %p1090 = pneg %p702
        $region122: #{cnn_surface_classifier.1} parent=11 // pred_check_branch
          %1092 = sbr.rel (%p1090) target = $region124
        $region123: #{cnn_surface_classifier.1} parent=11 // pred_region
          %s1094 = ssub.s32 24576, 24576
          %1095 = vsyncadd [#allocation44], %s1094
          %s1096 = sshll.u32 [#allocation43], 4
          %s1097 = int_to_ptr.vmem [resolvable:$true] %s1096
          %1102 = dma.hbm_to_vmem [thread:$0]  %s57, 24576, %s1097, [#allocation44], 256, 256, 16
        $region124: #{cnn_surface_classifier.1} parent=11 // pred_fallthru
          _
        // Predicated region
        $region125: #{cnn_surface_classifier.1} parent=11 // pred_check
          %p1103 = pneg %p723
        $region126: #{cnn_surface_classifier.1} parent=11 // pred_check_branch
          %1105 = sbr.rel (%p1103) target = $region128
        $region127: #{cnn_surface_classifier.1} parent=11 // pred_region
          _
        $region128: #{cnn_surface_classifier.1} parent=11 // pred_fallthru
          _
        // Predicated region
        $region129: #{cnn_surface_classifier.1} parent=11 // pred_check
          %p1106 = pneg %p744
        $region130: #{cnn_surface_classifier.1} parent=11 // pred_check_branch
          %1108 = sbr.rel (%p1106) target = $region132
        $region131: #{cnn_surface_classifier.1} parent=11 // pred_region
          _
        $region132: #{cnn_surface_classifier.1} parent=11 // pred_fallthru
          _
        // Predicated region
        $region133: #{cnn_surface_classifier.1} parent=11 // pred_check
          %p1109 = pneg %p765
        $region134: #{cnn_surface_classifier.1} parent=11 // pred_check_branch
          %1111 = sbr.rel (%p1109) target = $region136
        $region135: #{cnn_surface_classifier.1} parent=11 // pred_region
          _
        $region136: #{cnn_surface_classifier.1} parent=11 // pred_fallthru
          _
        // Predicated region
        $region137: #{cnn_surface_classifier.1} parent=11 // pred_check
          %p1112 = pneg %p786
        $region138: #{cnn_surface_classifier.1} parent=11 // pred_check_branch
          %1114 = sbr.rel (%p1112) target = $region140
        $region139: #{cnn_surface_classifier.1} parent=11 // pred_region
          _
        $region140: #{cnn_surface_classifier.1} parent=11 // pred_fallthru
          _
      $region12: #{cnn_surface_classifier.1} parent=5 // pred_fallthru
        _
      %p1115 = scmp.lt.s32.totalorder %s88, 2
      // Predicated region
      $region141: #{cnn_surface_classifier.1} parent=5 // pred_check
        %p1116 = pneg %p1115
      $region142: #{cnn_surface_classifier.1} parent=5 // pred_check_branch
        %1118 = sbr.rel (%p1116) target = $region144
      $region143: #{cnn_surface_classifier.1} parent=5 // pred_region
        // Predicated region
        $region145: #{cnn_surface_classifier.1} parent=143 // pred_check
          %p1119 = pneg %p108
        $region146: #{cnn_surface_classifier.1} parent=143 // pred_check_branch
          %1121 = sbr.rel (%p1119) target = $region148
        $region147: #{cnn_surface_classifier.1} parent=143 // pred_region
          %p1122 = scmp.lt.s32.totalorder %s88, 1
          %s1123 = scalar_select %p1122, %s88, 1
          %s1124 = smul.addr %s1123, 8
          %s1125 = smul.addr %s1124, 8
          %s1126 = scalar_lea.vmem %s1, %s1125
        $region148: #{cnn_surface_classifier.1} parent=143 // pred_fallthru
          _
      $region144: #{cnn_surface_classifier.1} parent=5 // pred_fallthru
        _
      %p1127 = scmp.le.s32.totalorder 1, %s88
      %p1128 = scmp.lt.s32.totalorder %s88, 3
      %p1129 = pnand %p1127, %p1128
      %p1130 = pneg %p1129
      // Predicated region
      $region149: #{cnn_surface_classifier.1} parent=5 // pred_check
        _
      $region150: #{cnn_surface_classifier.1} parent=5 // pred_check_branch
        %1132 = sbr.rel (%p1129) target = $region152
      $region151: #{cnn_surface_classifier.1} parent=5 // pred_region
        %s1133 = ssub.s32 %s88, 1
        // Predicated region
        $region153: #{cnn_surface_classifier.1} parent=151 // pred_check
          %p1134 = pneg %p135
        $region154: #{cnn_surface_classifier.1} parent=151 // pred_check_branch
          %1136 = sbr.rel (%p1134) target = $region156
        $region155: #{cnn_surface_classifier.1} parent=151 // pred_region
          %1137 = dma.done [#allocation11], 448
        $region156: #{cnn_surface_classifier.1} parent=151 // pred_fallthru
          _
        // Predicated region
        $region157: #{cnn_surface_classifier.1} parent=151 // pred_check
          %p1138 = pneg %p156
        $region158: #{cnn_surface_classifier.1} parent=151 // pred_check_branch
          %1140 = sbr.rel (%p1138) target = $region160
        $region159: #{cnn_surface_classifier.1} parent=151 // pred_region
          %1141 = dma.done [#allocation14], 16
        $region160: #{cnn_surface_classifier.1} parent=151 // pred_fallthru
          _
        // Predicated region
        $region161: #{cnn_surface_classifier.1} parent=151 // pred_check
          %p1142 = pneg %p177
        $region162: #{cnn_surface_classifier.1} parent=151 // pred_check_branch
          %1144 = sbr.rel (%p1142) target = $region164
        $region163: #{cnn_surface_classifier.1} parent=151 // pred_region
          %1145 = dma.done [#allocation14], 16
        $region164: #{cnn_surface_classifier.1} parent=151 // pred_fallthru
          _
        // Predicated region
        $region165: #{cnn_surface_classifier.1} parent=151 // pred_check
          %p1146 = pneg %p198
        $region166: #{cnn_surface_classifier.1} parent=151 // pred_check_branch
          %1148 = sbr.rel (%p1146) target = $region168
        $region167: #{cnn_surface_classifier.1} parent=151 // pred_region
          %1149 = dma.done [#allocation17], 512
        $region168: #{cnn_surface_classifier.1} parent=151 // pred_fallthru
          _
        // Predicated region
        $region169: #{cnn_surface_classifier.1} parent=151 // pred_check
          %p1150 = pneg %p219
        $region170: #{cnn_surface_classifier.1} parent=151 // pred_check_branch
          %1152 = sbr.rel (%p1150) target = $region172
        $region171: #{cnn_surface_classifier.1} parent=151 // pred_region
          %1153 = dma.done [#allocation17], 16
        $region172: #{cnn_surface_classifier.1} parent=151 // pred_fallthru
          _
        // Predicated region
        $region173: #{cnn_surface_classifier.1} parent=151 // pred_check
          %p1154 = pneg %p240
        $region174: #{cnn_surface_classifier.1} parent=151 // pred_check_branch
          %1156 = sbr.rel (%p1154) target = $region176
        $region175: #{cnn_surface_classifier.1} parent=151 // pred_region
          %1157 = dma.done [#allocation20], 16
        $region176: #{cnn_surface_classifier.1} parent=151 // pred_fallthru
          _
        // Predicated region
        $region177: #{cnn_surface_classifier.1} parent=151 // pred_check
          %p1158 = pneg %p282
        $region178: #{cnn_surface_classifier.1} parent=151 // pred_check_branch
          %1160 = sbr.rel (%p1158) target = $region180
        $region179: #{cnn_surface_classifier.1} parent=151 // pred_region
          %1161 = dma.done [#allocation20], 16
        $region180: #{cnn_surface_classifier.1} parent=151 // pred_fallthru
          _
        // Predicated region
        $region181: #{cnn_surface_classifier.1} parent=151 // pred_check
          %p1162 = pneg %p303
        $region182: #{cnn_surface_classifier.1} parent=151 // pred_check_branch
          %1164 = sbr.rel (%p1162) target = $region184
        $region183: #{cnn_surface_classifier.1} parent=151 // pred_region
          %1165 = dma.done [#allocation23], 16
        $region184: #{cnn_surface_classifier.1} parent=151 // pred_fallthru
          _
        // Predicated region
        $region185: #{cnn_surface_classifier.1} parent=151 // pred_check
          %p1166 = pneg %p324
        $region186: #{cnn_surface_classifier.1} parent=151 // pred_check_branch
          %1168 = sbr.rel (%p1166) target = $region188
        $region187: #{cnn_surface_classifier.1} parent=151 // pred_region
          %1169 = dma.done [#allocation23], 3072
        $region188: #{cnn_surface_classifier.1} parent=151 // pred_fallthru
          _
        // Predicated region
        $region189: #{cnn_surface_classifier.1} parent=151 // pred_check
          %p1170 = pneg %p345
        $region190: #{cnn_surface_classifier.1} parent=151 // pred_check_branch
          %1172 = sbr.rel (%p1170) target = $region192
        $region191: #{cnn_surface_classifier.1} parent=151 // pred_region
          %1173 = dma.done [#allocation26], 16
        $region192: #{cnn_surface_classifier.1} parent=151 // pred_fallthru
          _
        // Predicated region
        $region193: #{cnn_surface_classifier.1} parent=151 // pred_check
          %p1174 = pneg %p366
        $region194: #{cnn_surface_classifier.1} parent=151 // pred_check_branch
          %1176 = sbr.rel (%p1174) target = $region196
        $region195: #{cnn_surface_classifier.1} parent=151 // pred_region
          %1177 = dma.done [#allocation26], 16
        $region196: #{cnn_surface_classifier.1} parent=151 // pred_fallthru
          _
        // Predicated region
        $region197: #{cnn_surface_classifier.1} parent=151 // pred_check
          %p1178 = pneg %p387
        $region198: #{cnn_surface_classifier.1} parent=151 // pred_check_branch
          %1180 = sbr.rel (%p1178) target = $region200
        $region199: #{cnn_surface_classifier.1} parent=151 // pred_region
          %1181 = dma.done [#allocation29], 1024
        $region200: #{cnn_surface_classifier.1} parent=151 // pred_fallthru
          _
        // Predicated region
        $region201: #{cnn_surface_classifier.1} parent=151 // pred_check
          %p1182 = pneg %p408
        $region202: #{cnn_surface_classifier.1} parent=151 // pred_check_branch
          %1184 = sbr.rel (%p1182) target = $region204
        $region203: #{cnn_surface_classifier.1} parent=151 // pred_region
          %1185 = dma.done [#allocation29], 16
        $region204: #{cnn_surface_classifier.1} parent=151 // pred_fallthru
          _
        // Predicated region
        $region205: #{cnn_surface_classifier.1} parent=151 // pred_check
          %p1186 = pneg %p429
        $region206: #{cnn_surface_classifier.1} parent=151 // pred_check_branch
          %1188 = sbr.rel (%p1186) target = $region208
        $region207: #{cnn_surface_classifier.1} parent=151 // pred_region
          %1189 = dma.done [#allocation32], 16
        $region208: #{cnn_surface_classifier.1} parent=151 // pred_fallthru
          _
        // Predicated region
        $region209: #{cnn_surface_classifier.1} parent=151 // pred_check
          %p1190 = pneg %p450
        $region210: #{cnn_surface_classifier.1} parent=151 // pred_check_branch
          %1192 = sbr.rel (%p1190) target = $region212
        $region211: #{cnn_surface_classifier.1} parent=151 // pred_region
          %1193 = dma.done [#allocation32], 3072
        $region212: #{cnn_surface_classifier.1} parent=151 // pred_fallthru
          _
        // Predicated region
        $region213: #{cnn_surface_classifier.1} parent=151 // pred_check
          %p1194 = pneg %p471
        $region214: #{cnn_surface_classifier.1} parent=151 // pred_check_branch
          %1196 = sbr.rel (%p1194) target = $region216
        $region215: #{cnn_surface_classifier.1} parent=151 // pred_region
          %1197 = dma.done [#allocation35], 16
        $region216: #{cnn_surface_classifier.1} parent=151 // pred_fallthru
          _
        // Predicated region
        $region217: #{cnn_surface_classifier.1} parent=151 // pred_check
          %p1198 = pneg %p492
        $region218: #{cnn_surface_classifier.1} parent=151 // pred_check_branch
          %1200 = sbr.rel (%p1198) target = $region220
        $region219: #{cnn_surface_classifier.1} parent=151 // pred_region
          %1201 = dma.done [#allocation35], 16
        $region220: #{cnn_surface_classifier.1} parent=151 // pred_fallthru
          _
        // Predicated region
        $region221: #{cnn_surface_classifier.1} parent=151 // pred_check
          %p1202 = pneg %p534
        $region222: #{cnn_surface_classifier.1} parent=151 // pred_check_branch
          %1204 = sbr.rel (%p1202) target = $region224
        $region223: #{cnn_surface_classifier.1} parent=151 // pred_region
          %1205 = dma.done [#allocation38], 16
        $region224: #{cnn_surface_classifier.1} parent=151 // pred_fallthru
          _
        // Predicated region
        $region225: #{cnn_surface_classifier.1} parent=151 // pred_check
          %p1206 = pneg %p555
        $region226: #{cnn_surface_classifier.1} parent=151 // pred_check_branch
          %1208 = sbr.rel (%p1206) target = $region228
        $region227: #{cnn_surface_classifier.1} parent=151 // pred_region
          %1209 = dma.done [#allocation38], 16
        $region228: #{cnn_surface_classifier.1} parent=151 // pred_fallthru
          _
        // Predicated region
        $region229: #{cnn_surface_classifier.1} parent=151 // pred_check
          %p1210 = pneg %p576
        $region230: #{cnn_surface_classifier.1} parent=151 // pred_check_branch
          %1212 = sbr.rel (%p1210) target = $region232
        $region231: #{cnn_surface_classifier.1} parent=151 // pred_region
          %1213 = dma.done [#allocation41], 4096
        $region232: #{cnn_surface_classifier.1} parent=151 // pred_fallthru
          _
        // Predicated region
        $region233: #{cnn_surface_classifier.1} parent=151 // pred_check
          %p1214 = pneg %p639
        $region234: #{cnn_surface_classifier.1} parent=151 // pred_check_branch
          %1216 = sbr.rel (%p1214) target = $region236
        $region235: #{cnn_surface_classifier.1} parent=151 // pred_region
          %1217 = dma.done [#allocation41], 12288
        $region236: #{cnn_surface_classifier.1} parent=151 // pred_fallthru
          _
        // Predicated region
        $region237: #{cnn_surface_classifier.1} parent=151 // pred_check
          %p1218 = pneg %p702
        $region238: #{cnn_surface_classifier.1} parent=151 // pred_check_branch
          %1220 = sbr.rel (%p1218) target = $region240
        $region239: #{cnn_surface_classifier.1} parent=151 // pred_region
          %1221 = dma.done [#allocation44], 24576
        $region240: #{cnn_surface_classifier.1} parent=151 // pred_fallthru
          _
        %p1222 = scmp.lt.s32.totalorder %s93, 1
        %s1223 = scalar_select %p1222, %s93, 1
        %s1224 = smul.addr %s1223, 8
        %s1225 = smul.addr %s1224, 8
        %s1226 = scalar_lea.vmem %s1, %s1225
        %p1227 = pneg %p114
        %p1228 = pneg %p111
        %p1229 = pneg %p135
        %p1230 = pneg %p132
        %p1231 = pneg %p156
        %p1232 = pneg %p153
        %p1233 = pneg %p177
        %p1234 = pneg %p174
        %p1235 = pneg %p198
        %p1236 = pneg %p195
        %p1237 = pneg %p219
        %p1238 = pneg %p216
        %p1239 = pneg %p240
        %p1240 = pneg %p237
        %p1241 = pneg %p261
        %p1242 = pneg %p258
        %p1243 = pneg %p282
        %p1244 = pneg %p279
        %p1245 = pneg %p303
        %p1246 = pneg %p300
        %p1247 = pneg %p324
        %p1248 = pneg %p321
        %p1249 = pneg %p345
        %p1250 = pneg %p342
        %p1251 = pneg %p366
        %p1252 = pneg %p363
        %p1253 = pneg %p387
        %p1254 = pneg %p384
        %p1255 = pneg %p408
        %p1256 = pneg %p405
        %p1257 = pneg %p429
        %p1258 = pneg %p426
        %p1259 = pneg %p450
        %p1260 = pneg %p447
        %p1261 = pneg %p471
        %p1262 = pneg %p468
        %p1263 = pneg %p492
        %p1264 = pneg %p489
        %p1265 = pneg %p513
        %p1266 = pneg %p510
        %p1267 = pneg %p534
        %p1268 = pneg %p531
        %p1269 = pneg %p555
        %p1270 = pneg %p552
        %p1271 = pneg %p576
        %p1272 = pneg %p573
        %p1273 = pneg %p597
        %p1274 = pneg %p594
        %p1275 = pneg %p618
        %p1276 = pneg %p615
        %p1277 = pneg %p639
        %p1278 = pneg %p636
        %p1279 = pneg %p660
        %p1280 = pneg %p657
        %p1281 = pneg %p681
        %p1282 = pneg %p678
        %p1283 = pneg %p702
        %p1284 = pneg %p699
        %p1285 = pneg %p723
        %p1286 = pneg %p720
        %p1287 = pneg %p744
        %p1288 = pneg %p741
        %p1289 = pneg %p765
        %p1290 = pneg %p762
        %p1291 = pneg %p786
        %p1292 = pneg %p783
        %p1293 = pneg %p812
        %p1294 = pneg %p809
        %s1295 = sand.u32 %s799, 1
        %s1296 = scalar_lea.sflag [#allocation12], %s1295
        %s1297 = sand.u32 %s799, 1
        %s1298 = scalar_lea.vmem [#allocation45], %s1297
        %p1299 = scmp.lt.s32.totalorder %s93, 1
        %s1300 = scalar_select %p1299, %s93, 1
        %s1301 = smul.addr %s1300, 8
        %s1302 = smul.addr %s1301, 8
        %s1303 = scalar_lea.vmem %s1, %s1302
        %v1304 = vld [vmem:[%s1303] sm:$0xff]
        %v1305 = vld [vmem:[%s1303 + $0x8] sm:$0xff]
        %v1306 = vld [vmem:[%s1303 + $0x10] sm:$0xff]
        %v1307 = vld [vmem:[%s1303 + $0x18] sm:$0xff]
        %v1308 = vld [vmem:[%s1303 + $0x20] sm:$0xff]
        %v1309 = vld [vmem:[%s1303 + $0x28] sm:$0xff]
        %v1310 = vld [vmem:[%s1303 + $0x30] sm:$0xff]
        %v1311 = vld [vmem:[%s1303 + $0x38] sm:$0xff]
        %vm1312 = vcmask 26624
        %1313 = vst.msk [vmem:[#allocation2 + $0x5] sm:$0x7] %vm1312, 0.0
        %1314 = vst.msk [vmem:[#allocation2 + $0x48] sm:$0x7] %vm1312, 0.0
        %vm1315 = vcmask 31744
        %1316 = vst.msk [vmem:[#allocation2 + $0x8] sm:$0xff] %vm1315, %v1304
        %1317 = vst.msk [vmem:[#allocation2 + $0x10] sm:$0xff] %vm1315, %v1305
        %1318 = vst.msk [vmem:[#allocation2 + $0x18] sm:$0xff] %vm1315, %v1306
        %1319 = vst.msk [vmem:[#allocation2 + $0x20] sm:$0xff] %vm1315, %v1307
        %1320 = vst.msk [vmem:[#allocation2 + $0x28] sm:$0xff] %vm1315, %v1308
        %1321 = vst.msk [vmem:[#allocation2 + $0x30] sm:$0xff] %vm1315, %v1309
        %1322 = vst.msk [vmem:[#allocation2 + $0x38] sm:$0xff] %vm1315, %v1310
        %1323 = vst.msk [vmem:[#allocation2 + $0x40] sm:$0xff] %vm1315, %v1311
        %s1324 = scalar_lea.vmem [#allocation2], 5
        %v1325 = vld [vmem:[%s1324] ss:$2 sm:$0xff]
        %s1326 = scalar_lea.vmem [#allocation2], 21
        %v1327 = vld [vmem:[%s1326] ss:$2 sm:$0xff]
        %s1328 = scalar_lea.vmem [#allocation2], 37
        %v1329 = vld [vmem:[%s1328] ss:$2 sm:$0xff]
        %s1330 = scalar_lea.vmem [#allocation2], 53
        %v1331 = vld [vmem:[%s1330] ss:$2 sm:$0xff]
        %v1332 = vld [vmem:[#allocation10] sm:$0xf]
        %s1333 = scalar_lea.vmem [#allocation2], 6
        %v1334 = vld [vmem:[%s1333] ss:$2 sm:$0xff]
        %s1335 = scalar_lea.vmem [#allocation2], 22
        %v1336 = vld [vmem:[%s1335] ss:$2 sm:$0xff]
        %s1337 = scalar_lea.vmem [#allocation2], 38
        %v1338 = vld [vmem:[%s1337] ss:$2 sm:$0xff]
        %s1339 = scalar_lea.vmem [#allocation2], 54
        %v1340 = vld [vmem:[%s1339] ss:$2 sm:$0xff]
        %s1341 = scalar_lea.vmem [#allocation10], 4
        %v1342 = vld [vmem:[%s1341] sm:$0xf]
        %v1344 = vsel %vm1315, %v1334, 0
        %v1347 = vsel %vm1315, %v1336, 0
        %v1350 = vsel %vm1315, %v1338, 0
        %v1353 = vsel %vm1315, %v1340, 0
        %vm1355 = vcmask 1043456
        %v1357 = vsel %vm1355, %v1342, 0
        %1359 = vmatprep.subr.mxu0 0.0
        %1360 = vmatpush1.msra.mxu0 %v1357
        %1361 = vmatprep.subr.mxu0 0.0
        %1362 = vmatpush1.msra.mxu0 0.0
        %1363 = vmatprep.subr.mxu0 0.0
        %1364 = vmatpush1.msra.mxu0 0.0
        %1365 = vmatprep.subr.mxu0 0.0
        %1366 = vmatpush1.msra.mxu0 0.0
        %1367 = vmatprep.subr.mxu0 0.0
        %1368 = vmatpush1.msra.mxu0 0.0
        %1369 = vmatprep.subr.mxu0 0.0
        %1370 = vmatpush1.msra.mxu0 0.0
        %1371 = vmatprep.subr.mxu0 0.0
        %1372 = vmatpush1.msra.mxu0 0.0
        %1373 = vmatprep.subr.mxu0 0.0
        %1374 = vmatpush1.msra.mxu0 0.0
        %1375 = vmatprep.subr.mxu0 0.0
        %1376 = vmatpush1.msra.mxu0 0.0
        %1377 = vmatprep.subr.mxu0 0.0
        %1378 = vmatpush1.msra.mxu0 0.0
        %1379 = vmatprep.subr.mxu0 0.0
        %1380 = vmatpush1.msra.mxu0 0.0
        %1381 = vmatprep.subr.mxu0 0.0
        %1382 = vmatpush1.msra.mxu0 0.0
        %1383 = vmatprep.subr.mxu0 0.0
        %1384 = vmatpush1.msra.mxu0 0.0
        %1385 = vmatprep.subr.mxu0 0.0
        %1386 = vmatpush1.msra.mxu0 0.0
        %1387 = vmatprep.subr.mxu0 0.0
        %1388 = vmatpush1.msra.mxu0 0.0
        %1389 = vmatprep.subr.mxu0 0.0
        %1390 = vmatpush1.msra.mxu0 0.0
        %1391 = vmatprep.subr.mxu0 0.0
        %1392 = vmatpush1.msra.mxu0 0.0
        %1393 = vmatprep.subr.mxu0 0.0
        %1394 = vmatpush1.msra.mxu0 0.0
        %1395 = vmatprep.subr.mxu0 0.0
        %1396 = vmatpush1.msra.mxu0 0.0
        %1397 = vmatprep.subr.mxu0 0.0
        %1398 = vmatpush1.msra.mxu0 0.0
        %1399 = vmatprep.subr.mxu0 0.0
        %1400 = vmatpush1.msra.mxu0 0.0
        %1401 = vmatprep.subr.mxu0 0.0
        %1402 = vmatpush1.msra.mxu0 0.0
        %1403 = vmatprep.subr.mxu0 0.0
        %1404 = vmatpush1.msra.mxu0 0.0
        %1405 = vmatprep.subr.mxu0 0.0
        %1406 = vmatpush1.msra.mxu0 0.0
        %1407 = vmatprep.subr.mxu0 0.0
        %1408 = vmatpush1.msra.mxu0 0.0
        %1409 = vmatprep.subr.mxu0 0.0
        %1410 = vmatpush1.msra.mxu0 0.0
        %1411 = vmatprep.subr.mxu0 0.0
        %1412 = vmatpush1.msra.mxu0 0.0
        %1413 = vmatprep.subr.mxu0 0.0
        %1414 = vmatpush1.msra.mxu0 0.0
        %1415 = vmatprep.subr.mxu0 0.0
        %1416 = vmatpush1.msra.mxu0 0.0
        %1417 = vmatprep.subr.mxu0 0.0
        %1418 = vmatpush1.msra.mxu0 0.0
        %1419 = vmatprep.subr.mxu0 0.0
        %1420 = vmatpush1.msra.mxu0 0.0
        %1421 = vmatprep.subr.mxu0 0.0
        %1422 = vmatpush1.msra.mxu0 0.0
        %1423 = vmatprep.mubr.f32.mxu0 0.0
        %1424 = vmatmul.mubr.f32.gmra.mrb[0].mxu0 %v1344
        %v1425 = vpop.f32.mrb[0].mxu0
        %v1426 = vadd.f32 0.0, %v1425
        %v1427 = vpop.f32.mrb[0].mxu0
        %1428 = vmatprep.mubr.f32.mxu0 0.0
        %1429 = vmatmul.mubr.f32.gmra.mrb[0].mxu0 %v1347
        %v1430 = vpop.f32.mrb[0].mxu0
        %v1431 = vadd.f32 0.0, %v1430
        %v1432 = vpop.f32.mrb[0].mxu0
        %1433 = vmatprep.mubr.f32.mxu0 0.0
        %1434 = vmatmul.mubr.f32.gmra.mrb[0].mxu0 %v1350
        %v1435 = vpop.f32.mrb[0].mxu0
        %v1436 = vadd.f32 0.0, %v1435
        %v1437 = vpop.f32.mrb[0].mxu0
        %1438 = vmatprep.mubr.f32.mxu0 0.0
        %1439 = vmatmul.mubr.f32.gmra.mrb[0].mxu0 %v1353
        %v1440 = vpop.f32.mrb[0].mxu0
        %v1441 = vadd.f32 0.0, %v1440
        %v1442 = vpop.f32.mrb[0].mxu0
        %1443 = vdwg.mxu0
        %v1445 = vsel %vm1315, %v1325, 0
        %v1448 = vsel %vm1315, %v1327, 0
        %v1451 = vsel %vm1315, %v1329, 0
        %v1454 = vsel %vm1315, %v1331, 0
        %v1457 = vsel %vm1355, %v1332, 0
        %1459 = vmatprep.subr.mxu0 0.0
        %1460 = vmatpush1.msra.mxu0 %v1457
        %1461 = vmatprep.subr.mxu0 0.0
        %1462 = vmatpush1.msra.mxu0 0.0
        %1463 = vmatprep.subr.mxu0 0.0
        %1464 = vmatpush1.msra.mxu0 0.0
        %1465 = vmatprep.subr.mxu0 0.0
        %1466 = vmatpush1.msra.mxu0 0.0
        %1467 = vmatprep.subr.mxu0 0.0
        %1468 = vmatpush1.msra.mxu0 0.0
        %1469 = vmatprep.subr.mxu0 0.0
        %1470 = vmatpush1.msra.mxu0 0.0
        %1471 = vmatprep.subr.mxu0 0.0
        %1472 = vmatpush1.msra.mxu0 0.0
        %1473 = vmatprep.subr.mxu0 0.0
        %1474 = vmatpush1.msra.mxu0 0.0
        %1475 = vmatprep.subr.mxu0 0.0
        %1476 = vmatpush1.msra.mxu0 0.0
        %1477 = vmatprep.subr.mxu0 0.0
        %1478 = vmatpush1.msra.mxu0 0.0
        %1479 = vmatprep.subr.mxu0 0.0
        %1480 = vmatpush1.msra.mxu0 0.0
        %1481 = vmatprep.subr.mxu0 0.0
        %1482 = vmatpush1.msra.mxu0 0.0
        %1483 = vmatprep.subr.mxu0 0.0
        %1484 = vmatpush1.msra.mxu0 0.0
        %1485 = vmatprep.subr.mxu0 0.0
        %1486 = vmatpush1.msra.mxu0 0.0
        %1487 = vmatprep.subr.mxu0 0.0
        %1488 = vmatpush1.msra.mxu0 0.0
        %1489 = vmatprep.subr.mxu0 0.0
        %1490 = vmatpush1.msra.mxu0 0.0
        %1491 = vmatprep.subr.mxu0 0.0
        %1492 = vmatpush1.msra.mxu0 0.0
        %1493 = vmatprep.subr.mxu0 0.0
        %1494 = vmatpush1.msra.mxu0 0.0
        %1495 = vmatprep.subr.mxu0 0.0
        %1496 = vmatpush1.msra.mxu0 0.0
        %1497 = vmatprep.subr.mxu0 0.0
        %1498 = vmatpush1.msra.mxu0 0.0
        %1499 = vmatprep.subr.mxu0 0.0
        %1500 = vmatpush1.msra.mxu0 0.0
        %1501 = vmatprep.subr.mxu0 0.0
        %1502 = vmatpush1.msra.mxu0 0.0
        %1503 = vmatprep.subr.mxu0 0.0
        %1504 = vmatpush1.msra.mxu0 0.0
        %1505 = vmatprep.subr.mxu0 0.0
        %1506 = vmatpush1.msra.mxu0 0.0
        %1507 = vmatprep.subr.mxu0 0.0
        %1508 = vmatpush1.msra.mxu0 0.0
        %1509 = vmatprep.subr.mxu0 0.0
        %1510 = vmatpush1.msra.mxu0 0.0
        %1511 = vmatprep.subr.mxu0 0.0
        %1512 = vmatpush1.msra.mxu0 0.0
        %1513 = vmatprep.subr.mxu0 0.0
        %1514 = vmatpush1.msra.mxu0 0.0
        %1515 = vmatprep.subr.mxu0 0.0
        %1516 = vmatpush1.msra.mxu0 0.0
        %1517 = vmatprep.subr.mxu0 0.0
        %1518 = vmatpush1.msra.mxu0 0.0
        %1519 = vmatprep.subr.mxu0 0.0
        %1520 = vmatpush1.msra.mxu0 0.0
        %1521 = vmatprep.subr.mxu0 0.0
        %1522 = vmatpush1.msra.mxu0 0.0
        %1523 = vmatprep.mubr.f32.mxu0 0.0
        %1524 = vmatmul.mubr.f32.gmra.mrb[0].mxu0 %v1445
        %v1525 = vpop.f32.mrb[0].mxu0
        %v1526 = vadd.f32 %v1426, %v1525
        %v1527 = vpop.f32.mrb[0].mxu0
        %1528 = vmatprep.mubr.f32.mxu0 0.0
        %1529 = vmatmul.mubr.f32.gmra.mrb[0].mxu0 %v1448
        %v1530 = vpop.f32.mrb[0].mxu0
        %v1531 = vadd.f32 %v1431, %v1530
        %v1532 = vpop.f32.mrb[0].mxu0
        %1533 = vmatprep.mubr.f32.mxu0 0.0
        %1534 = vmatmul.mubr.f32.gmra.mrb[0].mxu0 %v1451
        %v1535 = vpop.f32.mrb[0].mxu0
        %v1536 = vadd.f32 %v1436, %v1535
        %v1537 = vpop.f32.mrb[0].mxu0
        %1538 = vmatprep.mubr.f32.mxu0 0.0
        %1539 = vmatmul.mubr.f32.gmra.mrb[0].mxu0 %v1454
        %v1540 = vpop.f32.mrb[0].mxu0
        %v1541 = vadd.f32 %v1441, %v1540
        %v1542 = vpop.f32.mrb[0].mxu0
        %1543 = vdwg.mxu0
        %s1544 = scalar_lea.vmem [#allocation2], 7
        %v1545 = vld [vmem:[%s1544] ss:$2 sm:$0xff]
        %s1546 = scalar_lea.vmem [#allocation2], 23
        %v1547 = vld [vmem:[%s1546] ss:$2 sm:$0xff]
        %s1548 = scalar_lea.vmem [#allocation2], 39
        %v1549 = vld [vmem:[%s1548] ss:$2 sm:$0xff]
        %s1550 = scalar_lea.vmem [#allocation2], 55
        %v1551 = vld [vmem:[%s1550] ss:$2 sm:$0xff]
        %s1552 = scalar_lea.vmem [#allocation10], 8
        %v1553 = vld [vmem:[%s1552] sm:$0xf]
        %v1555 = vsel %vm1315, %v1545, 0
        %v1558 = vsel %vm1315, %v1547, 0
        %v1561 = vsel %vm1315, %v1549, 0
        %v1564 = vsel %vm1315, %v1551, 0
        %v1567 = vsel %vm1355, %v1553, 0
        %1569 = vmatprep.subr.mxu0 0.0
        %1570 = vmatpush1.msra.mxu0 %v1567
        %1571 = vmatprep.subr.mxu0 0.0
        %1572 = vmatpush1.msra.mxu0 0.0
        %1573 = vmatprep.subr.mxu0 0.0
        %1574 = vmatpush1.msra.mxu0 0.0
        %1575 = vmatprep.subr.mxu0 0.0
        %1576 = vmatpush1.msra.mxu0 0.0
        %1577 = vmatprep.subr.mxu0 0.0
        %1578 = vmatpush1.msra.mxu0 0.0
        %1579 = vmatprep.subr.mxu0 0.0
        %1580 = vmatpush1.msra.mxu0 0.0
        %1581 = vmatprep.subr.mxu0 0.0
        %1582 = vmatpush1.msra.mxu0 0.0
        %1583 = vmatprep.subr.mxu0 0.0
        %1584 = vmatpush1.msra.mxu0 0.0
        %1585 = vmatprep.subr.mxu0 0.0
        %1586 = vmatpush1.msra.mxu0 0.0
        %1587 = vmatprep.subr.mxu0 0.0
        %1588 = vmatpush1.msra.mxu0 0.0
        %1589 = vmatprep.subr.mxu0 0.0
        %1590 = vmatpush1.msra.mxu0 0.0
        %1591 = vmatprep.subr.mxu0 0.0
        %1592 = vmatpush1.msra.mxu0 0.0
        %1593 = vmatprep.subr.mxu0 0.0
        %1594 = vmatpush1.msra.mxu0 0.0
        %1595 = vmatprep.subr.mxu0 0.0
        %1596 = vmatpush1.msra.mxu0 0.0
        %1597 = vmatprep.subr.mxu0 0.0
        %1598 = vmatpush1.msra.mxu0 0.0
        %1599 = vmatprep.subr.mxu0 0.0
        %1600 = vmatpush1.msra.mxu0 0.0
        %1601 = vmatprep.subr.mxu0 0.0
        %1602 = vmatpush1.msra.mxu0 0.0
        %1603 = vmatprep.subr.mxu0 0.0
        %1604 = vmatpush1.msra.mxu0 0.0
        %1605 = vmatprep.subr.mxu0 0.0
        %1606 = vmatpush1.msra.mxu0 0.0
        %1607 = vmatprep.subr.mxu0 0.0
        %1608 = vmatpush1.msra.mxu0 0.0
        %1609 = vmatprep.subr.mxu0 0.0
        %1610 = vmatpush1.msra.mxu0 0.0
        %1611 = vmatprep.subr.mxu0 0.0
        %1612 = vmatpush1.msra.mxu0 0.0
        %1613 = vmatprep.subr.mxu0 0.0
        %1614 = vmatpush1.msra.mxu0 0.0
        %1615 = vmatprep.subr.mxu0 0.0
        %1616 = vmatpush1.msra.mxu0 0.0
        %1617 = vmatprep.subr.mxu0 0.0
        %1618 = vmatpush1.msra.mxu0 0.0
        %1619 = vmatprep.subr.mxu0 0.0
        %1620 = vmatpush1.msra.mxu0 0.0
        %1621 = vmatprep.subr.mxu0 0.0
        %1622 = vmatpush1.msra.mxu0 0.0
        %1623 = vmatprep.subr.mxu0 0.0
        %1624 = vmatpush1.msra.mxu0 0.0
        %1625 = vmatprep.subr.mxu0 0.0
        %1626 = vmatpush1.msra.mxu0 0.0
        %1627 = vmatprep.subr.mxu0 0.0
        %1628 = vmatpush1.msra.mxu0 0.0
        %1629 = vmatprep.subr.mxu0 0.0
        %1630 = vmatpush1.msra.mxu0 0.0
        %1631 = vmatprep.subr.mxu0 0.0
        %1632 = vmatpush1.msra.mxu0 0.0
        %1633 = vmatprep.mubr.f32.mxu0 0.0
        %1634 = vmatmul.mubr.f32.gmra.mrb[0].mxu0 %v1555
        %v1635 = vpop.f32.mrb[0].mxu0
        %v1636 = vadd.f32 0.0, %v1635
        %v1637 = vpop.f32.mrb[0].mxu0
        %1638 = vmatprep.mubr.f32.mxu0 0.0
        %1639 = vmatmul.mubr.f32.gmra.mrb[0].mxu0 %v1558
        %v1640 = vpop.f32.mrb[0].mxu0
        %v1641 = vadd.f32 0.0, %v1640
        %v1642 = vpop.f32.mrb[0].mxu0
        %1643 = vmatprep.mubr.f32.mxu0 0.0
        %1644 = vmatmul.mubr.f32.gmra.mrb[0].mxu0 %v1561
        %v1645 = vpop.f32.mrb[0].mxu0
        %v1646 = vadd.f32 0.0, %v1645
        %v1647 = vpop.f32.mrb[0].mxu0
        %1648 = vmatprep.mubr.f32.mxu0 0.0
        %1649 = vmatmul.mubr.f32.gmra.mrb[0].mxu0 %v1564
        %v1650 = vpop.f32.mrb[0].mxu0
        %v1651 = vadd.f32 0.0, %v1650
        %v1652 = vpop.f32.mrb[0].mxu0
        %1653 = vdwg.mxu0
        %v1654 = vadd.f32 %v1526, %v1636
        %v1655 = vadd.f32 %v1531, %v1641
        %v1656 = vadd.f32 %v1536, %v1646
        %v1657 = vadd.f32 %v1541, %v1651
        %s1658 = scalar_lea.vmem [#allocation2], 8
        %v1659 = vld [vmem:[%s1658] ss:$2 sm:$0xff]
        %s1660 = scalar_lea.vmem [#allocation2], 24
        %v1661 = vld [vmem:[%s1660] ss:$2 sm:$0xff]
        %s1662 = scalar_lea.vmem [#allocation2], 40
        %v1663 = vld [vmem:[%s1662] ss:$2 sm:$0xff]
        %s1664 = scalar_lea.vmem [#allocation2], 56
        %v1665 = vld [vmem:[%s1664] ss:$2 sm:$0xff]
        %s1666 = scalar_lea.vmem [#allocation10], 12
        %v1667 = vld [vmem:[%s1666] sm:$0xf]
        %v1669 = vsel %vm1315, %v1659, 0
        %v1672 = vsel %vm1315, %v1661, 0
        %v1675 = vsel %vm1315, %v1663, 0
        %v1678 = vsel %vm1315, %v1665, 0
        %v1681 = vsel %vm1355, %v1667, 0
        %1683 = vmatprep.subr.mxu0 0.0
        %1684 = vmatpush1.msra.mxu0 %v1681
        %1685 = vmatprep.subr.mxu0 0.0
        %1686 = vmatpush1.msra.mxu0 0.0
        %1687 = vmatprep.subr.mxu0 0.0
        %1688 = vmatpush1.msra.mxu0 0.0
        %1689 = vmatprep.subr.mxu0 0.0
        %1690 = vmatpush1.msra.mxu0 0.0
        %1691 = vmatprep.subr.mxu0 0.0
        %1692 = vmatpush1.msra.mxu0 0.0
        %1693 = vmatprep.subr.mxu0 0.0
        %1694 = vmatpush1.msra.mxu0 0.0
        %1695 = vmatprep.subr.mxu0 0.0
        %1696 = vmatpush1.msra.mxu0 0.0
        %1697 = vmatprep.subr.mxu0 0.0
        %1698 = vmatpush1.msra.mxu0 0.0
        %1699 = vmatprep.subr.mxu0 0.0
        %1700 = vmatpush1.msra.mxu0 0.0
        %1701 = vmatprep.subr.mxu0 0.0
        %1702 = vmatpush1.msra.mxu0 0.0
        %1703 = vmatprep.subr.mxu0 0.0
        %1704 = vmatpush1.msra.mxu0 0.0
        %1705 = vmatprep.subr.mxu0 0.0
        %1706 = vmatpush1.msra.mxu0 0.0
        %1707 = vmatprep.subr.mxu0 0.0
        %1708 = vmatpush1.msra.mxu0 0.0
        %1709 = vmatprep.subr.mxu0 0.0
        %1710 = vmatpush1.msra.mxu0 0.0
        %1711 = vmatprep.subr.mxu0 0.0
        %1712 = vmatpush1.msra.mxu0 0.0
        %1713 = vmatprep.subr.mxu0 0.0
        %1714 = vmatpush1.msra.mxu0 0.0
        %1715 = vmatprep.subr.mxu0 0.0
        %1716 = vmatpush1.msra.mxu0 0.0
        %1717 = vmatprep.subr.mxu0 0.0
        %1718 = vmatpush1.msra.mxu0 0.0
        %1719 = vmatprep.subr.mxu0 0.0
        %1720 = vmatpush1.msra.mxu0 0.0
        %1721 = vmatprep.subr.mxu0 0.0
        %1722 = vmatpush1.msra.mxu0 0.0
        %1723 = vmatprep.subr.mxu0 0.0
        %1724 = vmatpush1.msra.mxu0 0.0
        %1725 = vmatprep.subr.mxu0 0.0
        %1726 = vmatpush1.msra.mxu0 0.0
        %1727 = vmatprep.subr.mxu0 0.0
        %1728 = vmatpush1.msra.mxu0 0.0
        %1729 = vmatprep.subr.mxu0 0.0
        %1730 = vmatpush1.msra.mxu0 0.0
        %1731 = vmatprep.subr.mxu0 0.0
        %1732 = vmatpush1.msra.mxu0 0.0
        %1733 = vmatprep.subr.mxu0 0.0
        %1734 = vmatpush1.msra.mxu0 0.0
        %1735 = vmatprep.subr.mxu0 0.0
        %1736 = vmatpush1.msra.mxu0 0.0
        %1737 = vmatprep.subr.mxu0 0.0
        %1738 = vmatpush1.msra.mxu0 0.0
        %1739 = vmatprep.subr.mxu0 0.0
        %1740 = vmatpush1.msra.mxu0 0.0
        %1741 = vmatprep.subr.mxu0 0.0
        %1742 = vmatpush1.msra.mxu0 0.0
        %1743 = vmatprep.subr.mxu0 0.0
        %1744 = vmatpush1.msra.mxu0 0.0
        %1745 = vmatprep.subr.mxu0 0.0
        %1746 = vmatpush1.msra.mxu0 0.0
        %1747 = vmatprep.mubr.f32.mxu0 0.0
        %1748 = vmatmul.mubr.f32.gmra.mrb[0].mxu0 %v1669
        %v1749 = vpop.f32.mrb[0].mxu0
        %v1750 = vadd.f32 0.0, %v1749
        %v1751 = vpop.f32.mrb[0].mxu0
        %1752 = vmatprep.mubr.f32.mxu0 0.0
        %1753 = vmatmul.mubr.f32.gmra.mrb[0].mxu0 %v1672
        %v1754 = vpop.f32.mrb[0].mxu0
        %v1755 = vadd.f32 0.0, %v1754
        %v1756 = vpop.f32.mrb[0].mxu0
        %1757 = vmatprep.mubr.f32.mxu0 0.0
        %1758 = vmatmul.mubr.f32.gmra.mrb[0].mxu0 %v1675
        %v1759 = vpop.f32.mrb[0].mxu0
        %v1760 = vadd.f32 0.0, %v1759
        %v1761 = vpop.f32.mrb[0].mxu0
        %1762 = vmatprep.mubr.f32.mxu0 0.0
        %1763 = vmatmul.mubr.f32.gmra.mrb[0].mxu0 %v1678
        %v1764 = vpop.f32.mrb[0].mxu0
        %v1765 = vadd.f32 0.0, %v1764
        %v1766 = vpop.f32.mrb[0].mxu0
        %1767 = vdwg.mxu0
        %v1768 = vadd.f32 %v1654, %v1750
        %v1769 = vadd.f32 %v1655, %v1755
        %v1770 = vadd.f32 %v1656, %v1760
        %v1771 = vadd.f32 %v1657, %v1765
        %s1772 = scalar_lea.vmem [#allocation2], 9
        %v1773 = vld [vmem:[%s1772] ss:$2 sm:$0xff]
        %s1774 = scalar_lea.vmem [#allocation2], 25
        %v1775 = vld [vmem:[%s1774] ss:$2 sm:$0xff]
        %s1776 = scalar_lea.vmem [#allocation2], 41
        %v1777 = vld [vmem:[%s1776] ss:$2 sm:$0xff]
        %s1778 = scalar_lea.vmem [#allocation2], 57
        %v1779 = vld [vmem:[%s1778] ss:$2 sm:$0xff]
        %s1780 = scalar_lea.vmem [#allocation10], 16
        %v1781 = vld [vmem:[%s1780] sm:$0xf]
        %v1783 = vsel %vm1315, %v1773, 0
        %v1786 = vsel %vm1315, %v1775, 0
        %v1789 = vsel %vm1315, %v1777, 0
        %v1792 = vsel %vm1315, %v1779, 0
        %v1795 = vsel %vm1355, %v1781, 0
        %1797 = vmatprep.subr.mxu0 0.0
        %1798 = vmatpush1.msra.mxu0 %v1795
        %1799 = vmatprep.subr.mxu0 0.0
        %1800 = vmatpush1.msra.mxu0 0.0
        %1801 = vmatprep.subr.mxu0 0.0
        %1802 = vmatpush1.msra.mxu0 0.0
        %1803 = vmatprep.subr.mxu0 0.0
        %1804 = vmatpush1.msra.mxu0 0.0
        %1805 = vmatprep.subr.mxu0 0.0
        %1806 = vmatpush1.msra.mxu0 0.0
        %1807 = vmatprep.subr.mxu0 0.0
        %1808 = vmatpush1.msra.mxu0 0.0
        %1809 = vmatprep.subr.mxu0 0.0
        %1810 = vmatpush1.msra.mxu0 0.0
        %1811 = vmatprep.subr.mxu0 0.0
        %1812 = vmatpush1.msra.mxu0 0.0
        %1813 = vmatprep.subr.mxu0 0.0
        %1814 = vmatpush1.msra.mxu0 0.0
        %1815 = vmatprep.subr.mxu0 0.0
        %1816 = vmatpush1.msra.mxu0 0.0
        %1817 = vmatprep.subr.mxu0 0.0
        %1818 = vmatpush1.msra.mxu0 0.0
        %1819 = vmatprep.subr.mxu0 0.0
        %1820 = vmatpush1.msra.mxu0 0.0
        %1821 = vmatprep.subr.mxu0 0.0
        %1822 = vmatpush1.msra.mxu0 0.0
        %1823 = vmatprep.subr.mxu0 0.0
        %1824 = vmatpush1.msra.mxu0 0.0
        %1825 = vmatprep.subr.mxu0 0.0
        %1826 = vmatpush1.msra.mxu0 0.0
        %1827 = vmatprep.subr.mxu0 0.0
        %1828 = vmatpush1.msra.mxu0 0.0
        %1829 = vmatprep.subr.mxu0 0.0
        %1830 = vmatpush1.msra.mxu0 0.0
        %1831 = vmatprep.subr.mxu0 0.0
        %1832 = vmatpush1.msra.mxu0 0.0
        %1833 = vmatprep.subr.mxu0 0.0
        %1834 = vmatpush1.msra.mxu0 0.0
        %1835 = vmatprep.subr.mxu0 0.0
        %1836 = vmatpush1.msra.mxu0 0.0
        %1837 = vmatprep.subr.mxu0 0.0
        %1838 = vmatpush1.msra.mxu0 0.0
        %1839 = vmatprep.subr.mxu0 0.0
        %1840 = vmatpush1.msra.mxu0 0.0
        %1841 = vmatprep.subr.mxu0 0.0
        %1842 = vmatpush1.msra.mxu0 0.0
        %1843 = vmatprep.subr.mxu0 0.0
        %1844 = vmatpush1.msra.mxu0 0.0
        %1845 = vmatprep.subr.mxu0 0.0
        %1846 = vmatpush1.msra.mxu0 0.0
        %1847 = vmatprep.subr.mxu0 0.0
        %1848 = vmatpush1.msra.mxu0 0.0
        %1849 = vmatprep.subr.mxu0 0.0
        %1850 = vmatpush1.msra.mxu0 0.0
        %1851 = vmatprep.subr.mxu0 0.0
        %1852 = vmatpush1.msra.mxu0 0.0
        %1853 = vmatprep.subr.mxu0 0.0
        %1854 = vmatpush1.msra.mxu0 0.0
        %1855 = vmatprep.subr.mxu0 0.0
        %1856 = vmatpush1.msra.mxu0 0.0
        %1857 = vmatprep.subr.mxu0 0.0
        %1858 = vmatpush1.msra.mxu0 0.0
        %1859 = vmatprep.subr.mxu0 0.0
        %1860 = vmatpush1.msra.mxu0 0.0
        %1861 = vmatprep.mubr.f32.mxu0 0.0
        %1862 = vmatmul.mubr.f32.gmra.mrb[0].mxu0 %v1783
        %v1863 = vpop.f32.mrb[0].mxu0
        %v1864 = vadd.f32 0.0, %v1863
        %v1865 = vpop.f32.mrb[0].mxu0
        %1866 = vmatprep.mubr.f32.mxu0 0.0
        %1867 = vmatmul.mubr.f32.gmra.mrb[0].mxu0 %v1786
        %v1868 = vpop.f32.mrb[0].mxu0
        %v1869 = vadd.f32 0.0, %v1868
        %v1870 = vpop.f32.mrb[0].mxu0
        %1871 = vmatprep.mubr.f32.mxu0 0.0
        %1872 = vmatmul.mubr.f32.gmra.mrb[0].mxu0 %v1789
        %v1873 = vpop.f32.mrb[0].mxu0
        %v1874 = vadd.f32 0.0, %v1873
        %v1875 = vpop.f32.mrb[0].mxu0
        %1876 = vmatprep.mubr.f32.mxu0 0.0
        %1877 = vmatmul.mubr.f32.gmra.mrb[0].mxu0 %v1792
        %v1878 = vpop.f32.mrb[0].mxu0
        %v1879 = vadd.f32 0.0, %v1878
        %v1880 = vpop.f32.mrb[0].mxu0
        %1881 = vdwg.mxu0
        %v1882 = vadd.f32 %v1768, %v1864
        %v1883 = vadd.f32 %v1769, %v1869
        %v1884 = vadd.f32 %v1770, %v1874
        %v1885 = vadd.f32 %v1771, %v1879
        %s1886 = scalar_lea.vmem [#allocation2], 10
        %v1887 = vld [vmem:[%s1886] ss:$2 sm:$0xff]
        %s1888 = scalar_lea.vmem [#allocation2], 26
        %v1889 = vld [vmem:[%s1888] ss:$2 sm:$0xff]
        %s1890 = scalar_lea.vmem [#allocation2], 42
        %v1891 = vld [vmem:[%s1890] ss:$2 sm:$0xff]
        %s1892 = scalar_lea.vmem [#allocation2], 58
        %v1893 = vld [vmem:[%s1892] ss:$2 sm:$0xff]
        %s1894 = scalar_lea.vmem [#allocation10], 20
        %v1895 = vld [vmem:[%s1894] sm:$0xf]
        %v1897 = vsel %vm1315, %v1887, 0
        %v1900 = vsel %vm1315, %v1889, 0
        %v1903 = vsel %vm1315, %v1891, 0
        %v1906 = vsel %vm1315, %v1893, 0
        %v1909 = vsel %vm1355, %v1895, 0
        %1911 = vmatprep.subr.mxu0 0.0
        %1912 = vmatpush1.msra.mxu0 %v1909
        %1913 = vmatprep.subr.mxu0 0.0
        %1914 = vmatpush1.msra.mxu0 0.0
        %1915 = vmatprep.subr.mxu0 0.0
        %1916 = vmatpush1.msra.mxu0 0.0
        %1917 = vmatprep.subr.mxu0 0.0
        %1918 = vmatpush1.msra.mxu0 0.0
        %1919 = vmatprep.subr.mxu0 0.0
        %1920 = vmatpush1.msra.mxu0 0.0
        %1921 = vmatprep.subr.mxu0 0.0
        %1922 = vmatpush1.msra.mxu0 0.0
        %1923 = vmatprep.subr.mxu0 0.0
        %1924 = vmatpush1.msra.mxu0 0.0
        %1925 = vmatprep.subr.mxu0 0.0
        %1926 = vmatpush1.msra.mxu0 0.0
        %1927 = vmatprep.subr.mxu0 0.0
        %1928 = vmatpush1.msra.mxu0 0.0
        %1929 = vmatprep.subr.mxu0 0.0
        %1930 = vmatpush1.msra.mxu0 0.0
        %1931 = vmatprep.subr.mxu0 0.0
        %1932 = vmatpush1.msra.mxu0 0.0
        %1933 = vmatprep.subr.mxu0 0.0
        %1934 = vmatpush1.msra.mxu0 0.0
        %1935 = vmatprep.subr.mxu0 0.0
        %1936 = vmatpush1.msra.mxu0 0.0
        %1937 = vmatprep.subr.mxu0 0.0
        %1938 = vmatpush1.msra.mxu0 0.0
        %1939 = vmatprep.subr.mxu0 0.0
        %1940 = vmatpush1.msra.mxu0 0.0
        %1941 = vmatprep.subr.mxu0 0.0
        %1942 = vmatpush1.msra.mxu0 0.0
        %1943 = vmatprep.subr.mxu0 0.0
        %1944 = vmatpush1.msra.mxu0 0.0
        %1945 = vmatprep.subr.mxu0 0.0
        %1946 = vmatpush1.msra.mxu0 0.0
        %1947 = vmatprep.subr.mxu0 0.0
        %1948 = vmatpush1.msra.mxu0 0.0
        %1949 = vmatprep.subr.mxu0 0.0
        %1950 = vmatpush1.msra.mxu0 0.0
        %1951 = vmatprep.subr.mxu0 0.0
        %1952 = vmatpush1.msra.mxu0 0.0
        %1953 = vmatprep.subr.mxu0 0.0
        %1954 = vmatpush1.msra.mxu0 0.0
        %1955 = vmatprep.subr.mxu0 0.0
        %1956 = vmatpush1.msra.mxu0 0.0
        %1957 = vmatprep.subr.mxu0 0.0
        %1958 = vmatpush1.msra.mxu0 0.0
        %1959 = vmatprep.subr.mxu0 0.0
        %1960 = vmatpush1.msra.mxu0 0.0
        %1961 = vmatprep.subr.mxu0 0.0
        %1962 = vmatpush1.msra.mxu0 0.0
        %1963 = vmatprep.subr.mxu0 0.0
        %1964 = vmatpush1.msra.mxu0 0.0
        %1965 = vmatprep.subr.mxu0 0.0
        %1966 = vmatpush1.msra.mxu0 0.0
        %1967 = vmatprep.subr.mxu0 0.0
        %1968 = vmatpush1.msra.mxu0 0.0
        %1969 = vmatprep.subr.mxu0 0.0
        %1970 = vmatpush1.msra.mxu0 0.0
        %1971 = vmatprep.subr.mxu0 0.0
        %1972 = vmatpush1.msra.mxu0 0.0
        %1973 = vmatprep.subr.mxu0 0.0
        %1974 = vmatpush1.msra.mxu0 0.0
        %1975 = vmatprep.mubr.f32.mxu0 0.0
        %1976 = vmatmul.mubr.f32.gmra.mrb[0].mxu0 %v1897
        %v1977 = vpop.f32.mrb[0].mxu0
        %v1978 = vadd.f32 0.0, %v1977
        %v1979 = vpop.f32.mrb[0].mxu0
        %1980 = vmatprep.mubr.f32.mxu0 0.0
        %1981 = vmatmul.mubr.f32.gmra.mrb[0].mxu0 %v1900
        %v1982 = vpop.f32.mrb[0].mxu0
        %v1983 = vadd.f32 0.0, %v1982
        %v1984 = vpop.f32.mrb[0].mxu0
        %1985 = vmatprep.mubr.f32.mxu0 0.0
        %1986 = vmatmul.mubr.f32.gmra.mrb[0].mxu0 %v1903
        %v1987 = vpop.f32.mrb[0].mxu0
        %v1988 = vadd.f32 0.0, %v1987
        %v1989 = vpop.f32.mrb[0].mxu0
        %1990 = vmatprep.mubr.f32.mxu0 0.0
        %1991 = vmatmul.mubr.f32.gmra.mrb[0].mxu0 %v1906
        %v1992 = vpop.f32.mrb[0].mxu0
        %v1993 = vadd.f32 0.0, %v1992
        %v1994 = vpop.f32.mrb[0].mxu0
        %1995 = vdwg.mxu0
        %v1996 = vadd.f32 %v1882, %v1978
        %v1997 = vadd.f32 %v1883, %v1983
        %v1998 = vadd.f32 %v1884, %v1988
        %v1999 = vadd.f32 %v1885, %v1993
        %s2000 = scalar_lea.vmem [#allocation2], 11
        %v2001 = vld [vmem:[%s2000] ss:$2 sm:$0xff]
        %s2002 = scalar_lea.vmem [#allocation2], 27
        %v2003 = vld [vmem:[%s2002] ss:$2 sm:$0xff]
        %s2004 = scalar_lea.vmem [#allocation2], 43
        %v2005 = vld [vmem:[%s2004] ss:$2 sm:$0xff]
        %s2006 = scalar_lea.vmem [#allocation2], 59
        %v2007 = vld [vmem:[%s2006] ss:$2 sm:$0xff]
        %s2008 = scalar_lea.vmem [#allocation10], 24
        %v2009 = vld [vmem:[%s2008] sm:$0xf]
        %v2011 = vsel %vm1315, %v2001, 0
        %v2014 = vsel %vm1315, %v2003, 0
        %v2017 = vsel %vm1315, %v2005, 0
        %v2020 = vsel %vm1315, %v2007, 0
        %v2023 = vsel %vm1355, %v2009, 0
        %2025 = vmatprep.subr.mxu0 0.0
        %2026 = vmatpush1.msra.mxu0 %v2023
        %2027 = vmatprep.subr.mxu0 0.0
        %2028 = vmatpush1.msra.mxu0 0.0
        %2029 = vmatprep.subr.mxu0 0.0
        %2030 = vmatpush1.msra.mxu0 0.0
        %2031 = vmatprep.subr.mxu0 0.0
        %2032 = vmatpush1.msra.mxu0 0.0
        %2033 = vmatprep.subr.mxu0 0.0
        %2034 = vmatpush1.msra.mxu0 0.0
        %2035 = vmatprep.subr.mxu0 0.0
        %2036 = vmatpush1.msra.mxu0 0.0
        %2037 = vmatprep.subr.mxu0 0.0
        %2038 = vmatpush1.msra.mxu0 0.0
        %2039 = vmatprep.subr.mxu0 0.0
        %2040 = vmatpush1.msra.mxu0 0.0
        %2041 = vmatprep.subr.mxu0 0.0
        %2042 = vmatpush1.msra.mxu0 0.0
        %2043 = vmatprep.subr.mxu0 0.0
        %2044 = vmatpush1.msra.mxu0 0.0
        %2045 = vmatprep.subr.mxu0 0.0
        %2046 = vmatpush1.msra.mxu0 0.0
        %2047 = vmatprep.subr.mxu0 0.0
        %2048 = vmatpush1.msra.mxu0 0.0
        %2049 = vmatprep.subr.mxu0 0.0
        %2050 = vmatpush1.msra.mxu0 0.0
        %2051 = vmatprep.subr.mxu0 0.0
        %2052 = vmatpush1.msra.mxu0 0.0
        %2053 = vmatprep.subr.mxu0 0.0
        %2054 = vmatpush1.msra.mxu0 0.0
        %2055 = vmatprep.subr.mxu0 0.0
        %2056 = vmatpush1.msra.mxu0 0.0
        %2057 = vmatprep.subr.mxu0 0.0
        %2058 = vmatpush1.msra.mxu0 0.0
        %2059 = vmatprep.subr.mxu0 0.0
        %2060 = vmatpush1.msra.mxu0 0.0
        %2061 = vmatprep.subr.mxu0 0.0
        %2062 = vmatpush1.msra.mxu0 0.0
        %2063 = vmatprep.subr.mxu0 0.0
        %2064 = vmatpush1.msra.mxu0 0.0
        %2065 = vmatprep.subr.mxu0 0.0
        %2066 = vmatpush1.msra.mxu0 0.0
        %2067 = vmatprep.subr.mxu0 0.0
        %2068 = vmatpush1.msra.mxu0 0.0
        %2069 = vmatprep.subr.mxu0 0.0
        %2070 = vmatpush1.msra.mxu0 0.0
        %2071 = vmatprep.subr.mxu0 0.0
        %2072 = vmatpush1.msra.mxu0 0.0
        %2073 = vmatprep.subr.mxu0 0.0
        %2074 = vmatpush1.msra.mxu0 0.0
        %2075 = vmatprep.subr.mxu0 0.0
        %2076 = vmatpush1.msra.mxu0 0.0
        %2077 = vmatprep.subr.mxu0 0.0
        %2078 = vmatpush1.msra.mxu0 0.0
        %2079 = vmatprep.subr.mxu0 0.0
        %2080 = vmatpush1.msra.mxu0 0.0
        %2081 = vmatprep.subr.mxu0 0.0
        %2082 = vmatpush1.msra.mxu0 0.0
        %2083 = vmatprep.subr.mxu0 0.0
        %2084 = vmatpush1.msra.mxu0 0.0
        %2085 = vmatprep.subr.mxu0 0.0
        %2086 = vmatpush1.msra.mxu0 0.0
        %2087 = vmatprep.subr.mxu0 0.0
        %2088 = vmatpush1.msra.mxu0 0.0
        %2089 = vmatprep.mubr.f32.mxu0 0.0
        %2090 = vmatmul.mubr.f32.gmra.mrb[0].mxu0 %v2011
        %v2091 = vpop.f32.mrb[0].mxu0
        %v2092 = vadd.f32 0.0, %v2091
        %v2093 = vpop.f32.mrb[0].mxu0
        %2094 = vmatprep.mubr.f32.mxu0 0.0
        %2095 = vmatmul.mubr.f32.gmra.mrb[0].mxu0 %v2014
        %v2096 = vpop.f32.mrb[0].mxu0
        %v2097 = vadd.f32 0.0, %v2096
        %v2098 = vpop.f32.mrb[0].mxu0
        %2099 = vmatprep.mubr.f32.mxu0 0.0
        %2100 = vmatmul.mubr.f32.gmra.mrb[0].mxu0 %v2017
        %v2101 = vpop.f32.mrb[0].mxu0
        %v2102 = vadd.f32 0.0, %v2101
        %v2103 = vpop.f32.mrb[0].mxu0
        %2104 = vmatprep.mubr.f32.mxu0 0.0
        %2105 = vmatmul.mubr.f32.gmra.mrb[0].mxu0 %v2020
        %v2106 = vpop.f32.mrb[0].mxu0
        %v2107 = vadd.f32 0.0, %v2106
        %v2108 = vpop.f32.mrb[0].mxu0
        %2109 = vdwg.mxu0
        %v2110 = vadd.f32 %v1996, %v2092
        %v2111 = vadd.f32 %v1997, %v2097
        %v2112 = vadd.f32 %v1998, %v2102
        %v2113 = vadd.f32 %v1999, %v2107
        %v2114 = vld [vmem:[#allocation13] sm:$0x1]
        %v2116 = vlaneseq
        %v2117 = vshrl.u32 %v2116, 7
        %v2118 = vsub.s32 0, %v2117
        %v2119 = vrot.slane %v2114, %v2118
        %v2121 = vmul.f32 %v2110, %v2119
        %v2122 = vmul.f32 %v2111, %v2119
        %v2123 = vmul.f32 %v2112, %v2119
        %v2124 = vmul.f32 %v2113, %v2119
        %v2125 = vld [vmem:[#allocation15] sm:$0x1]
        %v2127 = vlaneseq
        %v2128 = vshrl.u32 %v2127, 7
        %v2129 = vsub.s32 0, %v2128
        %v2130 = vrot.slane %v2125, %v2129
        %v2132 = vadd.f32 %v2121, %v2130
        %v2133 = vadd.f32 %v2122, %v2130
        %v2134 = vadd.f32 %v2123, %v2130
        %v2135 = vadd.f32 %v2124, %v2130
        %v2136 = vmax.f32 %v2132, 0.0
        %v2137 = vmax.f32 %v2133, 0.0
        %v2138 = vmax.f32 %v2134, 0.0
        %v2139 = vmax.f32 %v2135, 0.0
        %vm2140 = vcmask 253952
        %2141 = vst.msk [vmem:[#allocation3 + $0x7] sm:$0x1] %vm2140, 0.0
        %2142 = vst.msk [vmem:[#allocation3 + $0x28] sm:$0x1] %vm2140, 0.0
        %vm2143 = vcmask 261120
        %2144 = vst.msk [vmem:[#allocation3 + $0x8] sm:$0xff] %vm2143, %v2136
        %2145 = vst.msk [vmem:[#allocation3 + $0x10] sm:$0xff] %vm2143, %v2137
        %2146 = vst.msk [vmem:[#allocation3 + $0x18] sm:$0xff] %vm2143, %v2138
        %2147 = vst.msk [vmem:[#allocation3 + $0x20] sm:$0xff] %vm2143, %v2139
        %s2148 = scalar_lea.vmem [#allocation3], 7
        %v2149 = vld [vmem:[%s2148] ss:$2 sm:$0xff]
        %s2150 = scalar_lea.vmem [#allocation3], 23
        %v2151 = vld [vmem:[%s2150] ss:$2 sm:$0xff]
        %s2152 = scalar_lea.vmem [#allocation3], 8
        %v2153 = vld [vmem:[%s2152] ss:$2 sm:$0xff]
        %s2154 = scalar_lea.vmem [#allocation3], 24
        %v2155 = vld [vmem:[%s2154] ss:$2 sm:$0xff]
        %v2156 = vmax.f32 %v2149, %v2153
        %v2157 = vmax.f32 %v2151, %v2155
        %s2158 = scalar_lea.vmem [#allocation3], 9
        %v2159 = vld [vmem:[%s2158] ss:$2 sm:$0xff]
        %s2160 = scalar_lea.vmem [#allocation3], 25
        %v2161 = vld [vmem:[%s2160] ss:$2 sm:$0xff]
        %v2162 = vmax.f32 %v2156, %v2159
        %v2163 = vmax.f32 %v2157, %v2161
        %2164 = vst.msk [vmem:[#allocation4 + $0x7] sm:$0x1] %vm2140, 0.0
        %2165 = vst.msk [vmem:[#allocation4 + $0x18] sm:$0x1] %vm2140, 0.0
        %2166 = vst.msk [vmem:[#allocation4 + $0x8] sm:$0xff] %vm2143, %v2162
        %2167 = vst.msk [vmem:[#allocation4 + $0x10] sm:$0xff] %vm2143, %v2163
        %s2168 = scalar_lea.vmem [#allocation4], 8
        %v2169 = vld [vmem:[%s2168] ss:$2 sm:$0xff]
        %v2170 = vld [vmem:[#allocation16] sm:$0xff]
        %v2171 = vld [vmem:[#allocation16 + $0x8] sm:$0xff]
        %v2172 = vld [vmem:[#allocation16 + $0x10] sm:$0xff]
        %v2173 = vld [vmem:[#allocation16 + $0x18] sm:$0xff]
        %v2175 = vsel %vm2143, %v2169, 0
        %2177 = vmatprep.subr.mxu0 0.0
        %2178 = vmatpush1.msra.mxu0 %v2170
        %2179 = vmatprep.subr.mxu0 0.0
        %2180 = vmatpush1.msra.mxu0 %v2171
        %2181 = vmatprep.subr.mxu0 0.0
        %2182 = vmatpush1.msra.mxu0 %v2172
        %2183 = vmatprep.subr.mxu0 0.0
        %2184 = vmatpush1.msra.mxu0 %v2173
        %2185 = vmatprep.subr.mxu0 0.0
        %2186 = vmatpush1.msra.mxu0 0.0
        %2187 = vmatprep.subr.mxu0 0.0
        %2188 = vmatpush1.msra.mxu0 0.0
        %2189 = vmatprep.subr.mxu0 0.0
        %2190 = vmatpush1.msra.mxu0 0.0
        %2191 = vmatprep.subr.mxu0 0.0
        %2192 = vmatpush1.msra.mxu0 0.0
        %2193 = vmatprep.subr.mxu0 0.0
        %2194 = vmatpush1.msra.mxu0 0.0
        %2195 = vmatprep.subr.mxu0 0.0
        %2196 = vmatpush1.msra.mxu0 0.0
        %2197 = vmatprep.subr.mxu0 0.0
        %2198 = vmatpush1.msra.mxu0 0.0
        %2199 = vmatprep.subr.mxu0 0.0
        %2200 = vmatpush1.msra.mxu0 0.0
        %2201 = vmatprep.subr.mxu0 0.0
        %2202 = vmatpush1.msra.mxu0 0.0
        %2203 = vmatprep.subr.mxu0 0.0
        %2204 = vmatpush1.msra.mxu0 0.0
        %2205 = vmatprep.subr.mxu0 0.0
        %2206 = vmatpush1.msra.mxu0 0.0
        %2207 = vmatprep.subr.mxu0 0.0
        %2208 = vmatpush1.msra.mxu0 0.0
        %2209 = vmatprep.subr.mxu0 0.0
        %2210 = vmatpush1.msra.mxu0 0.0
        %2211 = vmatprep.subr.mxu0 0.0
        %2212 = vmatpush1.msra.mxu0 0.0
        %2213 = vmatprep.subr.mxu0 0.0
        %2214 = vmatpush1.msra.mxu0 0.0
        %2215 = vmatprep.subr.mxu0 0.0
        %2216 = vmatpush1.msra.mxu0 0.0
        %2217 = vmatprep.subr.mxu0 0.0
        %2218 = vmatpush1.msra.mxu0 0.0
        %2219 = vmatprep.subr.mxu0 0.0
        %2220 = vmatpush1.msra.mxu0 0.0
        %2221 = vmatprep.subr.mxu0 0.0
        %2222 = vmatpush1.msra.mxu0 0.0
        %2223 = vmatprep.subr.mxu0 0.0
        %2224 = vmatpush1.msra.mxu0 0.0
        %2225 = vmatprep.subr.mxu0 0.0
        %2226 = vmatpush1.msra.mxu0 0.0
        %2227 = vmatprep.subr.mxu0 0.0
        %2228 = vmatpush1.msra.mxu0 0.0
        %2229 = vmatprep.subr.mxu0 0.0
        %2230 = vmatpush1.msra.mxu0 0.0
        %2231 = vmatprep.subr.mxu0 0.0
        %2232 = vmatpush1.msra.mxu0 0.0
        %2233 = vmatprep.subr.mxu0 0.0
        %2234 = vmatpush1.msra.mxu0 0.0
        %2235 = vmatprep.subr.mxu0 0.0
        %2236 = vmatpush1.msra.mxu0 0.0
        %2237 = vmatprep.subr.mxu0 0.0
        %2238 = vmatpush1.msra.mxu0 0.0
        %2239 = vmatprep.subr.mxu0 0.0
        %2240 = vmatpush1.msra.mxu0 0.0
        %2241 = vmatprep.mubr.f32.mxu0 0.0
        %2242 = vmatmul.mubr.f32.gmra.mrb[0].mxu0 %v2175
        %v2243 = vpop.f32.mrb[0].mxu0
        %v2244 = vadd.f32 0.0, %v2243
        %v2245 = vpop.f32.mrb[0].mxu0
        %2246 = vdwg.mxu0
        %v2247 = vld [vmem:[#allocation18] sm:$0x1]
        %v2249 = vlaneseq
        %v2250 = vshrl.u32 %v2249, 7
        %v2251 = vsub.s32 0, %v2250
        %v2252 = vrot.slane %v2247, %v2251
        %v2254 = vmul.f32 %v2244, %v2252
        %v2255 = vld [vmem:[#allocation19] sm:$0x1]
        %v2257 = vlaneseq
        %v2258 = vshrl.u32 %v2257, 7
        %v2259 = vsub.s32 0, %v2258
        %v2260 = vrot.slane %v2255, %v2259
        %v2262 = vadd.f32 %v2254, %v2260
        %s2263 = scalar_lea.vmem [#allocation4], 7
        %v2264 = vld [vmem:[%s2263] ss:$2 sm:$0xff]
        %v2265 = vld [vmem:[%s15] sm:$0xff]
        %v2266 = vld [vmem:[%s15 + $0x8] sm:$0xff]
        %v2267 = vld [vmem:[%s15 + $0x10] sm:$0xff]
        %v2268 = vld [vmem:[%s15 + $0x18] sm:$0xff]
        %s2269 = scalar_lea.vmem %s15, 32
        %v2270 = vld [vmem:[%s2269] sm:$0xff]
        %v2271 = vld [vmem:[%s2269 + $0x8] sm:$0xff]
        %v2272 = vld [vmem:[%s2269 + $0x10] sm:$0xff]
        %v2273 = vld [vmem:[%s2269 + $0x18] sm:$0xff]
        %2274 = vmatprep.subr.mxu0 0.0
        %2275 = vmatpush1.msra.mxu0 %v2270
        %2276 = vmatprep.subr.mxu0 0.0
        %2277 = vmatpush1.msra.mxu0 %v2271
        %2278 = vmatprep.subr.mxu0 0.0
        %2279 = vmatpush1.msra.mxu0 %v2272
        %2280 = vmatprep.subr.mxu0 0.0
        %2281 = vmatpush1.msra.mxu0 %v2273
        %2282 = vmatprep.subr.mxu0 0.0
        %2283 = vmatpush1.msra.mxu0 0.0
        %2284 = vmatprep.subr.mxu0 0.0
        %2285 = vmatpush1.msra.mxu0 0.0
        %2286 = vmatprep.subr.mxu0 0.0
        %2287 = vmatpush1.msra.mxu0 0.0
        %2288 = vmatprep.subr.mxu0 0.0
        %2289 = vmatpush1.msra.mxu0 0.0
        %2290 = vmatprep.subr.mxu0 0.0
        %2291 = vmatpush1.msra.mxu0 0.0
        %2292 = vmatprep.subr.mxu0 0.0
        %2293 = vmatpush1.msra.mxu0 0.0
        %2294 = vmatprep.subr.mxu0 0.0
        %2295 = vmatpush1.msra.mxu0 0.0
        %2296 = vmatprep.subr.mxu0 0.0
        %2297 = vmatpush1.msra.mxu0 0.0
        %2298 = vmatprep.subr.mxu0 0.0
        %2299 = vmatpush1.msra.mxu0 0.0
        %2300 = vmatprep.subr.mxu0 0.0
        %2301 = vmatpush1.msra.mxu0 0.0
        %2302 = vmatprep.subr.mxu0 0.0
        %2303 = vmatpush1.msra.mxu0 0.0
        %2304 = vmatprep.subr.mxu0 0.0
        %2305 = vmatpush1.msra.mxu0 0.0
        %2306 = vmatprep.subr.mxu0 0.0
        %2307 = vmatpush1.msra.mxu0 0.0
        %2308 = vmatprep.subr.mxu0 0.0
        %2309 = vmatpush1.msra.mxu0 0.0
        %2310 = vmatprep.subr.mxu0 0.0
        %2311 = vmatpush1.msra.mxu0 0.0
        %2312 = vmatprep.subr.mxu0 0.0
        %2313 = vmatpush1.msra.mxu0 0.0
        %2314 = vmatprep.subr.mxu0 0.0
        %2315 = vmatpush1.msra.mxu0 0.0
        %2316 = vmatprep.subr.mxu0 0.0
        %2317 = vmatpush1.msra.mxu0 0.0
        %2318 = vmatprep.subr.mxu0 0.0
        %2319 = vmatpush1.msra.mxu0 0.0
        %2320 = vmatprep.subr.mxu0 0.0
        %2321 = vmatpush1.msra.mxu0 0.0
        %2322 = vmatprep.subr.mxu0 0.0
        %2323 = vmatpush1.msra.mxu0 0.0
        %2324 = vmatprep.subr.mxu0 0.0
        %2325 = vmatpush1.msra.mxu0 0.0
        %2326 = vmatprep.subr.mxu0 0.0
        %2327 = vmatpush1.msra.mxu0 0.0
        %2328 = vmatprep.subr.mxu0 0.0
        %2329 = vmatpush1.msra.mxu0 0.0
        %2330 = vmatprep.subr.mxu0 0.0
        %2331 = vmatpush1.msra.mxu0 0.0
        %2332 = vmatprep.subr.mxu0 0.0
        %2333 = vmatpush1.msra.mxu0 0.0
        %2334 = vmatprep.subr.mxu0 0.0
        %2335 = vmatpush1.msra.mxu0 0.0
        %2336 = vmatprep.subr.mxu0 0.0
        %2337 = vmatpush1.msra.mxu0 0.0
        %2338 = vmatprep.mubr.f32.mxu0 0.0
        %2339 = vmatmul.mubr.f32.gmra.mrb[0].mxu0 %v2175
        %v2340 = vpop.f32.mrb[0].mxu0
        %v2341 = vadd.f32 0.0, %v2340
        %v2342 = vpop.f32.mrb[0].mxu0
        %2343 = vdwg.mxu0
        %v2345 = vsel %vm2143, %v2264, 0
        %2347 = vmatprep.subr.mxu0 0.0
        %2348 = vmatpush1.msra.mxu0 %v2265
        %2349 = vmatprep.subr.mxu0 0.0
        %2350 = vmatpush1.msra.mxu0 %v2266
        %2351 = vmatprep.subr.mxu0 0.0
        %2352 = vmatpush1.msra.mxu0 %v2267
        %2353 = vmatprep.subr.mxu0 0.0
        %2354 = vmatpush1.msra.mxu0 %v2268
        %2355 = vmatprep.subr.mxu0 0.0
        %2356 = vmatpush1.msra.mxu0 0.0
        %2357 = vmatprep.subr.mxu0 0.0
        %2358 = vmatpush1.msra.mxu0 0.0
        %2359 = vmatprep.subr.mxu0 0.0
        %2360 = vmatpush1.msra.mxu0 0.0
        %2361 = vmatprep.subr.mxu0 0.0
        %2362 = vmatpush1.msra.mxu0 0.0
        %2363 = vmatprep.subr.mxu0 0.0
        %2364 = vmatpush1.msra.mxu0 0.0
        %2365 = vmatprep.subr.mxu0 0.0
        %2366 = vmatpush1.msra.mxu0 0.0
        %2367 = vmatprep.subr.mxu0 0.0
        %2368 = vmatpush1.msra.mxu0 0.0
        %2369 = vmatprep.subr.mxu0 0.0
        %2370 = vmatpush1.msra.mxu0 0.0
        %2371 = vmatprep.subr.mxu0 0.0
        %2372 = vmatpush1.msra.mxu0 0.0
        %2373 = vmatprep.subr.mxu0 0.0
        %2374 = vmatpush1.msra.mxu0 0.0
        %2375 = vmatprep.subr.mxu0 0.0
        %2376 = vmatpush1.msra.mxu0 0.0
        %2377 = vmatprep.subr.mxu0 0.0
        %2378 = vmatpush1.msra.mxu0 0.0
        %2379 = vmatprep.subr.mxu0 0.0
        %2380 = vmatpush1.msra.mxu0 0.0
        %2381 = vmatprep.subr.mxu0 0.0
        %2382 = vmatpush1.msra.mxu0 0.0
        %2383 = vmatprep.subr.mxu0 0.0
        %2384 = vmatpush1.msra.mxu0 0.0
        %2385 = vmatprep.subr.mxu0 0.0
        %2386 = vmatpush1.msra.mxu0 0.0
        %2387 = vmatprep.subr.mxu0 0.0
        %2388 = vmatpush1.msra.mxu0 0.0
        %2389 = vmatprep.subr.mxu0 0.0
        %2390 = vmatpush1.msra.mxu0 0.0
        %2391 = vmatprep.subr.mxu0 0.0
        %2392 = vmatpush1.msra.mxu0 0.0
        %2393 = vmatprep.subr.mxu0 0.0
        %2394 = vmatpush1.msra.mxu0 0.0
        %2395 = vmatprep.subr.mxu0 0.0
        %2396 = vmatpush1.msra.mxu0 0.0
        %2397 = vmatprep.subr.mxu0 0.0
        %2398 = vmatpush1.msra.mxu0 0.0
        %2399 = vmatprep.subr.mxu0 0.0
        %2400 = vmatpush1.msra.mxu0 0.0
        %2401 = vmatprep.subr.mxu0 0.0
        %2402 = vmatpush1.msra.mxu0 0.0
        %2403 = vmatprep.subr.mxu0 0.0
        %2404 = vmatpush1.msra.mxu0 0.0
        %2405 = vmatprep.subr.mxu0 0.0
        %2406 = vmatpush1.msra.mxu0 0.0
        %2407 = vmatprep.subr.mxu0 0.0
        %2408 = vmatpush1.msra.mxu0 0.0
        %2409 = vmatprep.subr.mxu0 0.0
        %2410 = vmatpush1.msra.mxu0 0.0
        %2411 = vmatprep.mubr.f32.mxu0 0.0
        %2412 = vmatmul.mubr.f32.gmra.mrb[0].mxu0 %v2345
        %v2413 = vpop.f32.mrb[0].mxu0
        %v2414 = vadd.f32 %v2341, %v2413
        %v2415 = vpop.f32.mrb[0].mxu0
        %2416 = vdwg.mxu0
        %s2417 = scalar_lea.vmem [#allocation4], 9
        %v2418 = vld [vmem:[%s2417] ss:$2 sm:$0xff]
        %s2419 = scalar_lea.vmem %s15, 64
        %v2420 = vld [vmem:[%s2419] sm:$0xff]
        %v2421 = vld [vmem:[%s2419 + $0x8] sm:$0xff]
        %v2422 = vld [vmem:[%s2419 + $0x10] sm:$0xff]
        %v2423 = vld [vmem:[%s2419 + $0x18] sm:$0xff]
        %v2425 = vsel %vm2143, %v2418, 0
        %2427 = vmatprep.subr.mxu0 0.0
        %2428 = vmatpush1.msra.mxu0 %v2420
        %2429 = vmatprep.subr.mxu0 0.0
        %2430 = vmatpush1.msra.mxu0 %v2421
        %2431 = vmatprep.subr.mxu0 0.0
        %2432 = vmatpush1.msra.mxu0 %v2422
        %2433 = vmatprep.subr.mxu0 0.0
        %2434 = vmatpush1.msra.mxu0 %v2423
        %2435 = vmatprep.subr.mxu0 0.0
        %2436 = vmatpush1.msra.mxu0 0.0
        %2437 = vmatprep.subr.mxu0 0.0
        %2438 = vmatpush1.msra.mxu0 0.0
        %2439 = vmatprep.subr.mxu0 0.0
        %2440 = vmatpush1.msra.mxu0 0.0
        %2441 = vmatprep.subr.mxu0 0.0
        %2442 = vmatpush1.msra.mxu0 0.0
        %2443 = vmatprep.subr.mxu0 0.0
        %2444 = vmatpush1.msra.mxu0 0.0
        %2445 = vmatprep.subr.mxu0 0.0
        %2446 = vmatpush1.msra.mxu0 0.0
        %2447 = vmatprep.subr.mxu0 0.0
        %2448 = vmatpush1.msra.mxu0 0.0
        %2449 = vmatprep.subr.mxu0 0.0
        %2450 = vmatpush1.msra.mxu0 0.0
        %2451 = vmatprep.subr.mxu0 0.0
        %2452 = vmatpush1.msra.mxu0 0.0
        %2453 = vmatprep.subr.mxu0 0.0
        %2454 = vmatpush1.msra.mxu0 0.0
        %2455 = vmatprep.subr.mxu0 0.0
        %2456 = vmatpush1.msra.mxu0 0.0
        %2457 = vmatprep.subr.mxu0 0.0
        %2458 = vmatpush1.msra.mxu0 0.0
        %2459 = vmatprep.subr.mxu0 0.0
        %2460 = vmatpush1.msra.mxu0 0.0
        %2461 = vmatprep.subr.mxu0 0.0
        %2462 = vmatpush1.msra.mxu0 0.0
        %2463 = vmatprep.subr.mxu0 0.0
        %2464 = vmatpush1.msra.mxu0 0.0
        %2465 = vmatprep.subr.mxu0 0.0
        %2466 = vmatpush1.msra.mxu0 0.0
        %2467 = vmatprep.subr.mxu0 0.0
        %2468 = vmatpush1.msra.mxu0 0.0
        %2469 = vmatprep.subr.mxu0 0.0
        %2470 = vmatpush1.msra.mxu0 0.0
        %2471 = vmatprep.subr.mxu0 0.0
        %2472 = vmatpush1.msra.mxu0 0.0
        %2473 = vmatprep.subr.mxu0 0.0
        %2474 = vmatpush1.msra.mxu0 0.0
        %2475 = vmatprep.subr.mxu0 0.0
        %2476 = vmatpush1.msra.mxu0 0.0
        %2477 = vmatprep.subr.mxu0 0.0
        %2478 = vmatpush1.msra.mxu0 0.0
        %2479 = vmatprep.subr.mxu0 0.0
        %2480 = vmatpush1.msra.mxu0 0.0
        %2481 = vmatprep.subr.mxu0 0.0
        %2482 = vmatpush1.msra.mxu0 0.0
        %2483 = vmatprep.subr.mxu0 0.0
        %2484 = vmatpush1.msra.mxu0 0.0
        %2485 = vmatprep.subr.mxu0 0.0
        %2486 = vmatpush1.msra.mxu0 0.0
        %2487 = vmatprep.subr.mxu0 0.0
        %2488 = vmatpush1.msra.mxu0 0.0
        %2489 = vmatprep.subr.mxu0 0.0
        %2490 = vmatpush1.msra.mxu0 0.0
        %2491 = vmatprep.mubr.f32.mxu0 0.0
        %2492 = vmatmul.mubr.f32.gmra.mrb[0].mxu0 %v2425
        %v2493 = vpop.f32.mrb[0].mxu0
        %v2494 = vadd.f32 0.0, %v2493
        %v2495 = vpop.f32.mrb[0].mxu0
        %2496 = vdwg.mxu0
        %v2497 = vadd.f32 %v2414, %v2494
        %v2498 = vld [vmem:[#allocation21] sm:$0x1]
        %v2500 = vlaneseq
        %v2501 = vshrl.u32 %v2500, 7
        %v2502 = vsub.s32 0, %v2501
        %v2503 = vrot.slane %v2498, %v2502
        %v2505 = vmul.f32 %v2497, %v2503
        %v2506 = vld [vmem:[#allocation22] sm:$0x1]
        %v2508 = vlaneseq
        %v2509 = vshrl.u32 %v2508, 7
        %v2510 = vsub.s32 0, %v2509
        %v2511 = vrot.slane %v2506, %v2510
        %v2513 = vadd.f32 %v2505, %v2511
        %v2514 = vmax.f32 %v2513, 0.0
        %vm2515 = vcmask 516096
        %2516 = vst.msk [vmem:[#allocation5 + $0x7] sm:$0x1] %vm2515, 0.0
        %2517 = vst.msk [vmem:[#allocation5 + $0x10] sm:$0x1] %vm2515, 0.0
        %vm2518 = vcmask 523264
        %2519 = vst.msk [vmem:[#allocation5 + $0x8] sm:$0xff] %vm2518, %v2514
        %v2520 = vld [vmem:[#allocation5 + $0x7] sm:$0xff]
        %v2521 = vld [vmem:[#allocation24] sm:$0xff]
        %v2522 = vld [vmem:[#allocation24 + $0x8] sm:$0xff]
        %v2523 = vld [vmem:[#allocation24 + $0x10] sm:$0xff]
        %v2524 = vld [vmem:[#allocation24 + $0x18] sm:$0xff]
        %v2525 = vld [vmem:[#allocation24 + $0x20] sm:$0xff]
        %v2526 = vld [vmem:[#allocation24 + $0x28] sm:$0xff]
        %v2527 = vld [vmem:[#allocation24 + $0x30] sm:$0xff]
        %v2528 = vld [vmem:[#allocation24 + $0x38] sm:$0xff]
        %v2529 = vld [vmem:[#allocation5 + $0x8] sm:$0xff]
        %s2530 = scalar_lea.vmem [#allocation24], 64
        %v2531 = vld [vmem:[%s2530] sm:$0xff]
        %v2532 = vld [vmem:[%s2530 + $0x8] sm:$0xff]
        %v2533 = vld [vmem:[%s2530 + $0x10] sm:$0xff]
        %v2534 = vld [vmem:[%s2530 + $0x18] sm:$0xff]
        %v2535 = vld [vmem:[%s2530 + $0x20] sm:$0xff]
        %v2536 = vld [vmem:[%s2530 + $0x28] sm:$0xff]
        %v2537 = vld [vmem:[%s2530 + $0x30] sm:$0xff]
        %v2538 = vld [vmem:[%s2530 + $0x38] sm:$0xff]
        %v2540 = vsel %vm2518, %v2529, 0
        %2542 = vmatprep.subr.mxu0 0.0
        %2543 = vmatpush1.msra.mxu0 %v2531
        %2544 = vmatprep.subr.mxu0 0.0
        %2545 = vmatpush1.msra.mxu0 %v2532
        %2546 = vmatprep.subr.mxu0 0.0
        %2547 = vmatpush1.msra.mxu0 %v2533
        %2548 = vmatprep.subr.mxu0 0.0
        %2549 = vmatpush1.msra.mxu0 %v2534
        %2550 = vmatprep.subr.mxu0 0.0
        %2551 = vmatpush1.msra.mxu0 %v2535
        %2552 = vmatprep.subr.mxu0 0.0
        %2553 = vmatpush1.msra.mxu0 %v2536
        %2554 = vmatprep.subr.mxu0 0.0
        %2555 = vmatpush1.msra.mxu0 %v2537
        %2556 = vmatprep.subr.mxu0 0.0
        %2557 = vmatpush1.msra.mxu0 %v2538
        %2558 = vmatprep.subr.mxu0 0.0
        %2559 = vmatpush1.msra.mxu0 0.0
        %2560 = vmatprep.subr.mxu0 0.0
        %2561 = vmatpush1.msra.mxu0 0.0
        %2562 = vmatprep.subr.mxu0 0.0
        %2563 = vmatpush1.msra.mxu0 0.0
        %2564 = vmatprep.subr.mxu0 0.0
        %2565 = vmatpush1.msra.mxu0 0.0
        %2566 = vmatprep.subr.mxu0 0.0
        %2567 = vmatpush1.msra.mxu0 0.0
        %2568 = vmatprep.subr.mxu0 0.0
        %2569 = vmatpush1.msra.mxu0 0.0
        %2570 = vmatprep.subr.mxu0 0.0
        %2571 = vmatpush1.msra.mxu0 0.0
        %2572 = vmatprep.subr.mxu0 0.0
        %2573 = vmatpush1.msra.mxu0 0.0
        %2574 = vmatprep.subr.mxu0 0.0
        %2575 = vmatpush1.msra.mxu0 0.0
        %2576 = vmatprep.subr.mxu0 0.0
        %2577 = vmatpush1.msra.mxu0 0.0
        %2578 = vmatprep.subr.mxu0 0.0
        %2579 = vmatpush1.msra.mxu0 0.0
        %2580 = vmatprep.subr.mxu0 0.0
        %2581 = vmatpush1.msra.mxu0 0.0
        %2582 = vmatprep.subr.mxu0 0.0
        %2583 = vmatpush1.msra.mxu0 0.0
        %2584 = vmatprep.subr.mxu0 0.0
        %2585 = vmatpush1.msra.mxu0 0.0
        %2586 = vmatprep.subr.mxu0 0.0
        %2587 = vmatpush1.msra.mxu0 0.0
        %2588 = vmatprep.subr.mxu0 0.0
        %2589 = vmatpush1.msra.mxu0 0.0
        %2590 = vmatprep.subr.mxu0 0.0
        %2591 = vmatpush1.msra.mxu0 0.0
        %2592 = vmatprep.subr.mxu0 0.0
        %2593 = vmatpush1.msra.mxu0 0.0
        %2594 = vmatprep.subr.mxu0 0.0
        %2595 = vmatpush1.msra.mxu0 0.0
        %2596 = vmatprep.subr.mxu0 0.0
        %2597 = vmatpush1.msra.mxu0 0.0
        %2598 = vmatprep.subr.mxu0 0.0
        %2599 = vmatpush1.msra.mxu0 0.0
        %2600 = vmatprep.subr.mxu0 0.0
        %2601 = vmatpush1.msra.mxu0 0.0
        %2602 = vmatprep.subr.mxu0 0.0
        %2603 = vmatpush1.msra.mxu0 0.0
        %2604 = vmatprep.subr.mxu0 0.0
        %2605 = vmatpush1.msra.mxu0 0.0
        %2606 = vmatprep.mubr.f32.mxu0 0.0
        %2607 = vmatmul.mubr.f32.gmra.mrb[0].mxu0 %v2540
        %v2608 = vpop.f32.mrb[0].mxu0
        %v2609 = vadd.f32 0.0, %v2608
        %v2610 = vpop.f32.mrb[0].mxu0
        %2611 = vdwg.mxu0
        %v2613 = vsel %vm2518, %v2520, 0
        %2615 = vmatprep.subr.mxu0 0.0
        %2616 = vmatpush1.msra.mxu0 %v2521
        %2617 = vmatprep.subr.mxu0 0.0
        %2618 = vmatpush1.msra.mxu0 %v2522
        %2619 = vmatprep.subr.mxu0 0.0
        %2620 = vmatpush1.msra.mxu0 %v2523
        %2621 = vmatprep.subr.mxu0 0.0
        %2622 = vmatpush1.msra.mxu0 %v2524
        %2623 = vmatprep.subr.mxu0 0.0
        %2624 = vmatpush1.msra.mxu0 %v2525
        %2625 = vmatprep.subr.mxu0 0.0
        %2626 = vmatpush1.msra.mxu0 %v2526
        %2627 = vmatprep.subr.mxu0 0.0
        %2628 = vmatpush1.msra.mxu0 %v2527
        %2629 = vmatprep.subr.mxu0 0.0
        %2630 = vmatpush1.msra.mxu0 %v2528
        %2631 = vmatprep.subr.mxu0 0.0
        %2632 = vmatpush1.msra.mxu0 0.0
        %2633 = vmatprep.subr.mxu0 0.0
        %2634 = vmatpush1.msra.mxu0 0.0
        %2635 = vmatprep.subr.mxu0 0.0
        %2636 = vmatpush1.msra.mxu0 0.0
        %2637 = vmatprep.subr.mxu0 0.0
        %2638 = vmatpush1.msra.mxu0 0.0
        %2639 = vmatprep.subr.mxu0 0.0
        %2640 = vmatpush1.msra.mxu0 0.0
        %2641 = vmatprep.subr.mxu0 0.0
        %2642 = vmatpush1.msra.mxu0 0.0
        %2643 = vmatprep.subr.mxu0 0.0
        %2644 = vmatpush1.msra.mxu0 0.0
        %2645 = vmatprep.subr.mxu0 0.0
        %2646 = vmatpush1.msra.mxu0 0.0
        %2647 = vmatprep.subr.mxu0 0.0
        %2648 = vmatpush1.msra.mxu0 0.0
        %2649 = vmatprep.subr.mxu0 0.0
        %2650 = vmatpush1.msra.mxu0 0.0
        %2651 = vmatprep.subr.mxu0 0.0
        %2652 = vmatpush1.msra.mxu0 0.0
        %2653 = vmatprep.subr.mxu0 0.0
        %2654 = vmatpush1.msra.mxu0 0.0
        %2655 = vmatprep.subr.mxu0 0.0
        %2656 = vmatpush1.msra.mxu0 0.0
        %2657 = vmatprep.subr.mxu0 0.0
        %2658 = vmatpush1.msra.mxu0 0.0
        %2659 = vmatprep.subr.mxu0 0.0
        %2660 = vmatpush1.msra.mxu0 0.0
        %2661 = vmatprep.subr.mxu0 0.0
        %2662 = vmatpush1.msra.mxu0 0.0
        %2663 = vmatprep.subr.mxu0 0.0
        %2664 = vmatpush1.msra.mxu0 0.0
        %2665 = vmatprep.subr.mxu0 0.0
        %2666 = vmatpush1.msra.mxu0 0.0
        %2667 = vmatprep.subr.mxu0 0.0
        %2668 = vmatpush1.msra.mxu0 0.0
        %2669 = vmatprep.subr.mxu0 0.0
        %2670 = vmatpush1.msra.mxu0 0.0
        %2671 = vmatprep.subr.mxu0 0.0
        %2672 = vmatpush1.msra.mxu0 0.0
        %2673 = vmatprep.subr.mxu0 0.0
        %2674 = vmatpush1.msra.mxu0 0.0
        %2675 = vmatprep.subr.mxu0 0.0
        %2676 = vmatpush1.msra.mxu0 0.0
        %2677 = vmatprep.subr.mxu0 0.0
        %2678 = vmatpush1.msra.mxu0 0.0
        %2679 = vmatprep.mubr.f32.mxu0 0.0
        %2680 = vmatmul.mubr.f32.gmra.mrb[0].mxu0 %v2613
        %v2681 = vpop.f32.mrb[0].mxu0
        %v2682 = vadd.f32 %v2609, %v2681
        %v2683 = vpop.f32.mrb[0].mxu0
        %2684 = vdwg.mxu0
        %v2685 = vld [vmem:[#allocation5 + $0x9] sm:$0xff]
        %s2686 = scalar_lea.vmem [#allocation24], 128
        %v2687 = vld [vmem:[%s2686] sm:$0xff]
        %v2688 = vld [vmem:[%s2686 + $0x8] sm:$0xff]
        %v2689 = vld [vmem:[%s2686 + $0x10] sm:$0xff]
        %v2690 = vld [vmem:[%s2686 + $0x18] sm:$0xff]
        %v2691 = vld [vmem:[%s2686 + $0x20] sm:$0xff]
        %v2692 = vld [vmem:[%s2686 + $0x28] sm:$0xff]
        %v2693 = vld [vmem:[%s2686 + $0x30] sm:$0xff]
        %v2694 = vld [vmem:[%s2686 + $0x38] sm:$0xff]
        %v2696 = vsel %vm2518, %v2685, 0
        %2698 = vmatprep.subr.mxu0 0.0
        %2699 = vmatpush1.msra.mxu0 %v2687
        %2700 = vmatprep.subr.mxu0 0.0
        %2701 = vmatpush1.msra.mxu0 %v2688
        %2702 = vmatprep.subr.mxu0 0.0
        %2703 = vmatpush1.msra.mxu0 %v2689
        %2704 = vmatprep.subr.mxu0 0.0
        %2705 = vmatpush1.msra.mxu0 %v2690
        %2706 = vmatprep.subr.mxu0 0.0
        %2707 = vmatpush1.msra.mxu0 %v2691
        %2708 = vmatprep.subr.mxu0 0.0
        %2709 = vmatpush1.msra.mxu0 %v2692
        %2710 = vmatprep.subr.mxu0 0.0
        %2711 = vmatpush1.msra.mxu0 %v2693
        %2712 = vmatprep.subr.mxu0 0.0
        %2713 = vmatpush1.msra.mxu0 %v2694
        %2714 = vmatprep.subr.mxu0 0.0
        %2715 = vmatpush1.msra.mxu0 0.0
        %2716 = vmatprep.subr.mxu0 0.0
        %2717 = vmatpush1.msra.mxu0 0.0
        %2718 = vmatprep.subr.mxu0 0.0
        %2719 = vmatpush1.msra.mxu0 0.0
        %2720 = vmatprep.subr.mxu0 0.0
        %2721 = vmatpush1.msra.mxu0 0.0
        %2722 = vmatprep.subr.mxu0 0.0
        %2723 = vmatpush1.msra.mxu0 0.0
        %2724 = vmatprep.subr.mxu0 0.0
        %2725 = vmatpush1.msra.mxu0 0.0
        %2726 = vmatprep.subr.mxu0 0.0
        %2727 = vmatpush1.msra.mxu0 0.0
        %2728 = vmatprep.subr.mxu0 0.0
        %2729 = vmatpush1.msra.mxu0 0.0
        %2730 = vmatprep.subr.mxu0 0.0
        %2731 = vmatpush1.msra.mxu0 0.0
        %2732 = vmatprep.subr.mxu0 0.0
        %2733 = vmatpush1.msra.mxu0 0.0
        %2734 = vmatprep.subr.mxu0 0.0
        %2735 = vmatpush1.msra.mxu0 0.0
        %2736 = vmatprep.subr.mxu0 0.0
        %2737 = vmatpush1.msra.mxu0 0.0
        %2738 = vmatprep.subr.mxu0 0.0
        %2739 = vmatpush1.msra.mxu0 0.0
        %2740 = vmatprep.subr.mxu0 0.0
        %2741 = vmatpush1.msra.mxu0 0.0
        %2742 = vmatprep.subr.mxu0 0.0
        %2743 = vmatpush1.msra.mxu0 0.0
        %2744 = vmatprep.subr.mxu0 0.0
        %2745 = vmatpush1.msra.mxu0 0.0
        %2746 = vmatprep.subr.mxu0 0.0
        %2747 = vmatpush1.msra.mxu0 0.0
        %2748 = vmatprep.subr.mxu0 0.0
        %2749 = vmatpush1.msra.mxu0 0.0
        %2750 = vmatprep.subr.mxu0 0.0
        %2751 = vmatpush1.msra.mxu0 0.0
        %2752 = vmatprep.subr.mxu0 0.0
        %2753 = vmatpush1.msra.mxu0 0.0
        %2754 = vmatprep.subr.mxu0 0.0
        %2755 = vmatpush1.msra.mxu0 0.0
        %2756 = vmatprep.subr.mxu0 0.0
        %2757 = vmatpush1.msra.mxu0 0.0
        %2758 = vmatprep.subr.mxu0 0.0
        %2759 = vmatpush1.msra.mxu0 0.0
        %2760 = vmatprep.subr.mxu0 0.0
        %2761 = vmatpush1.msra.mxu0 0.0
        %2762 = vmatprep.mubr.f32.mxu0 0.0
        %2763 = vmatmul.mubr.f32.gmra.mrb[0].mxu0 %v2696
        %v2764 = vpop.f32.mrb[0].mxu0
        %v2765 = vadd.f32 0.0, %v2764
        %v2766 = vpop.f32.mrb[0].mxu0
        %2767 = vdwg.mxu0
        %v2768 = vadd.f32 %v2682, %v2765
        %v2769 = vld [vmem:[#allocation25] sm:$0x1]
        %v2771 = vlaneseq
        %v2772 = vshrl.u32 %v2771, 7
        %v2773 = vsub.s32 0, %v2772
        %v2774 = vrot.slane %v2769, %v2773
        %v2776 = vmul.f32 %v2768, %v2774
        %v2777 = vld [vmem:[#allocation27] sm:$0x1]
        %v2779 = vlaneseq
        %v2780 = vshrl.u32 %v2779, 7
        %v2781 = vsub.s32 0, %v2780
        %v2782 = vrot.slane %v2777, %v2781
        %v2784 = vadd.f32 %v2776, %v2782
        %v2785 = vadd.f32 %v2784, %v2262
        %v2786 = vmax.f32 %v2785, 0.0
        %2787 = vst.msk [vmem:[#allocation6 + $0x7] sm:$0x1] %vm2515, 0.0
        %2788 = vst.msk [vmem:[#allocation6 + $0x10] sm:$0x1] %vm2515, 0.0
        %2789 = vst.msk [vmem:[#allocation6 + $0x8] sm:$0xff] %vm2518, %v2786
        %s2790 = scalar_lea.vmem [#allocation6], 8
        %v2791 = vld [vmem:[%s2790] ss:$2 sm:$0xf]
        %v2792 = vld [vmem:[#allocation28] sm:$0xff]
        %v2793 = vld [vmem:[#allocation28 + $0x8] sm:$0xff]
        %v2794 = vld [vmem:[#allocation28 + $0x10] sm:$0xff]
        %v2795 = vld [vmem:[#allocation28 + $0x18] sm:$0xff]
        %v2796 = vld [vmem:[#allocation28 + $0x20] sm:$0xff]
        %v2797 = vld [vmem:[#allocation28 + $0x28] sm:$0xff]
        %v2798 = vld [vmem:[#allocation28 + $0x30] sm:$0xff]
        %v2799 = vld [vmem:[#allocation28 + $0x38] sm:$0xff]
        %v2801 = vsel %vm2518, %v2791, 0
        %2803 = vmatprep.subr.mxu0 0.0
        %2804 = vmatpush1.msra.mxu0 %v2792
        %2805 = vmatprep.subr.mxu0 0.0
        %2806 = vmatpush1.msra.mxu0 %v2793
        %2807 = vmatprep.subr.mxu0 0.0
        %2808 = vmatpush1.msra.mxu0 %v2794
        %2809 = vmatprep.subr.mxu0 0.0
        %2810 = vmatpush1.msra.mxu0 %v2795
        %2811 = vmatprep.subr.mxu0 0.0
        %2812 = vmatpush1.msra.mxu0 %v2796
        %2813 = vmatprep.subr.mxu0 0.0
        %2814 = vmatpush1.msra.mxu0 %v2797
        %2815 = vmatprep.subr.mxu0 0.0
        %2816 = vmatpush1.msra.mxu0 %v2798
        %2817 = vmatprep.subr.mxu0 0.0
        %2818 = vmatpush1.msra.mxu0 %v2799
        %2819 = vmatprep.subr.mxu0 0.0
        %2820 = vmatpush1.msra.mxu0 0.0
        %2821 = vmatprep.subr.mxu0 0.0
        %2822 = vmatpush1.msra.mxu0 0.0
        %2823 = vmatprep.subr.mxu0 0.0
        %2824 = vmatpush1.msra.mxu0 0.0
        %2825 = vmatprep.subr.mxu0 0.0
        %2826 = vmatpush1.msra.mxu0 0.0
        %2827 = vmatprep.subr.mxu0 0.0
        %2828 = vmatpush1.msra.mxu0 0.0
        %2829 = vmatprep.subr.mxu0 0.0
        %2830 = vmatpush1.msra.mxu0 0.0
        %2831 = vmatprep.subr.mxu0 0.0
        %2832 = vmatpush1.msra.mxu0 0.0
        %2833 = vmatprep.subr.mxu0 0.0
        %2834 = vmatpush1.msra.mxu0 0.0
        %2835 = vmatprep.subr.mxu0 0.0
        %2836 = vmatpush1.msra.mxu0 0.0
        %2837 = vmatprep.subr.mxu0 0.0
        %2838 = vmatpush1.msra.mxu0 0.0
        %2839 = vmatprep.subr.mxu0 0.0
        %2840 = vmatpush1.msra.mxu0 0.0
        %2841 = vmatprep.subr.mxu0 0.0
        %2842 = vmatpush1.msra.mxu0 0.0
        %2843 = vmatprep.subr.mxu0 0.0
        %2844 = vmatpush1.msra.mxu0 0.0
        %2845 = vmatprep.subr.mxu0 0.0
        %2846 = vmatpush1.msra.mxu0 0.0
        %2847 = vmatprep.subr.mxu0 0.0
        %2848 = vmatpush1.msra.mxu0 0.0
        %2849 = vmatprep.subr.mxu0 0.0
        %2850 = vmatpush1.msra.mxu0 0.0
        %2851 = vmatprep.subr.mxu0 0.0
        %2852 = vmatpush1.msra.mxu0 0.0
        %2853 = vmatprep.subr.mxu0 0.0
        %2854 = vmatpush1.msra.mxu0 0.0
        %2855 = vmatprep.subr.mxu0 0.0
        %2856 = vmatpush1.msra.mxu0 0.0
        %2857 = vmatprep.subr.mxu0 0.0
        %2858 = vmatpush1.msra.mxu0 0.0
        %2859 = vmatprep.subr.mxu0 0.0
        %2860 = vmatpush1.msra.mxu0 0.0
        %2861 = vmatprep.subr.mxu0 0.0
        %2862 = vmatpush1.msra.mxu0 0.0
        %2863 = vmatprep.subr.mxu0 0.0
        %2864 = vmatpush1.msra.mxu0 0.0
        %2865 = vmatprep.subr.mxu0 0.0
        %2866 = vmatpush1.msra.mxu0 0.0
        %2867 = vmatprep.mubr.f32.mxu0 0.0
        %2868 = vmatmul.mubr.f32.gmra.mrb[0].mxu0 %v2801
        %v2869 = vpop.f32.mrb[0].mxu0
        %v2870 = vadd.f32 0.0, %v2869
        %v2871 = vpop.f32.mrb[0].mxu0
        %2872 = vdwg.mxu0
        %v2873 = vld [vmem:[#allocation30] sm:$0x1]
        %v2875 = vlaneseq
        %v2876 = vshrl.u32 %v2875, 7
        %v2877 = vsub.s32 0, %v2876
        %v2878 = vrot.slane %v2873, %v2877
        %v2880 = vmul.f32 %v2870, %v2878
        %v2881 = vld [vmem:[#allocation31] sm:$0x1]
        %v2883 = vlaneseq
        %v2884 = vshrl.u32 %v2883, 7
        %v2885 = vsub.s32 0, %v2884
        %v2886 = vrot.slane %v2881, %v2885
        %v2888 = vadd.f32 %v2880, %v2886
        %s2889 = scalar_lea.vmem [#allocation6], 7
        %v2890 = vld [vmem:[%s2889] ss:$2 sm:$0xf]
        %v2891 = vld [vmem:[#allocation33] sm:$0xff]
        %v2892 = vld [vmem:[#allocation33 + $0x8] sm:$0xff]
        %v2893 = vld [vmem:[#allocation33 + $0x10] sm:$0xff]
        %v2894 = vld [vmem:[#allocation33 + $0x18] sm:$0xff]
        %v2895 = vld [vmem:[#allocation33 + $0x20] sm:$0xff]
        %v2896 = vld [vmem:[#allocation33 + $0x28] sm:$0xff]
        %v2897 = vld [vmem:[#allocation33 + $0x30] sm:$0xff]
        %v2898 = vld [vmem:[#allocation33 + $0x38] sm:$0xff]
        %s2899 = scalar_lea.vmem [#allocation33], 64
        %v2900 = vld [vmem:[%s2899] sm:$0xff]
        %v2901 = vld [vmem:[%s2899 + $0x8] sm:$0xff]
        %v2902 = vld [vmem:[%s2899 + $0x10] sm:$0xff]
        %v2903 = vld [vmem:[%s2899 + $0x18] sm:$0xff]
        %v2904 = vld [vmem:[%s2899 + $0x20] sm:$0xff]
        %v2905 = vld [vmem:[%s2899 + $0x28] sm:$0xff]
        %v2906 = vld [vmem:[%s2899 + $0x30] sm:$0xff]
        %v2907 = vld [vmem:[%s2899 + $0x38] sm:$0xff]
        %2908 = vmatprep.subr.mxu0 0.0
        %2909 = vmatpush1.msra.mxu0 %v2900
        %2910 = vmatprep.subr.mxu0 0.0
        %2911 = vmatpush1.msra.mxu0 %v2901
        %2912 = vmatprep.subr.mxu0 0.0
        %2913 = vmatpush1.msra.mxu0 %v2902
        %2914 = vmatprep.subr.mxu0 0.0
        %2915 = vmatpush1.msra.mxu0 %v2903
        %2916 = vmatprep.subr.mxu0 0.0
        %2917 = vmatpush1.msra.mxu0 %v2904
        %2918 = vmatprep.subr.mxu0 0.0
        %2919 = vmatpush1.msra.mxu0 %v2905
        %2920 = vmatprep.subr.mxu0 0.0
        %2921 = vmatpush1.msra.mxu0 %v2906
        %2922 = vmatprep.subr.mxu0 0.0
        %2923 = vmatpush1.msra.mxu0 %v2907
        %2924 = vmatprep.subr.mxu0 0.0
        %2925 = vmatpush1.msra.mxu0 0.0
        %2926 = vmatprep.subr.mxu0 0.0
        %2927 = vmatpush1.msra.mxu0 0.0
        %2928 = vmatprep.subr.mxu0 0.0
        %2929 = vmatpush1.msra.mxu0 0.0
        %2930 = vmatprep.subr.mxu0 0.0
        %2931 = vmatpush1.msra.mxu0 0.0
        %2932 = vmatprep.subr.mxu0 0.0
        %2933 = vmatpush1.msra.mxu0 0.0
        %2934 = vmatprep.subr.mxu0 0.0
        %2935 = vmatpush1.msra.mxu0 0.0
        %2936 = vmatprep.subr.mxu0 0.0
        %2937 = vmatpush1.msra.mxu0 0.0
        %2938 = vmatprep.subr.mxu0 0.0
        %2939 = vmatpush1.msra.mxu0 0.0
        %2940 = vmatprep.subr.mxu0 0.0
        %2941 = vmatpush1.msra.mxu0 0.0
        %2942 = vmatprep.subr.mxu0 0.0
        %2943 = vmatpush1.msra.mxu0 0.0
        %2944 = vmatprep.subr.mxu0 0.0
        %2945 = vmatpush1.msra.mxu0 0.0
        %2946 = vmatprep.subr.mxu0 0.0
        %2947 = vmatpush1.msra.mxu0 0.0
        %2948 = vmatprep.subr.mxu0 0.0
        %2949 = vmatpush1.msra.mxu0 0.0
        %2950 = vmatprep.subr.mxu0 0.0
        %2951 = vmatpush1.msra.mxu0 0.0
        %2952 = vmatprep.subr.mxu0 0.0
        %2953 = vmatpush1.msra.mxu0 0.0
        %2954 = vmatprep.subr.mxu0 0.0
        %2955 = vmatpush1.msra.mxu0 0.0
        %2956 = vmatprep.subr.mxu0 0.0
        %2957 = vmatpush1.msra.mxu0 0.0
        %2958 = vmatprep.subr.mxu0 0.0
        %2959 = vmatpush1.msra.mxu0 0.0
        %2960 = vmatprep.subr.mxu0 0.0
        %2961 = vmatpush1.msra.mxu0 0.0
        %2962 = vmatprep.subr.mxu0 0.0
        %2963 = vmatpush1.msra.mxu0 0.0
        %2964 = vmatprep.subr.mxu0 0.0
        %2965 = vmatpush1.msra.mxu0 0.0
        %2966 = vmatprep.subr.mxu0 0.0
        %2967 = vmatpush1.msra.mxu0 0.0
        %2968 = vmatprep.subr.mxu0 0.0
        %2969 = vmatpush1.msra.mxu0 0.0
        %2970 = vmatprep.subr.mxu0 0.0
        %2971 = vmatpush1.msra.mxu0 0.0
        %2972 = vmatprep.mubr.f32.mxu0 0.0
        %2973 = vmatmul.mubr.f32.gmra.mrb[0].mxu0 %v2801
        %v2974 = vpop.f32.mrb[0].mxu0
        %v2975 = vadd.f32 0.0, %v2974
        %v2976 = vpop.f32.mrb[0].mxu0
        %2977 = vdwg.mxu0
        %v2979 = vsel %vm2518, %v2890, 0
        %2981 = vmatprep.subr.mxu0 0.0
        %2982 = vmatpush1.msra.mxu0 %v2891
        %2983 = vmatprep.subr.mxu0 0.0
        %2984 = vmatpush1.msra.mxu0 %v2892
        %2985 = vmatprep.subr.mxu0 0.0
        %2986 = vmatpush1.msra.mxu0 %v2893
        %2987 = vmatprep.subr.mxu0 0.0
        %2988 = vmatpush1.msra.mxu0 %v2894
        %2989 = vmatprep.subr.mxu0 0.0
        %2990 = vmatpush1.msra.mxu0 %v2895
        %2991 = vmatprep.subr.mxu0 0.0
        %2992 = vmatpush1.msra.mxu0 %v2896
        %2993 = vmatprep.subr.mxu0 0.0
        %2994 = vmatpush1.msra.mxu0 %v2897
        %2995 = vmatprep.subr.mxu0 0.0
        %2996 = vmatpush1.msra.mxu0 %v2898
        %2997 = vmatprep.subr.mxu0 0.0
        %2998 = vmatpush1.msra.mxu0 0.0
        %2999 = vmatprep.subr.mxu0 0.0
        %3000 = vmatpush1.msra.mxu0 0.0
        %3001 = vmatprep.subr.mxu0 0.0
        %3002 = vmatpush1.msra.mxu0 0.0
        %3003 = vmatprep.subr.mxu0 0.0
        %3004 = vmatpush1.msra.mxu0 0.0
        %3005 = vmatprep.subr.mxu0 0.0
        %3006 = vmatpush1.msra.mxu0 0.0
        %3007 = vmatprep.subr.mxu0 0.0
        %3008 = vmatpush1.msra.mxu0 0.0
        %3009 = vmatprep.subr.mxu0 0.0
        %3010 = vmatpush1.msra.mxu0 0.0
        %3011 = vmatprep.subr.mxu0 0.0
        %3012 = vmatpush1.msra.mxu0 0.0
        %3013 = vmatprep.subr.mxu0 0.0
        %3014 = vmatpush1.msra.mxu0 0.0
        %3015 = vmatprep.subr.mxu0 0.0
        %3016 = vmatpush1.msra.mxu0 0.0
        %3017 = vmatprep.subr.mxu0 0.0
        %3018 = vmatpush1.msra.mxu0 0.0
        %3019 = vmatprep.subr.mxu0 0.0
        %3020 = vmatpush1.msra.mxu0 0.0
        %3021 = vmatprep.subr.mxu0 0.0
        %3022 = vmatpush1.msra.mxu0 0.0
        %3023 = vmatprep.subr.mxu0 0.0
        %3024 = vmatpush1.msra.mxu0 0.0
        %3025 = vmatprep.subr.mxu0 0.0
        %3026 = vmatpush1.msra.mxu0 0.0
        %3027 = vmatprep.subr.mxu0 0.0
        %3028 = vmatpush1.msra.mxu0 0.0
        %3029 = vmatprep.subr.mxu0 0.0
        %3030 = vmatpush1.msra.mxu0 0.0
        %3031 = vmatprep.subr.mxu0 0.0
        %3032 = vmatpush1.msra.mxu0 0.0
        %3033 = vmatprep.subr.mxu0 0.0
        %3034 = vmatpush1.msra.mxu0 0.0
        %3035 = vmatprep.subr.mxu0 0.0
        %3036 = vmatpush1.msra.mxu0 0.0
        %3037 = vmatprep.subr.mxu0 0.0
        %3038 = vmatpush1.msra.mxu0 0.0
        %3039 = vmatprep.subr.mxu0 0.0
        %3040 = vmatpush1.msra.mxu0 0.0
        %3041 = vmatprep.subr.mxu0 0.0
        %3042 = vmatpush1.msra.mxu0 0.0
        %3043 = vmatprep.subr.mxu0 0.0
        %3044 = vmatpush1.msra.mxu0 0.0
        %3045 = vmatprep.mubr.f32.mxu0 0.0
        %3046 = vmatmul.mubr.f32.gmra.mrb[0].mxu0 %v2979
        %v3047 = vpop.f32.mrb[0].mxu0
        %v3048 = vadd.f32 %v2975, %v3047
        %v3049 = vpop.f32.mrb[0].mxu0
        %3050 = vdwg.mxu0
        %s3051 = scalar_lea.vmem [#allocation6], 9
        %v3052 = vld [vmem:[%s3051] ss:$2 sm:$0xf]
        %s3053 = scalar_lea.vmem [#allocation33], 128
        %v3054 = vld [vmem:[%s3053] sm:$0xff]
        %v3055 = vld [vmem:[%s3053 + $0x8] sm:$0xff]
        %v3056 = vld [vmem:[%s3053 + $0x10] sm:$0xff]
        %v3057 = vld [vmem:[%s3053 + $0x18] sm:$0xff]
        %v3058 = vld [vmem:[%s3053 + $0x20] sm:$0xff]
        %v3059 = vld [vmem:[%s3053 + $0x28] sm:$0xff]
        %v3060 = vld [vmem:[%s3053 + $0x30] sm:$0xff]
        %v3061 = vld [vmem:[%s3053 + $0x38] sm:$0xff]
        %v3063 = vsel %vm2518, %v3052, 0
        %3065 = vmatprep.subr.mxu0 0.0
        %3066 = vmatpush1.msra.mxu0 %v3054
        %3067 = vmatprep.subr.mxu0 0.0
        %3068 = vmatpush1.msra.mxu0 %v3055
        %3069 = vmatprep.subr.mxu0 0.0
        %3070 = vmatpush1.msra.mxu0 %v3056
        %3071 = vmatprep.subr.mxu0 0.0
        %3072 = vmatpush1.msra.mxu0 %v3057
        %3073 = vmatprep.subr.mxu0 0.0
        %3074 = vmatpush1.msra.mxu0 %v3058
        %3075 = vmatprep.subr.mxu0 0.0
        %3076 = vmatpush1.msra.mxu0 %v3059
        %3077 = vmatprep.subr.mxu0 0.0
        %3078 = vmatpush1.msra.mxu0 %v3060
        %3079 = vmatprep.subr.mxu0 0.0
        %3080 = vmatpush1.msra.mxu0 %v3061
        %3081 = vmatprep.subr.mxu0 0.0
        %3082 = vmatpush1.msra.mxu0 0.0
        %3083 = vmatprep.subr.mxu0 0.0
        %3084 = vmatpush1.msra.mxu0 0.0
        %3085 = vmatprep.subr.mxu0 0.0
        %3086 = vmatpush1.msra.mxu0 0.0
        %3087 = vmatprep.subr.mxu0 0.0
        %3088 = vmatpush1.msra.mxu0 0.0
        %3089 = vmatprep.subr.mxu0 0.0
        %3090 = vmatpush1.msra.mxu0 0.0
        %3091 = vmatprep.subr.mxu0 0.0
        %3092 = vmatpush1.msra.mxu0 0.0
        %3093 = vmatprep.subr.mxu0 0.0
        %3094 = vmatpush1.msra.mxu0 0.0
        %3095 = vmatprep.subr.mxu0 0.0
        %3096 = vmatpush1.msra.mxu0 0.0
        %3097 = vmatprep.subr.mxu0 0.0
        %3098 = vmatpush1.msra.mxu0 0.0
        %3099 = vmatprep.subr.mxu0 0.0
        %3100 = vmatpush1.msra.mxu0 0.0
        %3101 = vmatprep.subr.mxu0 0.0
        %3102 = vmatpush1.msra.mxu0 0.0
        %3103 = vmatprep.subr.mxu0 0.0
        %3104 = vmatpush1.msra.mxu0 0.0
        %3105 = vmatprep.subr.mxu0 0.0
        %3106 = vmatpush1.msra.mxu0 0.0
        %3107 = vmatprep.subr.mxu0 0.0
        %3108 = vmatpush1.msra.mxu0 0.0
        %3109 = vmatprep.subr.mxu0 0.0
        %3110 = vmatpush1.msra.mxu0 0.0
        %3111 = vmatprep.subr.mxu0 0.0
        %3112 = vmatpush1.msra.mxu0 0.0
        %3113 = vmatprep.subr.mxu0 0.0
        %3114 = vmatpush1.msra.mxu0 0.0
        %3115 = vmatprep.subr.mxu0 0.0
        %3116 = vmatpush1.msra.mxu0 0.0
        %3117 = vmatprep.subr.mxu0 0.0
        %3118 = vmatpush1.msra.mxu0 0.0
        %3119 = vmatprep.subr.mxu0 0.0
        %3120 = vmatpush1.msra.mxu0 0.0
        %3121 = vmatprep.subr.mxu0 0.0
        %3122 = vmatpush1.msra.mxu0 0.0
        %3123 = vmatprep.subr.mxu0 0.0
        %3124 = vmatpush1.msra.mxu0 0.0
        %3125 = vmatprep.subr.mxu0 0.0
        %3126 = vmatpush1.msra.mxu0 0.0
        %3127 = vmatprep.subr.mxu0 0.0
        %3128 = vmatpush1.msra.mxu0 0.0
        %3129 = vmatprep.mubr.f32.mxu0 0.0
        %3130 = vmatmul.mubr.f32.gmra.mrb[0].mxu0 %v3063
        %v3131 = vpop.f32.mrb[0].mxu0
        %v3132 = vadd.f32 0.0, %v3131
        %v3133 = vpop.f32.mrb[0].mxu0
        %3134 = vdwg.mxu0
        %v3135 = vadd.f32 %v3048, %v3132
        %v3136 = vld [vmem:[#allocation34] sm:$0x1]
        %v3138 = vlaneseq
        %v3139 = vshrl.u32 %v3138, 7
        %v3140 = vsub.s32 0, %v3139
        %v3141 = vrot.slane %v3136, %v3140
        %v3143 = vmul.f32 %v3135, %v3141
        %v3144 = vld [vmem:[#allocation36] sm:$0x1]
        %v3146 = vlaneseq
        %v3147 = vshrl.u32 %v3146, 7
        %v3148 = vsub.s32 0, %v3147
        %v3149 = vrot.slane %v3144, %v3148
        %v3151 = vadd.f32 %v3143, %v3149
        %v3152 = vmax.f32 %v3151, 0.0
        %3153 = vst [vmem:[#allocation7 + $0x7] sm:$0x1] 0.0
        %3154 = vst [vmem:[#allocation7 + $0xc] sm:$0x1] 0.0
        %3155 = vst [vmem:[#allocation7 + $0x8] sm:$0xf] %v3152
        %v3156 = vld [vmem:[#allocation7 + $0x7] sm:$0xf]
        %v3157 = vld [vmem:[%s39] sm:$0xff]
        %v3158 = vld [vmem:[%s39 + $0x8] sm:$0xff]
        %v3159 = vld [vmem:[%s39 + $0x10] sm:$0xff]
        %v3160 = vld [vmem:[%s39 + $0x18] sm:$0xff]
        %v3161 = vld [vmem:[%s39 + $0x20] sm:$0xff]
        %v3162 = vld [vmem:[%s39 + $0x28] sm:$0xff]
        %v3163 = vld [vmem:[%s39 + $0x30] sm:$0xff]
        %v3164 = vld [vmem:[%s39 + $0x38] sm:$0xff]
        %v3165 = vld [vmem:[%s39 + $0x40] sm:$0xff]
        %v3166 = vld [vmem:[%s39 + $0x48] sm:$0xff]
        %v3167 = vld [vmem:[%s39 + $0x50] sm:$0xff]
        %v3168 = vld [vmem:[%s39 + $0x58] sm:$0xff]
        %v3169 = vld [vmem:[%s39 + $0x60] sm:$0xff]
        %v3170 = vld [vmem:[%s39 + $0x68] sm:$0xff]
        %v3171 = vld [vmem:[%s39 + $0x70] sm:$0xff]
        %v3172 = vld [vmem:[%s39 + $0x78] sm:$0xff]
        %v3173 = vld [vmem:[#allocation7 + $0x8] sm:$0xf]
        %s3174 = scalar_lea.vmem %s39, 128
        %v3175 = vld [vmem:[%s3174] sm:$0xff]
        %v3176 = vld [vmem:[%s3174 + $0x8] sm:$0xff]
        %v3177 = vld [vmem:[%s3174 + $0x10] sm:$0xff]
        %v3178 = vld [vmem:[%s3174 + $0x18] sm:$0xff]
        %v3179 = vld [vmem:[%s3174 + $0x20] sm:$0xff]
        %v3180 = vld [vmem:[%s3174 + $0x28] sm:$0xff]
        %v3181 = vld [vmem:[%s3174 + $0x30] sm:$0xff]
        %v3182 = vld [vmem:[%s3174 + $0x38] sm:$0xff]
        %v3183 = vld [vmem:[%s3174 + $0x40] sm:$0xff]
        %v3184 = vld [vmem:[%s3174 + $0x48] sm:$0xff]
        %v3185 = vld [vmem:[%s3174 + $0x50] sm:$0xff]
        %v3186 = vld [vmem:[%s3174 + $0x58] sm:$0xff]
        %v3187 = vld [vmem:[%s3174 + $0x60] sm:$0xff]
        %v3188 = vld [vmem:[%s3174 + $0x68] sm:$0xff]
        %v3189 = vld [vmem:[%s3174 + $0x70] sm:$0xff]
        %v3190 = vld [vmem:[%s3174 + $0x78] sm:$0xff]
        %3191 = vmatprep.subr.mxu0 0.0
        %3192 = vmatpush1.msra.mxu0 %v3175
        %3193 = vmatprep.subr.mxu0 0.0
        %3194 = vmatpush1.msra.mxu0 %v3176
        %3195 = vmatprep.subr.mxu0 0.0
        %3196 = vmatpush1.msra.mxu0 %v3177
        %3197 = vmatprep.subr.mxu0 0.0
        %3198 = vmatpush1.msra.mxu0 %v3178
        %3199 = vmatprep.subr.mxu0 0.0
        %3200 = vmatpush1.msra.mxu0 %v3179
        %3201 = vmatprep.subr.mxu0 0.0
        %3202 = vmatpush1.msra.mxu0 %v3180
        %3203 = vmatprep.subr.mxu0 0.0
        %3204 = vmatpush1.msra.mxu0 %v3181
        %3205 = vmatprep.subr.mxu0 0.0
        %3206 = vmatpush1.msra.mxu0 %v3182
        %3207 = vmatprep.subr.mxu0 0.0
        %3208 = vmatpush1.msra.mxu0 %v3183
        %3209 = vmatprep.subr.mxu0 0.0
        %3210 = vmatpush1.msra.mxu0 %v3184
        %3211 = vmatprep.subr.mxu0 0.0
        %3212 = vmatpush1.msra.mxu0 %v3185
        %3213 = vmatprep.subr.mxu0 0.0
        %3214 = vmatpush1.msra.mxu0 %v3186
        %3215 = vmatprep.subr.mxu0 0.0
        %3216 = vmatpush1.msra.mxu0 %v3187
        %3217 = vmatprep.subr.mxu0 0.0
        %3218 = vmatpush1.msra.mxu0 %v3188
        %3219 = vmatprep.subr.mxu0 0.0
        %3220 = vmatpush1.msra.mxu0 %v3189
        %3221 = vmatprep.subr.mxu0 0.0
        %3222 = vmatpush1.msra.mxu0 %v3190
        %3223 = vmatprep.subr.mxu0 0.0
        %3224 = vmatpush1.msra.mxu0 0.0
        %3225 = vmatprep.subr.mxu0 0.0
        %3226 = vmatpush1.msra.mxu0 0.0
        %3227 = vmatprep.subr.mxu0 0.0
        %3228 = vmatpush1.msra.mxu0 0.0
        %3229 = vmatprep.subr.mxu0 0.0
        %3230 = vmatpush1.msra.mxu0 0.0
        %3231 = vmatprep.subr.mxu0 0.0
        %3232 = vmatpush1.msra.mxu0 0.0
        %3233 = vmatprep.subr.mxu0 0.0
        %3234 = vmatpush1.msra.mxu0 0.0
        %3235 = vmatprep.subr.mxu0 0.0
        %3236 = vmatpush1.msra.mxu0 0.0
        %3237 = vmatprep.subr.mxu0 0.0
        %3238 = vmatpush1.msra.mxu0 0.0
        %3239 = vmatprep.subr.mxu0 0.0
        %3240 = vmatpush1.msra.mxu0 0.0
        %3241 = vmatprep.subr.mxu0 0.0
        %3242 = vmatpush1.msra.mxu0 0.0
        %3243 = vmatprep.subr.mxu0 0.0
        %3244 = vmatpush1.msra.mxu0 0.0
        %3245 = vmatprep.subr.mxu0 0.0
        %3246 = vmatpush1.msra.mxu0 0.0
        %3247 = vmatprep.subr.mxu0 0.0
        %3248 = vmatpush1.msra.mxu0 0.0
        %3249 = vmatprep.subr.mxu0 0.0
        %3250 = vmatpush1.msra.mxu0 0.0
        %3251 = vmatprep.subr.mxu0 0.0
        %3252 = vmatpush1.msra.mxu0 0.0
        %3253 = vmatprep.subr.mxu0 0.0
        %3254 = vmatpush1.msra.mxu0 0.0
        %3255 = vmatprep.mubr.f32.mxu0 0.0
        %3256 = vmatmul.mubr.f32.gmra.mrb[0].mxu0 %v3173
        %v3257 = vpop.f32.mrb[0].mxu0
        %v3258 = vadd.f32 0.0, %v3257
        %v3259 = vpop.f32.mrb[0].mxu0
        %3260 = vdwg.mxu0
        %3261 = vmatprep.subr.mxu0 0.0
        %3262 = vmatpush1.msra.mxu0 %v3157
        %3263 = vmatprep.subr.mxu0 0.0
        %3264 = vmatpush1.msra.mxu0 %v3158
        %3265 = vmatprep.subr.mxu0 0.0
        %3266 = vmatpush1.msra.mxu0 %v3159
        %3267 = vmatprep.subr.mxu0 0.0
        %3268 = vmatpush1.msra.mxu0 %v3160
        %3269 = vmatprep.subr.mxu0 0.0
        %3270 = vmatpush1.msra.mxu0 %v3161
        %3271 = vmatprep.subr.mxu0 0.0
        %3272 = vmatpush1.msra.mxu0 %v3162
        %3273 = vmatprep.subr.mxu0 0.0
        %3274 = vmatpush1.msra.mxu0 %v3163
        %3275 = vmatprep.subr.mxu0 0.0
        %3276 = vmatpush1.msra.mxu0 %v3164
        %3277 = vmatprep.subr.mxu0 0.0
        %3278 = vmatpush1.msra.mxu0 %v3165
        %3279 = vmatprep.subr.mxu0 0.0
        %3280 = vmatpush1.msra.mxu0 %v3166
        %3281 = vmatprep.subr.mxu0 0.0
        %3282 = vmatpush1.msra.mxu0 %v3167
        %3283 = vmatprep.subr.mxu0 0.0
        %3284 = vmatpush1.msra.mxu0 %v3168
        %3285 = vmatprep.subr.mxu0 0.0
        %3286 = vmatpush1.msra.mxu0 %v3169
        %3287 = vmatprep.subr.mxu0 0.0
        %3288 = vmatpush1.msra.mxu0 %v3170
        %3289 = vmatprep.subr.mxu0 0.0
        %3290 = vmatpush1.msra.mxu0 %v3171
        %3291 = vmatprep.subr.mxu0 0.0
        %3292 = vmatpush1.msra.mxu0 %v3172
        %3293 = vmatprep.subr.mxu0 0.0
        %3294 = vmatpush1.msra.mxu0 0.0
        %3295 = vmatprep.subr.mxu0 0.0
        %3296 = vmatpush1.msra.mxu0 0.0
        %3297 = vmatprep.subr.mxu0 0.0
        %3298 = vmatpush1.msra.mxu0 0.0
        %3299 = vmatprep.subr.mxu0 0.0
        %3300 = vmatpush1.msra.mxu0 0.0
        %3301 = vmatprep.subr.mxu0 0.0
        %3302 = vmatpush1.msra.mxu0 0.0
        %3303 = vmatprep.subr.mxu0 0.0
        %3304 = vmatpush1.msra.mxu0 0.0
        %3305 = vmatprep.subr.mxu0 0.0
        %3306 = vmatpush1.msra.mxu0 0.0
        %3307 = vmatprep.subr.mxu0 0.0
        %3308 = vmatpush1.msra.mxu0 0.0
        %3309 = vmatprep.subr.mxu0 0.0
        %3310 = vmatpush1.msra.mxu0 0.0
        %3311 = vmatprep.subr.mxu0 0.0
        %3312 = vmatpush1.msra.mxu0 0.0
        %3313 = vmatprep.subr.mxu0 0.0
        %3314 = vmatpush1.msra.mxu0 0.0
        %3315 = vmatprep.subr.mxu0 0.0
        %3316 = vmatpush1.msra.mxu0 0.0
        %3317 = vmatprep.subr.mxu0 0.0
        %3318 = vmatpush1.msra.mxu0 0.0
        %3319 = vmatprep.subr.mxu0 0.0
        %3320 = vmatpush1.msra.mxu0 0.0
        %3321 = vmatprep.subr.mxu0 0.0
        %3322 = vmatpush1.msra.mxu0 0.0
        %3323 = vmatprep.subr.mxu0 0.0
        %3324 = vmatpush1.msra.mxu0 0.0
        %3325 = vmatprep.mubr.f32.mxu0 0.0
        %3326 = vmatmul.mubr.f32.gmra.mrb[0].mxu0 %v3156
        %v3327 = vpop.f32.mrb[0].mxu0
        %v3328 = vadd.f32 %v3258, %v3327
        %v3329 = vpop.f32.mrb[0].mxu0
        %3330 = vdwg.mxu0
        %v3331 = vld [vmem:[#allocation7 + $0x9] sm:$0xf]
        %s3332 = scalar_lea.vmem %s39, 256
        %v3333 = vld [vmem:[%s3332] sm:$0xff]
        %v3334 = vld [vmem:[%s3332 + $0x8] sm:$0xff]
        %v3335 = vld [vmem:[%s3332 + $0x10] sm:$0xff]
        %v3336 = vld [vmem:[%s3332 + $0x18] sm:$0xff]
        %v3337 = vld [vmem:[%s3332 + $0x20] sm:$0xff]
        %v3338 = vld [vmem:[%s3332 + $0x28] sm:$0xff]
        %v3339 = vld [vmem:[%s3332 + $0x30] sm:$0xff]
        %v3340 = vld [vmem:[%s3332 + $0x38] sm:$0xff]
        %v3341 = vld [vmem:[%s3332 + $0x40] sm:$0xff]
        %v3342 = vld [vmem:[%s3332 + $0x48] sm:$0xff]
        %v3343 = vld [vmem:[%s3332 + $0x50] sm:$0xff]
        %v3344 = vld [vmem:[%s3332 + $0x58] sm:$0xff]
        %v3345 = vld [vmem:[%s3332 + $0x60] sm:$0xff]
        %v3346 = vld [vmem:[%s3332 + $0x68] sm:$0xff]
        %v3347 = vld [vmem:[%s3332 + $0x70] sm:$0xff]
        %v3348 = vld [vmem:[%s3332 + $0x78] sm:$0xff]
        %3349 = vmatprep.subr.mxu0 0.0
        %3350 = vmatpush1.msra.mxu0 %v3333
        %3351 = vmatprep.subr.mxu0 0.0
        %3352 = vmatpush1.msra.mxu0 %v3334
        %3353 = vmatprep.subr.mxu0 0.0
        %3354 = vmatpush1.msra.mxu0 %v3335
        %3355 = vmatprep.subr.mxu0 0.0
        %3356 = vmatpush1.msra.mxu0 %v3336
        %3357 = vmatprep.subr.mxu0 0.0
        %3358 = vmatpush1.msra.mxu0 %v3337
        %3359 = vmatprep.subr.mxu0 0.0
        %3360 = vmatpush1.msra.mxu0 %v3338
        %3361 = vmatprep.subr.mxu0 0.0
        %3362 = vmatpush1.msra.mxu0 %v3339
        %3363 = vmatprep.subr.mxu0 0.0
        %3364 = vmatpush1.msra.mxu0 %v3340
        %3365 = vmatprep.subr.mxu0 0.0
        %3366 = vmatpush1.msra.mxu0 %v3341
        %3367 = vmatprep.subr.mxu0 0.0
        %3368 = vmatpush1.msra.mxu0 %v3342
        %3369 = vmatprep.subr.mxu0 0.0
        %3370 = vmatpush1.msra.mxu0 %v3343
        %3371 = vmatprep.subr.mxu0 0.0
        %3372 = vmatpush1.msra.mxu0 %v3344
        %3373 = vmatprep.subr.mxu0 0.0
        %3374 = vmatpush1.msra.mxu0 %v3345
        %3375 = vmatprep.subr.mxu0 0.0
        %3376 = vmatpush1.msra.mxu0 %v3346
        %3377 = vmatprep.subr.mxu0 0.0
        %3378 = vmatpush1.msra.mxu0 %v3347
        %3379 = vmatprep.subr.mxu0 0.0
        %3380 = vmatpush1.msra.mxu0 %v3348
        %3381 = vmatprep.subr.mxu0 0.0
        %3382 = vmatpush1.msra.mxu0 0.0
        %3383 = vmatprep.subr.mxu0 0.0
        %3384 = vmatpush1.msra.mxu0 0.0
        %3385 = vmatprep.subr.mxu0 0.0
        %3386 = vmatpush1.msra.mxu0 0.0
        %3387 = vmatprep.subr.mxu0 0.0
        %3388 = vmatpush1.msra.mxu0 0.0
        %3389 = vmatprep.subr.mxu0 0.0
        %3390 = vmatpush1.msra.mxu0 0.0
        %3391 = vmatprep.subr.mxu0 0.0
        %3392 = vmatpush1.msra.mxu0 0.0
        %3393 = vmatprep.subr.mxu0 0.0
        %3394 = vmatpush1.msra.mxu0 0.0
        %3395 = vmatprep.subr.mxu0 0.0
        %3396 = vmatpush1.msra.mxu0 0.0
        %3397 = vmatprep.subr.mxu0 0.0
        %3398 = vmatpush1.msra.mxu0 0.0
        %3399 = vmatprep.subr.mxu0 0.0
        %3400 = vmatpush1.msra.mxu0 0.0
        %3401 = vmatprep.subr.mxu0 0.0
        %3402 = vmatpush1.msra.mxu0 0.0
        %3403 = vmatprep.subr.mxu0 0.0
        %3404 = vmatpush1.msra.mxu0 0.0
        %3405 = vmatprep.subr.mxu0 0.0
        %3406 = vmatpush1.msra.mxu0 0.0
        %3407 = vmatprep.subr.mxu0 0.0
        %3408 = vmatpush1.msra.mxu0 0.0
        %3409 = vmatprep.subr.mxu0 0.0
        %3410 = vmatpush1.msra.mxu0 0.0
        %3411 = vmatprep.subr.mxu0 0.0
        %3412 = vmatpush1.msra.mxu0 0.0
        %3413 = vmatprep.mubr.f32.mxu0 0.0
        %3414 = vmatmul.mubr.f32.gmra.mrb[0].mxu0 %v3331
        %v3415 = vpop.f32.mrb[0].mxu0
        %v3416 = vadd.f32 0.0, %v3415
        %v3417 = vpop.f32.mrb[0].mxu0
        %3418 = vdwg.mxu0
        %v3419 = vadd.f32 %v3328, %v3416
        %v3420 = vld [vmem:[#allocation37] sm:$0x1]
        %v3422 = vlaneseq
        %v3423 = vshrl.u32 %v3422, 7
        %v3424 = vsub.s32 0, %v3423
        %v3425 = vrot.slane %v3420, %v3424
        %v3427 = vmul.f32 %v3419, %v3425
        %v3428 = vld [vmem:[#allocation39] sm:$0x1]
        %v3430 = vlaneseq
        %v3431 = vshrl.u32 %v3430, 7
        %v3432 = vsub.s32 0, %v3431
        %v3433 = vrot.slane %v3428, %v3432
        %v3435 = vadd.f32 %v3427, %v3433
        %v3436 = vadd.f32 %v3435, %v2888
        %v3437 = vmax.f32 %v3436, 0.0
        %3438 = vst [vmem:[#allocation8 + $0x7] sm:$0x1] 0.0
        %3439 = vst [vmem:[#allocation8 + $0xc] sm:$0x1] 0.0
        %3440 = vst [vmem:[#allocation8 + $0x8] sm:$0xf] %v3437
        %s3441 = scalar_lea.vmem [#allocation8], 8
        %v3442 = vld [vmem:[%s3441] ss:$2 sm:$0x3]
        %v3443 = vld [vmem:[#allocation40] sm:$0xff]
        %v3444 = vld [vmem:[#allocation40 + $0x8] sm:$0xff]
        %v3445 = vld [vmem:[#allocation40 + $0x10] sm:$0xff]
        %v3446 = vld [vmem:[#allocation40 + $0x18] sm:$0xff]
        %v3447 = vld [vmem:[#allocation40 + $0x20] sm:$0xff]
        %v3448 = vld [vmem:[#allocation40 + $0x28] sm:$0xff]
        %v3449 = vld [vmem:[#allocation40 + $0x30] sm:$0xff]
        %v3450 = vld [vmem:[#allocation40 + $0x38] sm:$0xff]
        %v3451 = vld [vmem:[#allocation40 + $0x40] sm:$0xff]
        %v3452 = vld [vmem:[#allocation40 + $0x48] sm:$0xff]
        %v3453 = vld [vmem:[#allocation40 + $0x50] sm:$0xff]
        %v3454 = vld [vmem:[#allocation40 + $0x58] sm:$0xff]
        %v3455 = vld [vmem:[#allocation40 + $0x60] sm:$0xff]
        %v3456 = vld [vmem:[#allocation40 + $0x68] sm:$0xff]
        %v3457 = vld [vmem:[#allocation40 + $0x70] sm:$0xff]
        %v3458 = vld [vmem:[#allocation40 + $0x78] sm:$0xff]
        %v3459 = vld [vmem:[#allocation40 + $0x80] sm:$0xff]
        %v3460 = vld [vmem:[#allocation40 + $0x88] sm:$0xff]
        %v3461 = vld [vmem:[#allocation40 + $0x90] sm:$0xff]
        %v3462 = vld [vmem:[#allocation40 + $0x98] sm:$0xff]
        %v3463 = vld [vmem:[#allocation40 + $0xa0] sm:$0xff]
        %v3464 = vld [vmem:[#allocation40 + $0xa8] sm:$0xff]
        %v3465 = vld [vmem:[#allocation40 + $0xb0] sm:$0xff]
        %v3466 = vld [vmem:[#allocation40 + $0xb8] sm:$0xff]
        %v3467 = vld [vmem:[#allocation40 + $0xc0] sm:$0xff]
        %v3468 = vld [vmem:[#allocation40 + $0xc8] sm:$0xff]
        %v3469 = vld [vmem:[#allocation40 + $0xd0] sm:$0xff]
        %v3470 = vld [vmem:[#allocation40 + $0xd8] sm:$0xff]
        %v3471 = vld [vmem:[#allocation40 + $0xe0] sm:$0xff]
        %v3472 = vld [vmem:[#allocation40 + $0xe8] sm:$0xff]
        %v3473 = vld [vmem:[#allocation40 + $0xf0] sm:$0xff]
        %v3474 = vld [vmem:[#allocation40 + $0xf8] sm:$0xff]
        %3475 = vmatprep.subr.mxu0 %v3444
        %3476 = vmatpush1.msra.mxu0 %v3443
        %3477 = vmatprep.subr.mxu0 %v3446
        %3478 = vmatpush1.msra.mxu0 %v3445
        %3479 = vmatprep.subr.mxu0 %v3448
        %3480 = vmatpush1.msra.mxu0 %v3447
        %3481 = vmatprep.subr.mxu0 %v3450
        %3482 = vmatpush1.msra.mxu0 %v3449
        %3483 = vmatprep.subr.mxu0 %v3452
        %3484 = vmatpush1.msra.mxu0 %v3451
        %3485 = vmatprep.subr.mxu0 %v3454
        %3486 = vmatpush1.msra.mxu0 %v3453
        %3487 = vmatprep.subr.mxu0 %v3456
        %3488 = vmatpush1.msra.mxu0 %v3455
        %3489 = vmatprep.subr.mxu0 %v3458
        %3490 = vmatpush1.msra.mxu0 %v3457
        %3491 = vmatprep.subr.mxu0 %v3460
        %3492 = vmatpush1.msra.mxu0 %v3459
        %3493 = vmatprep.subr.mxu0 %v3462
        %3494 = vmatpush1.msra.mxu0 %v3461
        %3495 = vmatprep.subr.mxu0 %v3464
        %3496 = vmatpush1.msra.mxu0 %v3463
        %3497 = vmatprep.subr.mxu0 %v3466
        %3498 = vmatpush1.msra.mxu0 %v3465
        %3499 = vmatprep.subr.mxu0 %v3468
        %3500 = vmatpush1.msra.mxu0 %v3467
        %3501 = vmatprep.subr.mxu0 %v3470
        %3502 = vmatpush1.msra.mxu0 %v3469
        %3503 = vmatprep.subr.mxu0 %v3472
        %3504 = vmatpush1.msra.mxu0 %v3471
        %3505 = vmatprep.subr.mxu0 %v3474
        %3506 = vmatpush1.msra.mxu0 %v3473
        %3507 = vmatprep.subr.mxu0 0.0
        %3508 = vmatpush1.msra.mxu0 0.0
        %3509 = vmatprep.subr.mxu0 0.0
        %3510 = vmatpush1.msra.mxu0 0.0
        %3511 = vmatprep.subr.mxu0 0.0
        %3512 = vmatpush1.msra.mxu0 0.0
        %3513 = vmatprep.subr.mxu0 0.0
        %3514 = vmatpush1.msra.mxu0 0.0
        %3515 = vmatprep.subr.mxu0 0.0
        %3516 = vmatpush1.msra.mxu0 0.0
        %3517 = vmatprep.subr.mxu0 0.0
        %3518 = vmatpush1.msra.mxu0 0.0
        %3519 = vmatprep.subr.mxu0 0.0
        %3520 = vmatpush1.msra.mxu0 0.0
        %3521 = vmatprep.subr.mxu0 0.0
        %3522 = vmatpush1.msra.mxu0 0.0
        %3523 = vmatprep.subr.mxu0 0.0
        %3524 = vmatpush1.msra.mxu0 0.0
        %3525 = vmatprep.subr.mxu0 0.0
        %3526 = vmatpush1.msra.mxu0 0.0
        %3527 = vmatprep.subr.mxu0 0.0
        %3528 = vmatpush1.msra.mxu0 0.0
        %3529 = vmatprep.subr.mxu0 0.0
        %3530 = vmatpush1.msra.mxu0 0.0
        %3531 = vmatprep.subr.mxu0 0.0
        %3532 = vmatpush1.msra.mxu0 0.0
        %3533 = vmatprep.subr.mxu0 0.0
        %3534 = vmatpush1.msra.mxu0 0.0
        %3535 = vmatprep.subr.mxu0 0.0
        %3536 = vmatpush1.msra.mxu0 0.0
        %3537 = vmatprep.subr.mxu0 0.0
        %3538 = vmatpush1.msra.mxu0 0.0
        %3539 = vmatprep.mubr.f32.mxu0 0.0
        %3540 = vmatmul.mubr.f32.gmra.mrb[0].mxu0 %v3442
        %v3541 = vpop.f32.mrb[0].mxu0
        %v3542 = vadd.f32 0.0, %v3541
        %v3543 = vpop.f32.mrb[0].mxu0
        %v3544 = vadd.f32 0.0, %v3543
        %3545 = vdwg.mxu0
        %v3546 = vld [vmem:[%s47] sm:$0x3]
        %v3548 = vlaneseq
        %v3549 = vshrl.u32 %v3548, 7
        %v3550 = vsub.s32 0, %v3549
        %v3551 = vrot.slane %v3546, %v3550
        %v3552 = vlaneseq
        %v3553 = vshrl.u32 %v3552, 7
        %v3554 = vsub.s32 1, %v3553
        %v3555 = vrot.slane %v3546, %v3554
        %v3558 = vmul.f32 %v3542, %v3551
        %v3559 = vmul.f32 %v3544, %v3555
        %v3560 = vld [vmem:[%s49] sm:$0x3]
        %v3562 = vlaneseq
        %v3563 = vshrl.u32 %v3562, 7
        %v3564 = vsub.s32 0, %v3563
        %v3565 = vrot.slane %v3560, %v3564
        %v3566 = vlaneseq
        %v3567 = vshrl.u32 %v3566, 7
        %v3568 = vsub.s32 1, %v3567
        %v3569 = vrot.slane %v3560, %v3568
        %v3572 = vadd.f32 %v3558, %v3565
        %v3573 = vadd.f32 %v3559, %v3569
        %s3574 = scalar_lea.vmem [#allocation8], 7
        %v3575 = vld [vmem:[%s3574] ss:$2 sm:$0x3]
        %v3576 = vld [vmem:[#allocation42] sm:$0xff]
        %v3577 = vld [vmem:[#allocation42 + $0x8] sm:$0xff]
        %v3578 = vld [vmem:[#allocation42 + $0x10] sm:$0xff]
        %v3579 = vld [vmem:[#allocation42 + $0x18] sm:$0xff]
        %v3580 = vld [vmem:[#allocation42 + $0x20] sm:$0xff]
        %v3581 = vld [vmem:[#allocation42 + $0x28] sm:$0xff]
        %v3582 = vld [vmem:[#allocation42 + $0x30] sm:$0xff]
        %v3583 = vld [vmem:[#allocation42 + $0x38] sm:$0xff]
        %v3584 = vld [vmem:[#allocation42 + $0x40] sm:$0xff]
        %v3585 = vld [vmem:[#allocation42 + $0x48] sm:$0xff]
        %v3586 = vld [vmem:[#allocation42 + $0x50] sm:$0xff]
        %v3587 = vld [vmem:[#allocation42 + $0x58] sm:$0xff]
        %v3588 = vld [vmem:[#allocation42 + $0x60] sm:$0xff]
        %v3589 = vld [vmem:[#allocation42 + $0x68] sm:$0xff]
        %v3590 = vld [vmem:[#allocation42 + $0x70] sm:$0xff]
        %v3591 = vld [vmem:[#allocation42 + $0x78] sm:$0xff]
        %v3592 = vld [vmem:[#allocation42 + $0x80] sm:$0xff]
        %v3593 = vld [vmem:[#allocation42 + $0x88] sm:$0xff]
        %v3594 = vld [vmem:[#allocation42 + $0x90] sm:$0xff]
        %v3595 = vld [vmem:[#allocation42 + $0x98] sm:$0xff]
        %v3596 = vld [vmem:[#allocation42 + $0xa0] sm:$0xff]
        %v3597 = vld [vmem:[#allocation42 + $0xa8] sm:$0xff]
        %v3598 = vld [vmem:[#allocation42 + $0xb0] sm:$0xff]
        %v3599 = vld [vmem:[#allocation42 + $0xb8] sm:$0xff]
        %v3600 = vld [vmem:[#allocation42 + $0xc0] sm:$0xff]
        %v3601 = vld [vmem:[#allocation42 + $0xc8] sm:$0xff]
        %v3602 = vld [vmem:[#allocation42 + $0xd0] sm:$0xff]
        %v3603 = vld [vmem:[#allocation42 + $0xd8] sm:$0xff]
        %v3604 = vld [vmem:[#allocation42 + $0xe0] sm:$0xff]
        %v3605 = vld [vmem:[#allocation42 + $0xe8] sm:$0xff]
        %v3606 = vld [vmem:[#allocation42 + $0xf0] sm:$0xff]
        %v3607 = vld [vmem:[#allocation42 + $0xf8] sm:$0xff]
        %s3608 = scalar_lea.vmem [#allocation42], 256
        %v3609 = vld [vmem:[%s3608] sm:$0xff]
        %v3610 = vld [vmem:[%s3608 + $0x8] sm:$0xff]
        %v3611 = vld [vmem:[%s3608 + $0x10] sm:$0xff]
        %v3612 = vld [vmem:[%s3608 + $0x18] sm:$0xff]
        %v3613 = vld [vmem:[%s3608 + $0x20] sm:$0xff]
        %v3614 = vld [vmem:[%s3608 + $0x28] sm:$0xff]
        %v3615 = vld [vmem:[%s3608 + $0x30] sm:$0xff]
        %v3616 = vld [vmem:[%s3608 + $0x38] sm:$0xff]
        %v3617 = vld [vmem:[%s3608 + $0x40] sm:$0xff]
        %v3618 = vld [vmem:[%s3608 + $0x48] sm:$0xff]
        %v3619 = vld [vmem:[%s3608 + $0x50] sm:$0xff]
        %v3620 = vld [vmem:[%s3608 + $0x58] sm:$0xff]
        %v3621 = vld [vmem:[%s3608 + $0x60] sm:$0xff]
        %v3622 = vld [vmem:[%s3608 + $0x68] sm:$0xff]
        %v3623 = vld [vmem:[%s3608 + $0x70] sm:$0xff]
        %v3624 = vld [vmem:[%s3608 + $0x78] sm:$0xff]
        %v3625 = vld [vmem:[%s3608 + $0x80] sm:$0xff]
        %v3626 = vld [vmem:[%s3608 + $0x88] sm:$0xff]
        %v3627 = vld [vmem:[%s3608 + $0x90] sm:$0xff]
        %v3628 = vld [vmem:[%s3608 + $0x98] sm:$0xff]
        %v3629 = vld [vmem:[%s3608 + $0xa0] sm:$0xff]
        %v3630 = vld [vmem:[%s3608 + $0xa8] sm:$0xff]
        %v3631 = vld [vmem:[%s3608 + $0xb0] sm:$0xff]
        %v3632 = vld [vmem:[%s3608 + $0xb8] sm:$0xff]
        %v3633 = vld [vmem:[%s3608 + $0xc0] sm:$0xff]
        %v3634 = vld [vmem:[%s3608 + $0xc8] sm:$0xff]
        %v3635 = vld [vmem:[%s3608 + $0xd0] sm:$0xff]
        %v3636 = vld [vmem:[%s3608 + $0xd8] sm:$0xff]
        %v3637 = vld [vmem:[%s3608 + $0xe0] sm:$0xff]
        %v3638 = vld [vmem:[%s3608 + $0xe8] sm:$0xff]
        %v3639 = vld [vmem:[%s3608 + $0xf0] sm:$0xff]
        %v3640 = vld [vmem:[%s3608 + $0xf8] sm:$0xff]
        %3641 = vmatprep.subr.mxu0 %v3610
        %3642 = vmatpush1.msra.mxu0 %v3609
        %3643 = vmatprep.subr.mxu0 %v3612
        %3644 = vmatpush1.msra.mxu0 %v3611
        %3645 = vmatprep.subr.mxu0 %v3614
        %3646 = vmatpush1.msra.mxu0 %v3613
        %3647 = vmatprep.subr.mxu0 %v3616
        %3648 = vmatpush1.msra.mxu0 %v3615
        %3649 = vmatprep.subr.mxu0 %v3618
        %3650 = vmatpush1.msra.mxu0 %v3617
        %3651 = vmatprep.subr.mxu0 %v3620
        %3652 = vmatpush1.msra.mxu0 %v3619
        %3653 = vmatprep.subr.mxu0 %v3622
        %3654 = vmatpush1.msra.mxu0 %v3621
        %3655 = vmatprep.subr.mxu0 %v3624
        %3656 = vmatpush1.msra.mxu0 %v3623
        %3657 = vmatprep.subr.mxu0 %v3626
        %3658 = vmatpush1.msra.mxu0 %v3625
        %3659 = vmatprep.subr.mxu0 %v3628
        %3660 = vmatpush1.msra.mxu0 %v3627
        %3661 = vmatprep.subr.mxu0 %v3630
        %3662 = vmatpush1.msra.mxu0 %v3629
        %3663 = vmatprep.subr.mxu0 %v3632
        %3664 = vmatpush1.msra.mxu0 %v3631
        %3665 = vmatprep.subr.mxu0 %v3634
        %3666 = vmatpush1.msra.mxu0 %v3633
        %3667 = vmatprep.subr.mxu0 %v3636
        %3668 = vmatpush1.msra.mxu0 %v3635
        %3669 = vmatprep.subr.mxu0 %v3638
        %3670 = vmatpush1.msra.mxu0 %v3637
        %3671 = vmatprep.subr.mxu0 %v3640
        %3672 = vmatpush1.msra.mxu0 %v3639
        %3673 = vmatprep.subr.mxu0 0.0
        %3674 = vmatpush1.msra.mxu0 0.0
        %3675 = vmatprep.subr.mxu0 0.0
        %3676 = vmatpush1.msra.mxu0 0.0
        %3677 = vmatprep.subr.mxu0 0.0
        %3678 = vmatpush1.msra.mxu0 0.0
        %3679 = vmatprep.subr.mxu0 0.0
        %3680 = vmatpush1.msra.mxu0 0.0
        %3681 = vmatprep.subr.mxu0 0.0
        %3682 = vmatpush1.msra.mxu0 0.0
        %3683 = vmatprep.subr.mxu0 0.0
        %3684 = vmatpush1.msra.mxu0 0.0
        %3685 = vmatprep.subr.mxu0 0.0
        %3686 = vmatpush1.msra.mxu0 0.0
        %3687 = vmatprep.subr.mxu0 0.0
        %3688 = vmatpush1.msra.mxu0 0.0
        %3689 = vmatprep.subr.mxu0 0.0
        %3690 = vmatpush1.msra.mxu0 0.0
        %3691 = vmatprep.subr.mxu0 0.0
        %3692 = vmatpush1.msra.mxu0 0.0
        %3693 = vmatprep.subr.mxu0 0.0
        %3694 = vmatpush1.msra.mxu0 0.0
        %3695 = vmatprep.subr.mxu0 0.0
        %3696 = vmatpush1.msra.mxu0 0.0
        %3697 = vmatprep.subr.mxu0 0.0
        %3698 = vmatpush1.msra.mxu0 0.0
        %3699 = vmatprep.subr.mxu0 0.0
        %3700 = vmatpush1.msra.mxu0 0.0
        %3701 = vmatprep.subr.mxu0 0.0
        %3702 = vmatpush1.msra.mxu0 0.0
        %3703 = vmatprep.subr.mxu0 0.0
        %3704 = vmatpush1.msra.mxu0 0.0
        %3705 = vmatprep.mubr.f32.mxu0 0.0
        %3706 = vmatmul.mubr.f32.gmra.mrb[0].mxu0 %v3442
        %v3707 = vpop.f32.mrb[0].mxu0
        %v3708 = vadd.f32 0.0, %v3707
        %v3709 = vpop.f32.mrb[0].mxu0
        %v3710 = vadd.f32 0.0, %v3709
        %3711 = vdwg.mxu0
        %3712 = vmatprep.subr.mxu0 %v3577
        %3713 = vmatpush1.msra.mxu0 %v3576
        %3714 = vmatprep.subr.mxu0 %v3579
        %3715 = vmatpush1.msra.mxu0 %v3578
        %3716 = vmatprep.subr.mxu0 %v3581
        %3717 = vmatpush1.msra.mxu0 %v3580
        %3718 = vmatprep.subr.mxu0 %v3583
        %3719 = vmatpush1.msra.mxu0 %v3582
        %3720 = vmatprep.subr.mxu0 %v3585
        %3721 = vmatpush1.msra.mxu0 %v3584
        %3722 = vmatprep.subr.mxu0 %v3587
        %3723 = vmatpush1.msra.mxu0 %v3586
        %3724 = vmatprep.subr.mxu0 %v3589
        %3725 = vmatpush1.msra.mxu0 %v3588
        %3726 = vmatprep.subr.mxu0 %v3591
        %3727 = vmatpush1.msra.mxu0 %v3590
        %3728 = vmatprep.subr.mxu0 %v3593
        %3729 = vmatpush1.msra.mxu0 %v3592
        %3730 = vmatprep.subr.mxu0 %v3595
        %3731 = vmatpush1.msra.mxu0 %v3594
        %3732 = vmatprep.subr.mxu0 %v3597
        %3733 = vmatpush1.msra.mxu0 %v3596
        %3734 = vmatprep.subr.mxu0 %v3599
        %3735 = vmatpush1.msra.mxu0 %v3598
        %3736 = vmatprep.subr.mxu0 %v3601
        %3737 = vmatpush1.msra.mxu0 %v3600
        %3738 = vmatprep.subr.mxu0 %v3603
        %3739 = vmatpush1.msra.mxu0 %v3602
        %3740 = vmatprep.subr.mxu0 %v3605
        %3741 = vmatpush1.msra.mxu0 %v3604
        %3742 = vmatprep.subr.mxu0 %v3607
        %3743 = vmatpush1.msra.mxu0 %v3606
        %3744 = vmatprep.subr.mxu0 0.0
        %3745 = vmatpush1.msra.mxu0 0.0
        %3746 = vmatprep.subr.mxu0 0.0
        %3747 = vmatpush1.msra.mxu0 0.0
        %3748 = vmatprep.subr.mxu0 0.0
        %3749 = vmatpush1.msra.mxu0 0.0
        %3750 = vmatprep.subr.mxu0 0.0
        %3751 = vmatpush1.msra.mxu0 0.0
        %3752 = vmatprep.subr.mxu0 0.0
        %3753 = vmatpush1.msra.mxu0 0.0
        %3754 = vmatprep.subr.mxu0 0.0
        %3755 = vmatpush1.msra.mxu0 0.0
        %3756 = vmatprep.subr.mxu0 0.0
        %3757 = vmatpush1.msra.mxu0 0.0
        %3758 = vmatprep.subr.mxu0 0.0
        %3759 = vmatpush1.msra.mxu0 0.0
        %3760 = vmatprep.subr.mxu0 0.0
        %3761 = vmatpush1.msra.mxu0 0.0
        %3762 = vmatprep.subr.mxu0 0.0
        %3763 = vmatpush1.msra.mxu0 0.0
        %3764 = vmatprep.subr.mxu0 0.0
        %3765 = vmatpush1.msra.mxu0 0.0
        %3766 = vmatprep.subr.mxu0 0.0
        %3767 = vmatpush1.msra.mxu0 0.0
        %3768 = vmatprep.subr.mxu0 0.0
        %3769 = vmatpush1.msra.mxu0 0.0
        %3770 = vmatprep.subr.mxu0 0.0
        %3771 = vmatpush1.msra.mxu0 0.0
        %3772 = vmatprep.subr.mxu0 0.0
        %3773 = vmatpush1.msra.mxu0 0.0
        %3774 = vmatprep.subr.mxu0 0.0
        %3775 = vmatpush1.msra.mxu0 0.0
        %3776 = vmatprep.mubr.f32.mxu0 0.0
        %3777 = vmatmul.mubr.f32.gmra.mrb[0].mxu0 %v3575
        %v3778 = vpop.f32.mrb[0].mxu0
        %v3779 = vadd.f32 %v3708, %v3778
        %v3780 = vpop.f32.mrb[0].mxu0
        %v3781 = vadd.f32 %v3710, %v3780
        %3782 = vdwg.mxu0
        %s3783 = scalar_lea.vmem [#allocation8], 9
        %v3784 = vld [vmem:[%s3783] ss:$2 sm:$0x3]
        %s3785 = scalar_lea.vmem [#allocation42], 512
        %v3786 = vld [vmem:[%s3785] sm:$0xff]
        %v3787 = vld [vmem:[%s3785 + $0x8] sm:$0xff]
        %v3788 = vld [vmem:[%s3785 + $0x10] sm:$0xff]
        %v3789 = vld [vmem:[%s3785 + $0x18] sm:$0xff]
        %v3790 = vld [vmem:[%s3785 + $0x20] sm:$0xff]
        %v3791 = vld [vmem:[%s3785 + $0x28] sm:$0xff]
        %v3792 = vld [vmem:[%s3785 + $0x30] sm:$0xff]
        %v3793 = vld [vmem:[%s3785 + $0x38] sm:$0xff]
        %v3794 = vld [vmem:[%s3785 + $0x40] sm:$0xff]
        %v3795 = vld [vmem:[%s3785 + $0x48] sm:$0xff]
        %v3796 = vld [vmem:[%s3785 + $0x50] sm:$0xff]
        %v3797 = vld [vmem:[%s3785 + $0x58] sm:$0xff]
        %v3798 = vld [vmem:[%s3785 + $0x60] sm:$0xff]
        %v3799 = vld [vmem:[%s3785 + $0x68] sm:$0xff]
        %v3800 = vld [vmem:[%s3785 + $0x70] sm:$0xff]
        %v3801 = vld [vmem:[%s3785 + $0x78] sm:$0xff]
        %v3802 = vld [vmem:[%s3785 + $0x80] sm:$0xff]
        %v3803 = vld [vmem:[%s3785 + $0x88] sm:$0xff]
        %v3804 = vld [vmem:[%s3785 + $0x90] sm:$0xff]
        %v3805 = vld [vmem:[%s3785 + $0x98] sm:$0xff]
        %v3806 = vld [vmem:[%s3785 + $0xa0] sm:$0xff]
        %v3807 = vld [vmem:[%s3785 + $0xa8] sm:$0xff]
        %v3808 = vld [vmem:[%s3785 + $0xb0] sm:$0xff]
        %v3809 = vld [vmem:[%s3785 + $0xb8] sm:$0xff]
        %v3810 = vld [vmem:[%s3785 + $0xc0] sm:$0xff]
        %v3811 = vld [vmem:[%s3785 + $0xc8] sm:$0xff]
        %v3812 = vld [vmem:[%s3785 + $0xd0] sm:$0xff]
        %v3813 = vld [vmem:[%s3785 + $0xd8] sm:$0xff]
        %v3814 = vld [vmem:[%s3785 + $0xe0] sm:$0xff]
        %v3815 = vld [vmem:[%s3785 + $0xe8] sm:$0xff]
        %v3816 = vld [vmem:[%s3785 + $0xf0] sm:$0xff]
        %v3817 = vld [vmem:[%s3785 + $0xf8] sm:$0xff]
        %3818 = vmatprep.subr.mxu0 %v3787
        %3819 = vmatpush1.msra.mxu0 %v3786
        %3820 = vmatprep.subr.mxu0 %v3789
        %3821 = vmatpush1.msra.mxu0 %v3788
        %3822 = vmatprep.subr.mxu0 %v3791
        %3823 = vmatpush1.msra.mxu0 %v3790
        %3824 = vmatprep.subr.mxu0 %v3793
        %3825 = vmatpush1.msra.mxu0 %v3792
        %3826 = vmatprep.subr.mxu0 %v3795
        %3827 = vmatpush1.msra.mxu0 %v3794
        %3828 = vmatprep.subr.mxu0 %v3797
        %3829 = vmatpush1.msra.mxu0 %v3796
        %3830 = vmatprep.subr.mxu0 %v3799
        %3831 = vmatpush1.msra.mxu0 %v3798
        %3832 = vmatprep.subr.mxu0 %v3801
        %3833 = vmatpush1.msra.mxu0 %v3800
        %3834 = vmatprep.subr.mxu0 %v3803
        %3835 = vmatpush1.msra.mxu0 %v3802
        %3836 = vmatprep.subr.mxu0 %v3805
        %3837 = vmatpush1.msra.mxu0 %v3804
        %3838 = vmatprep.subr.mxu0 %v3807
        %3839 = vmatpush1.msra.mxu0 %v3806
        %3840 = vmatprep.subr.mxu0 %v3809
        %3841 = vmatpush1.msra.mxu0 %v3808
        %3842 = vmatprep.subr.mxu0 %v3811
        %3843 = vmatpush1.msra.mxu0 %v3810
        %3844 = vmatprep.subr.mxu0 %v3813
        %3845 = vmatpush1.msra.mxu0 %v3812
        %3846 = vmatprep.subr.mxu0 %v3815
        %3847 = vmatpush1.msra.mxu0 %v3814
        %3848 = vmatprep.subr.mxu0 %v3817
        %3849 = vmatpush1.msra.mxu0 %v3816
        %3850 = vmatprep.subr.mxu0 0.0
        %3851 = vmatpush1.msra.mxu0 0.0
        %3852 = vmatprep.subr.mxu0 0.0
        %3853 = vmatpush1.msra.mxu0 0.0
        %3854 = vmatprep.subr.mxu0 0.0
        %3855 = vmatpush1.msra.mxu0 0.0
        %3856 = vmatprep.subr.mxu0 0.0
        %3857 = vmatpush1.msra.mxu0 0.0
        %3858 = vmatprep.subr.mxu0 0.0
        %3859 = vmatpush1.msra.mxu0 0.0
        %3860 = vmatprep.subr.mxu0 0.0
        %3861 = vmatpush1.msra.mxu0 0.0
        %3862 = vmatprep.subr.mxu0 0.0
        %3863 = vmatpush1.msra.mxu0 0.0
        %3864 = vmatprep.subr.mxu0 0.0
        %3865 = vmatpush1.msra.mxu0 0.0
        %3866 = vmatprep.subr.mxu0 0.0
        %3867 = vmatpush1.msra.mxu0 0.0
        %3868 = vmatprep.subr.mxu0 0.0
        %3869 = vmatpush1.msra.mxu0 0.0
        %3870 = vmatprep.subr.mxu0 0.0
        %3871 = vmatpush1.msra.mxu0 0.0
        %3872 = vmatprep.subr.mxu0 0.0
        %3873 = vmatpush1.msra.mxu0 0.0
        %3874 = vmatprep.subr.mxu0 0.0
        %3875 = vmatpush1.msra.mxu0 0.0
        %3876 = vmatprep.subr.mxu0 0.0
        %3877 = vmatpush1.msra.mxu0 0.0
        %3878 = vmatprep.subr.mxu0 0.0
        %3879 = vmatpush1.msra.mxu0 0.0
        %3880 = vmatprep.subr.mxu0 0.0
        %3881 = vmatpush1.msra.mxu0 0.0
        %3882 = vmatprep.mubr.f32.mxu0 0.0
        %3883 = vmatmul.mubr.f32.gmra.mrb[0].mxu0 %v3784
        %v3884 = vpop.f32.mrb[0].mxu0
        %v3885 = vadd.f32 0.0, %v3884
        %v3886 = vpop.f32.mrb[0].mxu0
        %v3887 = vadd.f32 0.0, %v3886
        %3888 = vdwg.mxu0
        %v3889 = vadd.f32 %v3779, %v3885
        %v3890 = vadd.f32 %v3781, %v3887
        %v3891 = vld [vmem:[%s53] sm:$0x3]
        %v3893 = vlaneseq
        %v3894 = vshrl.u32 %v3893, 7
        %v3895 = vsub.s32 0, %v3894
        %v3896 = vrot.slane %v3891, %v3895
        %v3897 = vlaneseq
        %v3898 = vshrl.u32 %v3897, 7
        %v3899 = vsub.s32 1, %v3898
        %v3900 = vrot.slane %v3891, %v3899
        %v3903 = vmul.f32 %v3889, %v3896
        %v3904 = vmul.f32 %v3890, %v3900
        %v3905 = vld [vmem:[%s55] sm:$0x3]
        %v3907 = vlaneseq
        %v3908 = vshrl.u32 %v3907, 7
        %v3909 = vsub.s32 0, %v3908
        %v3910 = vrot.slane %v3905, %v3909
        %v3911 = vlaneseq
        %v3912 = vshrl.u32 %v3911, 7
        %v3913 = vsub.s32 1, %v3912
        %v3914 = vrot.slane %v3905, %v3913
        %v3917 = vadd.f32 %v3903, %v3910
        %v3918 = vadd.f32 %v3904, %v3914
        %v3919 = vmax.f32 %v3917, 0.0
        %v3920 = vmax.f32 %v3918, 0.0
        %v3921 = vlaneseq
        %vm3922 = vcmp.ge.s32.totalorder %v3921, 0
        %vm3923 = vcmp.lt.s32.totalorder %v3921, 256
        %vm3924 = vmand %vm3922, %vm3923
        %s3925 = scalar_lea.vmem [#allocation9], 7
        %3926 = vst.msk [vmem:[%s3925] ss:$8 sm:$0x3] %vm3924, 0.0
        %3927 = vst.msk [vmem:[%s3925] ss:$8 sm:$0x0] %vm3924, 0.0
        %s3928 = scalar_lea.vmem [#allocation9], 18
        %3929 = vst.msk [vmem:[%s3928] ss:$8 sm:$0x3] %vm3924, 0.0
        %3930 = vst.msk [vmem:[%s3928] ss:$8 sm:$0x0] %vm3924, 0.0
        %3931 = vst [vmem:[#allocation9 + $0x10] sm:$0x3] %v3919
        %3932 = vst [vmem:[#allocation9 + $0x18] sm:$0x3] %v3920
        %v3933 = vld [vmem:[#allocation9] sm:$0x80]
        %v3934 = vld [vmem:[#allocation9 + $0x8] sm:$0x80]
        %v3935 = vld [vmem:[#allocation9 + $0x10] sm:$0x1]
        %v3936 = vld [vmem:[#allocation9 + $0x18] sm:$0x1]
        %v3937 = vld [vmem:[#allocation43] sm:$0xff]
        %v3938 = vld [vmem:[#allocation43 + $0x8] sm:$0xff]
        %v3939 = vld [vmem:[#allocation43 + $0x10] sm:$0xff]
        %v3940 = vld [vmem:[#allocation43 + $0x18] sm:$0xff]
        %v3941 = vld [vmem:[#allocation43 + $0x20] sm:$0xff]
        %v3942 = vld [vmem:[#allocation43 + $0x28] sm:$0xff]
        %v3943 = vld [vmem:[#allocation43 + $0x30] sm:$0xff]
        %v3944 = vld [vmem:[#allocation43 + $0x38] sm:$0xff]
        %v3945 = vld [vmem:[#allocation43 + $0x40] sm:$0xff]
        %v3946 = vld [vmem:[#allocation43 + $0x48] sm:$0xff]
        %v3947 = vld [vmem:[#allocation43 + $0x50] sm:$0xff]
        %v3948 = vld [vmem:[#allocation43 + $0x58] sm:$0xff]
        %v3949 = vld [vmem:[#allocation43 + $0x60] sm:$0xff]
        %v3950 = vld [vmem:[#allocation43 + $0x68] sm:$0xff]
        %v3951 = vld [vmem:[#allocation43 + $0x70] sm:$0xff]
        %v3952 = vld [vmem:[#allocation43 + $0x78] sm:$0xff]
        %v3953 = vld [vmem:[#allocation43 + $0x80] sm:$0xff]
        %v3954 = vld [vmem:[#allocation43 + $0x88] sm:$0xff]
        %v3955 = vld [vmem:[#allocation43 + $0x90] sm:$0xff]
        %v3956 = vld [vmem:[#allocation43 + $0x98] sm:$0xff]
        %v3957 = vld [vmem:[#allocation43 + $0xa0] sm:$0xff]
        %v3958 = vld [vmem:[#allocation43 + $0xa8] sm:$0xff]
        %v3959 = vld [vmem:[#allocation43 + $0xb0] sm:$0xff]
        %v3960 = vld [vmem:[#allocation43 + $0xb8] sm:$0xff]
        %v3961 = vld [vmem:[#allocation43 + $0xc0] sm:$0xff]
        %v3962 = vld [vmem:[#allocation43 + $0xc8] sm:$0xff]
        %v3963 = vld [vmem:[#allocation43 + $0xd0] sm:$0xff]
        %v3964 = vld [vmem:[#allocation43 + $0xd8] sm:$0xff]
        %v3965 = vld [vmem:[#allocation43 + $0xe0] sm:$0xff]
        %v3966 = vld [vmem:[#allocation43 + $0xe8] sm:$0xff]
        %v3967 = vld [vmem:[#allocation43 + $0xf0] sm:$0xff]
        %v3968 = vld [vmem:[#allocation43 + $0xf8] sm:$0xff]
        %v3969 = vld [vmem:[#allocation43 + $0x100] sm:$0xff]
        %v3970 = vld [vmem:[#allocation43 + $0x108] sm:$0xff]
        %v3971 = vld [vmem:[#allocation43 + $0x110] sm:$0xff]
        %v3972 = vld [vmem:[#allocation43 + $0x118] sm:$0xff]
        %v3973 = vld [vmem:[#allocation43 + $0x120] sm:$0xff]
        %v3974 = vld [vmem:[#allocation43 + $0x128] sm:$0xff]
        %v3975 = vld [vmem:[#allocation43 + $0x130] sm:$0xff]
        %v3976 = vld [vmem:[#allocation43 + $0x138] sm:$0xff]
        %v3977 = vld [vmem:[#allocation43 + $0x140] sm:$0xff]
        %v3978 = vld [vmem:[#allocation43 + $0x148] sm:$0xff]
        %v3979 = vld [vmem:[#allocation43 + $0x150] sm:$0xff]
        %v3980 = vld [vmem:[#allocation43 + $0x158] sm:$0xff]
        %v3981 = vld [vmem:[#allocation43 + $0x160] sm:$0xff]
        %v3982 = vld [vmem:[#allocation43 + $0x168] sm:$0xff]
        %v3983 = vld [vmem:[#allocation43 + $0x170] sm:$0xff]
        %v3984 = vld [vmem:[#allocation43 + $0x178] sm:$0xff]
        %v3985 = vld [vmem:[#allocation43 + $0x180] sm:$0xff]
        %v3986 = vld [vmem:[#allocation43 + $0x188] sm:$0xff]
        %v3987 = vld [vmem:[#allocation43 + $0x190] sm:$0xff]
        %v3988 = vld [vmem:[#allocation43 + $0x198] sm:$0xff]
        %v3989 = vld [vmem:[#allocation43 + $0x1a0] sm:$0xff]
        %v3990 = vld [vmem:[#allocation43 + $0x1a8] sm:$0xff]
        %v3991 = vld [vmem:[#allocation43 + $0x1b0] sm:$0xff]
        %v3992 = vld [vmem:[#allocation43 + $0x1b8] sm:$0xff]
        %v3993 = vld [vmem:[#allocation43 + $0x1c0] sm:$0xff]
        %v3994 = vld [vmem:[#allocation43 + $0x1c8] sm:$0xff]
        %v3995 = vld [vmem:[#allocation43 + $0x1d0] sm:$0xff]
        %v3996 = vld [vmem:[#allocation43 + $0x1d8] sm:$0xff]
        %v3997 = vld [vmem:[#allocation43 + $0x1e0] sm:$0xff]
        %v3998 = vld [vmem:[#allocation43 + $0x1e8] sm:$0xff]
        %v3999 = vld [vmem:[#allocation43 + $0x1f0] sm:$0xff]
        %v4000 = vld [vmem:[#allocation43 + $0x1f8] sm:$0xff]
        %v4001 = vld [vmem:[#allocation9 + $0x10] sm:$0x3]
        %v4002 = vld [vmem:[#allocation9 + $0x18] sm:$0x3]
        %s4003 = scalar_lea.vmem [#allocation43], 512
        %v4004 = vld [vmem:[%s4003] sm:$0xff]
        %v4005 = vld [vmem:[%s4003 + $0x8] sm:$0xff]
        %v4006 = vld [vmem:[%s4003 + $0x10] sm:$0xff]
        %v4007 = vld [vmem:[%s4003 + $0x18] sm:$0xff]
        %v4008 = vld [vmem:[%s4003 + $0x20] sm:$0xff]
        %v4009 = vld [vmem:[%s4003 + $0x28] sm:$0xff]
        %v4010 = vld [vmem:[%s4003 + $0x30] sm:$0xff]
        %v4011 = vld [vmem:[%s4003 + $0x38] sm:$0xff]
        %v4012 = vld [vmem:[%s4003 + $0x40] sm:$0xff]
        %v4013 = vld [vmem:[%s4003 + $0x48] sm:$0xff]
        %v4014 = vld [vmem:[%s4003 + $0x50] sm:$0xff]
        %v4015 = vld [vmem:[%s4003 + $0x58] sm:$0xff]
        %v4016 = vld [vmem:[%s4003 + $0x60] sm:$0xff]
        %v4017 = vld [vmem:[%s4003 + $0x68] sm:$0xff]
        %v4018 = vld [vmem:[%s4003 + $0x70] sm:$0xff]
        %v4019 = vld [vmem:[%s4003 + $0x78] sm:$0xff]
        %v4020 = vld [vmem:[%s4003 + $0x80] sm:$0xff]
        %v4021 = vld [vmem:[%s4003 + $0x88] sm:$0xff]
        %v4022 = vld [vmem:[%s4003 + $0x90] sm:$0xff]
        %v4023 = vld [vmem:[%s4003 + $0x98] sm:$0xff]
        %v4024 = vld [vmem:[%s4003 + $0xa0] sm:$0xff]
        %v4025 = vld [vmem:[%s4003 + $0xa8] sm:$0xff]
        %v4026 = vld [vmem:[%s4003 + $0xb0] sm:$0xff]
        %v4027 = vld [vmem:[%s4003 + $0xb8] sm:$0xff]
        %v4028 = vld [vmem:[%s4003 + $0xc0] sm:$0xff]
        %v4029 = vld [vmem:[%s4003 + $0xc8] sm:$0xff]
        %v4030 = vld [vmem:[%s4003 + $0xd0] sm:$0xff]
        %v4031 = vld [vmem:[%s4003 + $0xd8] sm:$0xff]
        %v4032 = vld [vmem:[%s4003 + $0xe0] sm:$0xff]
        %v4033 = vld [vmem:[%s4003 + $0xe8] sm:$0xff]
        %v4034 = vld [vmem:[%s4003 + $0xf0] sm:$0xff]
        %v4035 = vld [vmem:[%s4003 + $0xf8] sm:$0xff]
        %v4036 = vld [vmem:[%s4003 + $0x100] sm:$0xff]
        %v4037 = vld [vmem:[%s4003 + $0x108] sm:$0xff]
        %v4038 = vld [vmem:[%s4003 + $0x110] sm:$0xff]
        %v4039 = vld [vmem:[%s4003 + $0x118] sm:$0xff]
        %v4040 = vld [vmem:[%s4003 + $0x120] sm:$0xff]
        %v4041 = vld [vmem:[%s4003 + $0x128] sm:$0xff]
        %v4042 = vld [vmem:[%s4003 + $0x130] sm:$0xff]
        %v4043 = vld [vmem:[%s4003 + $0x138] sm:$0xff]
        %v4044 = vld [vmem:[%s4003 + $0x140] sm:$0xff]
        %v4045 = vld [vmem:[%s4003 + $0x148] sm:$0xff]
        %v4046 = vld [vmem:[%s4003 + $0x150] sm:$0xff]
        %v4047 = vld [vmem:[%s4003 + $0x158] sm:$0xff]
        %v4048 = vld [vmem:[%s4003 + $0x160] sm:$0xff]
        %v4049 = vld [vmem:[%s4003 + $0x168] sm:$0xff]
        %v4050 = vld [vmem:[%s4003 + $0x170] sm:$0xff]
        %v4051 = vld [vmem:[%s4003 + $0x178] sm:$0xff]
        %v4052 = vld [vmem:[%s4003 + $0x180] sm:$0xff]
        %v4053 = vld [vmem:[%s4003 + $0x188] sm:$0xff]
        %v4054 = vld [vmem:[%s4003 + $0x190] sm:$0xff]
        %v4055 = vld [vmem:[%s4003 + $0x198] sm:$0xff]
        %v4056 = vld [vmem:[%s4003 + $0x1a0] sm:$0xff]
        %v4057 = vld [vmem:[%s4003 + $0x1a8] sm:$0xff]
        %v4058 = vld [vmem:[%s4003 + $0x1b0] sm:$0xff]
        %v4059 = vld [vmem:[%s4003 + $0x1b8] sm:$0xff]
        %v4060 = vld [vmem:[%s4003 + $0x1c0] sm:$0xff]
        %v4061 = vld [vmem:[%s4003 + $0x1c8] sm:$0xff]
        %v4062 = vld [vmem:[%s4003 + $0x1d0] sm:$0xff]
        %v4063 = vld [vmem:[%s4003 + $0x1d8] sm:$0xff]
        %v4064 = vld [vmem:[%s4003 + $0x1e0] sm:$0xff]
        %v4065 = vld [vmem:[%s4003 + $0x1e8] sm:$0xff]
        %v4066 = vld [vmem:[%s4003 + $0x1f0] sm:$0xff]
        %v4067 = vld [vmem:[%s4003 + $0x1f8] sm:$0xff]
        %4068 = vmatprep.subr.mxu0 %v4005
        %4069 = vmatpush1.msra.mxu0 %v4004
        %4070 = vmatprep.subr.mxu0 %v4007
        %4071 = vmatpush1.msra.mxu0 %v4006
        %4072 = vmatprep.subr.mxu0 %v4009
        %4073 = vmatpush1.msra.mxu0 %v4008
        %4074 = vmatprep.subr.mxu0 %v4011
        %4075 = vmatpush1.msra.mxu0 %v4010
        %4076 = vmatprep.subr.mxu0 %v4013
        %4077 = vmatpush1.msra.mxu0 %v4012
        %4078 = vmatprep.subr.mxu0 %v4015
        %4079 = vmatpush1.msra.mxu0 %v4014
        %4080 = vmatprep.subr.mxu0 %v4017
        %4081 = vmatpush1.msra.mxu0 %v4016
        %4082 = vmatprep.subr.mxu0 %v4019
        %4083 = vmatpush1.msra.mxu0 %v4018
        %4084 = vmatprep.subr.mxu0 %v4021
        %4085 = vmatpush1.msra.mxu0 %v4020
        %4086 = vmatprep.subr.mxu0 %v4023
        %4087 = vmatpush1.msra.mxu0 %v4022
        %4088 = vmatprep.subr.mxu0 %v4025
        %4089 = vmatpush1.msra.mxu0 %v4024
        %4090 = vmatprep.subr.mxu0 %v4027
        %4091 = vmatpush1.msra.mxu0 %v4026
        %4092 = vmatprep.subr.mxu0 %v4029
        %4093 = vmatpush1.msra.mxu0 %v4028
        %4094 = vmatprep.subr.mxu0 %v4031
        %4095 = vmatpush1.msra.mxu0 %v4030
        %4096 = vmatprep.subr.mxu0 %v4033
        %4097 = vmatpush1.msra.mxu0 %v4032
        %4098 = vmatprep.subr.mxu0 %v4035
        %4099 = vmatpush1.msra.mxu0 %v4034
        %4100 = vmatprep.subr.mxu0 %v4037
        %4101 = vmatpush1.msra.mxu0 %v4036
        %4102 = vmatprep.subr.mxu0 %v4039
        %4103 = vmatpush1.msra.mxu0 %v4038
        %4104 = vmatprep.subr.mxu0 %v4041
        %4105 = vmatpush1.msra.mxu0 %v4040
        %4106 = vmatprep.subr.mxu0 %v4043
        %4107 = vmatpush1.msra.mxu0 %v4042
        %4108 = vmatprep.subr.mxu0 %v4045
        %4109 = vmatpush1.msra.mxu0 %v4044
        %4110 = vmatprep.subr.mxu0 %v4047
        %4111 = vmatpush1.msra.mxu0 %v4046
        %4112 = vmatprep.subr.mxu0 %v4049
        %4113 = vmatpush1.msra.mxu0 %v4048
        %4114 = vmatprep.subr.mxu0 %v4051
        %4115 = vmatpush1.msra.mxu0 %v4050
        %4116 = vmatprep.subr.mxu0 %v4053
        %4117 = vmatpush1.msra.mxu0 %v4052
        %4118 = vmatprep.subr.mxu0 %v4055
        %4119 = vmatpush1.msra.mxu0 %v4054
        %4120 = vmatprep.subr.mxu0 %v4057
        %4121 = vmatpush1.msra.mxu0 %v4056
        %4122 = vmatprep.subr.mxu0 %v4059
        %4123 = vmatpush1.msra.mxu0 %v4058
        %4124 = vmatprep.subr.mxu0 %v4061
        %4125 = vmatpush1.msra.mxu0 %v4060
        %4126 = vmatprep.subr.mxu0 %v4063
        %4127 = vmatpush1.msra.mxu0 %v4062
        %4128 = vmatprep.subr.mxu0 %v4065
        %4129 = vmatpush1.msra.mxu0 %v4064
        %4130 = vmatprep.subr.mxu0 %v4067
        %4131 = vmatpush1.msra.mxu0 %v4066
        %4132 = vmatprep.mubr.f32.mxu0 %v4002
        %4133 = vmatmul.mubr.f32.gmra.mrb[0].mxu0 %v4001
        %v4134 = vpop.f32.mrb[0].mxu0
        %v4135 = vadd.f32 0.0, %v4134
        %v4136 = vpop.f32.mrb[0].mxu0
        %v4137 = vadd.f32 0.0, %v4136
        %4138 = vdwg.mxu0
        %vm4143 = vcmask 1040384
        %v4144 = vrot.slane %v3933, 7
        %v4145 = vrot.slane %v3935, 7
        %v4146 = vsel %vm4143, %v4144, %v4145
        %v4147 = vrot.slane %v3934, 7
        %v4148 = vrot.slane %v3936, 7
        %v4149 = vsel %vm4143, %v4147, %v4148
        %4152 = vmatprep.subr.mxu0 %v3938
        %4153 = vmatpush1.msra.mxu0 %v3937
        %4154 = vmatprep.subr.mxu0 %v3940
        %4155 = vmatpush1.msra.mxu0 %v3939
        %4156 = vmatprep.subr.mxu0 %v3942
        %4157 = vmatpush1.msra.mxu0 %v3941
        %4158 = vmatprep.subr.mxu0 %v3944
        %4159 = vmatpush1.msra.mxu0 %v3943
        %4160 = vmatprep.subr.mxu0 %v3946
        %4161 = vmatpush1.msra.mxu0 %v3945
        %4162 = vmatprep.subr.mxu0 %v3948
        %4163 = vmatpush1.msra.mxu0 %v3947
        %4164 = vmatprep.subr.mxu0 %v3950
        %4165 = vmatpush1.msra.mxu0 %v3949
        %4166 = vmatprep.subr.mxu0 %v3952
        %4167 = vmatpush1.msra.mxu0 %v3951
        %4168 = vmatprep.subr.mxu0 %v3954
        %4169 = vmatpush1.msra.mxu0 %v3953
        %4170 = vmatprep.subr.mxu0 %v3956
        %4171 = vmatpush1.msra.mxu0 %v3955
        %4172 = vmatprep.subr.mxu0 %v3958
        %4173 = vmatpush1.msra.mxu0 %v3957
        %4174 = vmatprep.subr.mxu0 %v3960
        %4175 = vmatpush1.msra.mxu0 %v3959
        %4176 = vmatprep.subr.mxu0 %v3962
        %4177 = vmatpush1.msra.mxu0 %v3961
        %4178 = vmatprep.subr.mxu0 %v3964
        %4179 = vmatpush1.msra.mxu0 %v3963
        %4180 = vmatprep.subr.mxu0 %v3966
        %4181 = vmatpush1.msra.mxu0 %v3965
        %4182 = vmatprep.subr.mxu0 %v3968
        %4183 = vmatpush1.msra.mxu0 %v3967
        %4184 = vmatprep.subr.mxu0 %v3970
        %4185 = vmatpush1.msra.mxu0 %v3969
        %4186 = vmatprep.subr.mxu0 %v3972
        %4187 = vmatpush1.msra.mxu0 %v3971
        %4188 = vmatprep.subr.mxu0 %v3974
        %4189 = vmatpush1.msra.mxu0 %v3973
        %4190 = vmatprep.subr.mxu0 %v3976
        %4191 = vmatpush1.msra.mxu0 %v3975
        %4192 = vmatprep.subr.mxu0 %v3978
        %4193 = vmatpush1.msra.mxu0 %v3977
        %4194 = vmatprep.subr.mxu0 %v3980
        %4195 = vmatpush1.msra.mxu0 %v3979
        %4196 = vmatprep.subr.mxu0 %v3982
        %4197 = vmatpush1.msra.mxu0 %v3981
        %4198 = vmatprep.subr.mxu0 %v3984
        %4199 = vmatpush1.msra.mxu0 %v3983
        %4200 = vmatprep.subr.mxu0 %v3986
        %4201 = vmatpush1.msra.mxu0 %v3985
        %4202 = vmatprep.subr.mxu0 %v3988
        %4203 = vmatpush1.msra.mxu0 %v3987
        %4204 = vmatprep.subr.mxu0 %v3990
        %4205 = vmatpush1.msra.mxu0 %v3989
        %4206 = vmatprep.subr.mxu0 %v3992
        %4207 = vmatpush1.msra.mxu0 %v3991
        %4208 = vmatprep.subr.mxu0 %v3994
        %4209 = vmatpush1.msra.mxu0 %v3993
        %4210 = vmatprep.subr.mxu0 %v3996
        %4211 = vmatpush1.msra.mxu0 %v3995
        %4212 = vmatprep.subr.mxu0 %v3998
        %4213 = vmatpush1.msra.mxu0 %v3997
        %4214 = vmatprep.subr.mxu0 %v4000
        %4215 = vmatpush1.msra.mxu0 %v3999
        %4216 = vmatprep.mubr.f32.mxu0 %v4149
        %4217 = vmatmul.mubr.f32.gmra.mrb[0].mxu0 %v4146
        %v4218 = vpop.f32.mrb[0].mxu0
        %v4219 = vadd.f32 %v4135, %v4218
        %v4220 = vpop.f32.mrb[0].mxu0
        %v4221 = vadd.f32 %v4137, %v4220
        %4222 = vdwg.mxu0
        %v4223 = vld [vmem:[#allocation9 + $0x10] sm:$0x6]
        %v4224 = vld [vmem:[#allocation9 + $0x18] sm:$0x6]
        %s4225 = scalar_lea.vmem [#allocation43], 1024
        %v4226 = vld [vmem:[%s4225] sm:$0xff]
        %v4227 = vld [vmem:[%s4225 + $0x8] sm:$0xff]
        %v4228 = vld [vmem:[%s4225 + $0x10] sm:$0xff]
        %v4229 = vld [vmem:[%s4225 + $0x18] sm:$0xff]
        %v4230 = vld [vmem:[%s4225 + $0x20] sm:$0xff]
        %v4231 = vld [vmem:[%s4225 + $0x28] sm:$0xff]
        %v4232 = vld [vmem:[%s4225 + $0x30] sm:$0xff]
        %v4233 = vld [vmem:[%s4225 + $0x38] sm:$0xff]
        %v4234 = vld [vmem:[%s4225 + $0x40] sm:$0xff]
        %v4235 = vld [vmem:[%s4225 + $0x48] sm:$0xff]
        %v4236 = vld [vmem:[%s4225 + $0x50] sm:$0xff]
        %v4237 = vld [vmem:[%s4225 + $0x58] sm:$0xff]
        %v4238 = vld [vmem:[%s4225 + $0x60] sm:$0xff]
        %v4239 = vld [vmem:[%s4225 + $0x68] sm:$0xff]
        %v4240 = vld [vmem:[%s4225 + $0x70] sm:$0xff]
        %v4241 = vld [vmem:[%s4225 + $0x78] sm:$0xff]
        %v4242 = vld [vmem:[%s4225 + $0x80] sm:$0xff]
        %v4243 = vld [vmem:[%s4225 + $0x88] sm:$0xff]
        %v4244 = vld [vmem:[%s4225 + $0x90] sm:$0xff]
        %v4245 = vld [vmem:[%s4225 + $0x98] sm:$0xff]
        %v4246 = vld [vmem:[%s4225 + $0xa0] sm:$0xff]
        %v4247 = vld [vmem:[%s4225 + $0xa8] sm:$0xff]
        %v4248 = vld [vmem:[%s4225 + $0xb0] sm:$0xff]
        %v4249 = vld [vmem:[%s4225 + $0xb8] sm:$0xff]
        %v4250 = vld [vmem:[%s4225 + $0xc0] sm:$0xff]
        %v4251 = vld [vmem:[%s4225 + $0xc8] sm:$0xff]
        %v4252 = vld [vmem:[%s4225 + $0xd0] sm:$0xff]
        %v4253 = vld [vmem:[%s4225 + $0xd8] sm:$0xff]
        %v4254 = vld [vmem:[%s4225 + $0xe0] sm:$0xff]
        %v4255 = vld [vmem:[%s4225 + $0xe8] sm:$0xff]
        %v4256 = vld [vmem:[%s4225 + $0xf0] sm:$0xff]
        %v4257 = vld [vmem:[%s4225 + $0xf8] sm:$0xff]
        %v4258 = vld [vmem:[%s4225 + $0x100] sm:$0xff]
        %v4259 = vld [vmem:[%s4225 + $0x108] sm:$0xff]
        %v4260 = vld [vmem:[%s4225 + $0x110] sm:$0xff]
        %v4261 = vld [vmem:[%s4225 + $0x118] sm:$0xff]
        %v4262 = vld [vmem:[%s4225 + $0x120] sm:$0xff]
        %v4263 = vld [vmem:[%s4225 + $0x128] sm:$0xff]
        %v4264 = vld [vmem:[%s4225 + $0x130] sm:$0xff]
        %v4265 = vld [vmem:[%s4225 + $0x138] sm:$0xff]
        %v4266 = vld [vmem:[%s4225 + $0x140] sm:$0xff]
        %v4267 = vld [vmem:[%s4225 + $0x148] sm:$0xff]
        %v4268 = vld [vmem:[%s4225 + $0x150] sm:$0xff]
        %v4269 = vld [vmem:[%s4225 + $0x158] sm:$0xff]
        %v4270 = vld [vmem:[%s4225 + $0x160] sm:$0xff]
        %v4271 = vld [vmem:[%s4225 + $0x168] sm:$0xff]
        %v4272 = vld [vmem:[%s4225 + $0x170] sm:$0xff]
        %v4273 = vld [vmem:[%s4225 + $0x178] sm:$0xff]
        %v4274 = vld [vmem:[%s4225 + $0x180] sm:$0xff]
        %v4275 = vld [vmem:[%s4225 + $0x188] sm:$0xff]
        %v4276 = vld [vmem:[%s4225 + $0x190] sm:$0xff]
        %v4277 = vld [vmem:[%s4225 + $0x198] sm:$0xff]
        %v4278 = vld [vmem:[%s4225 + $0x1a0] sm:$0xff]
        %v4279 = vld [vmem:[%s4225 + $0x1a8] sm:$0xff]
        %v4280 = vld [vmem:[%s4225 + $0x1b0] sm:$0xff]
        %v4281 = vld [vmem:[%s4225 + $0x1b8] sm:$0xff]
        %v4282 = vld [vmem:[%s4225 + $0x1c0] sm:$0xff]
        %v4283 = vld [vmem:[%s4225 + $0x1c8] sm:$0xff]
        %v4284 = vld [vmem:[%s4225 + $0x1d0] sm:$0xff]
        %v4285 = vld [vmem:[%s4225 + $0x1d8] sm:$0xff]
        %v4286 = vld [vmem:[%s4225 + $0x1e0] sm:$0xff]
        %v4287 = vld [vmem:[%s4225 + $0x1e8] sm:$0xff]
        %v4288 = vld [vmem:[%s4225 + $0x1f0] sm:$0xff]
        %v4289 = vld [vmem:[%s4225 + $0x1f8] sm:$0xff]
        %v4292 = vrot.slane %v4223, 1
        %v4293 = vrot.slane %v4224, 1
        %4296 = vmatprep.subr.mxu0 %v4227
        %4297 = vmatpush1.msra.mxu0 %v4226
        %4298 = vmatprep.subr.mxu0 %v4229
        %4299 = vmatpush1.msra.mxu0 %v4228
        %4300 = vmatprep.subr.mxu0 %v4231
        %4301 = vmatpush1.msra.mxu0 %v4230
        %4302 = vmatprep.subr.mxu0 %v4233
        %4303 = vmatpush1.msra.mxu0 %v4232
        %4304 = vmatprep.subr.mxu0 %v4235
        %4305 = vmatpush1.msra.mxu0 %v4234
        %4306 = vmatprep.subr.mxu0 %v4237
        %4307 = vmatpush1.msra.mxu0 %v4236
        %4308 = vmatprep.subr.mxu0 %v4239
        %4309 = vmatpush1.msra.mxu0 %v4238
        %4310 = vmatprep.subr.mxu0 %v4241
        %4311 = vmatpush1.msra.mxu0 %v4240
        %4312 = vmatprep.subr.mxu0 %v4243
        %4313 = vmatpush1.msra.mxu0 %v4242
        %4314 = vmatprep.subr.mxu0 %v4245
        %4315 = vmatpush1.msra.mxu0 %v4244
        %4316 = vmatprep.subr.mxu0 %v4247
        %4317 = vmatpush1.msra.mxu0 %v4246
        %4318 = vmatprep.subr.mxu0 %v4249
        %4319 = vmatpush1.msra.mxu0 %v4248
        %4320 = vmatprep.subr.mxu0 %v4251
        %4321 = vmatpush1.msra.mxu0 %v4250
        %4322 = vmatprep.subr.mxu0 %v4253
        %4323 = vmatpush1.msra.mxu0 %v4252
        %4324 = vmatprep.subr.mxu0 %v4255
        %4325 = vmatpush1.msra.mxu0 %v4254
        %4326 = vmatprep.subr.mxu0 %v4257
        %4327 = vmatpush1.msra.mxu0 %v4256
        %4328 = vmatprep.subr.mxu0 %v4259
        %4329 = vmatpush1.msra.mxu0 %v4258
        %4330 = vmatprep.subr.mxu0 %v4261
        %4331 = vmatpush1.msra.mxu0 %v4260
        %4332 = vmatprep.subr.mxu0 %v4263
        %4333 = vmatpush1.msra.mxu0 %v4262
        %4334 = vmatprep.subr.mxu0 %v4265
        %4335 = vmatpush1.msra.mxu0 %v4264
        %4336 = vmatprep.subr.mxu0 %v4267
        %4337 = vmatpush1.msra.mxu0 %v4266
        %4338 = vmatprep.subr.mxu0 %v4269
        %4339 = vmatpush1.msra.mxu0 %v4268
        %4340 = vmatprep.subr.mxu0 %v4271
        %4341 = vmatpush1.msra.mxu0 %v4270
        %4342 = vmatprep.subr.mxu0 %v4273
        %4343 = vmatpush1.msra.mxu0 %v4272
        %4344 = vmatprep.subr.mxu0 %v4275
        %4345 = vmatpush1.msra.mxu0 %v4274
        %4346 = vmatprep.subr.mxu0 %v4277
        %4347 = vmatpush1.msra.mxu0 %v4276
        %4348 = vmatprep.subr.mxu0 %v4279
        %4349 = vmatpush1.msra.mxu0 %v4278
        %4350 = vmatprep.subr.mxu0 %v4281
        %4351 = vmatpush1.msra.mxu0 %v4280
        %4352 = vmatprep.subr.mxu0 %v4283
        %4353 = vmatpush1.msra.mxu0 %v4282
        %4354 = vmatprep.subr.mxu0 %v4285
        %4355 = vmatpush1.msra.mxu0 %v4284
        %4356 = vmatprep.subr.mxu0 %v4287
        %4357 = vmatpush1.msra.mxu0 %v4286
        %4358 = vmatprep.subr.mxu0 %v4289
        %4359 = vmatpush1.msra.mxu0 %v4288
        %4360 = vmatprep.mubr.f32.mxu0 %v4293
        %4361 = vmatmul.mubr.f32.gmra.mrb[0].mxu0 %v4292
        %v4362 = vpop.f32.mrb[0].mxu0
        %v4363 = vadd.f32 0.0, %v4362
        %v4364 = vpop.f32.mrb[0].mxu0
        %v4365 = vadd.f32 0.0, %v4364
        %4366 = vdwg.mxu0
        %v4367 = vadd.f32 %v4219, %v4363
        %v4368 = vadd.f32 %v4221, %v4365
        %v4369 = vld [vmem:[%s59] sm:$0x3]
        %v4371 = vlaneseq
        %v4372 = vshrl.u32 %v4371, 7
        %v4373 = vsub.s32 0, %v4372
        %v4374 = vrot.slane %v4369, %v4373
        %v4375 = vlaneseq
        %v4376 = vshrl.u32 %v4375, 7
        %v4377 = vsub.s32 1, %v4376
        %v4378 = vrot.slane %v4369, %v4377
        %v4381 = vmul.f32 %v4367, %v4374
        %v4382 = vmul.f32 %v4368, %v4378
        %v4383 = vld [vmem:[%s61] sm:$0x3]
        %v4385 = vlaneseq
        %v4386 = vshrl.u32 %v4385, 7
        %v4387 = vsub.s32 0, %v4386
        %v4388 = vrot.slane %v4383, %v4387
        %v4389 = vlaneseq
        %v4390 = vshrl.u32 %v4389, 7
        %v4391 = vsub.s32 1, %v4390
        %v4392 = vrot.slane %v4383, %v4391
        %v4395 = vadd.f32 %v4381, %v4388
        %v4396 = vadd.f32 %v4382, %v4392
        %v4397 = vadd.f32 %v4395, %v3572
        %v4398 = vadd.f32 %v4396, %v3573
        %v4399 = vmax.f32 %v4397, 0.0
        %v4400 = vmax.f32 %v4398, 0.0
        %vm4401 = vcmask 1041408
        %v4402 = vsel %vm4401, %v4399, 0.0
        %v4403 = vrot.slane %v4402, 4
        %v4404 = vadd.f32 %v4402, %v4403
        %v4405 = vrot.slane %v4404, 2
        %v4406 = vadd.f32 %v4404, %v4405
        %v4407 = vrot.slane %v4406, 1
        %v4408 = vadd.f32 %v4406, %v4407
        %v4409 = vsel %vm4401, %v4400, 0.0
        %v4410 = vrot.slane %v4409, 4
        %v4411 = vadd.f32 %v4409, %v4410
        %v4412 = vrot.slane %v4411, 2
        %v4413 = vadd.f32 %v4411, %v4412
        %v4414 = vrot.slane %v4413, 1
        %v4415 = vadd.f32 %v4413, %v4414
        %v4416 = vrcp.pop 2.0
        %v4417 = vmul.f32 %v4408, %v4416
        %v4418 = vmul.f32 %v4415, %v4416
        %v4419 = vld [vmem:[%s63] sm:$0xff]
        %v4420 = vld [vmem:[%s63 + $0x8] sm:$0xff]
        %v4421 = vld [vmem:[%s63 + $0x10] sm:$0xff]
        %v4422 = vld [vmem:[%s63 + $0x18] sm:$0xff]
        %v4423 = vld [vmem:[%s63 + $0x20] sm:$0xff]
        %v4424 = vld [vmem:[%s63 + $0x28] sm:$0xff]
        %v4425 = vld [vmem:[%s63 + $0x30] sm:$0xff]
        %v4426 = vld [vmem:[%s63 + $0x38] sm:$0xff]
        %v4427 = vld [vmem:[%s63 + $0x40] sm:$0xff]
        %v4428 = vld [vmem:[%s63 + $0x48] sm:$0xff]
        %v4429 = vld [vmem:[%s63 + $0x50] sm:$0xff]
        %v4430 = vld [vmem:[%s63 + $0x58] sm:$0xff]
        %v4431 = vld [vmem:[%s63 + $0x60] sm:$0xff]
        %v4432 = vld [vmem:[%s63 + $0x68] sm:$0xff]
        %v4433 = vld [vmem:[%s63 + $0x70] sm:$0xff]
        %v4434 = vld [vmem:[%s63 + $0x78] sm:$0xff]
        %v4435 = vld [vmem:[%s63 + $0x80] sm:$0xff]
        %v4436 = vld [vmem:[%s63 + $0x88] sm:$0xff]
        %v4437 = vld [vmem:[%s63 + $0x90] sm:$0xff]
        %v4438 = vld [vmem:[%s63 + $0x98] sm:$0xff]
        %v4439 = vld [vmem:[%s63 + $0xa0] sm:$0xff]
        %v4440 = vld [vmem:[%s63 + $0xa8] sm:$0xff]
        %v4441 = vld [vmem:[%s63 + $0xb0] sm:$0xff]
        %v4442 = vld [vmem:[%s63 + $0xb8] sm:$0xff]
        %v4443 = vld [vmem:[%s63 + $0xc0] sm:$0xff]
        %v4444 = vld [vmem:[%s63 + $0xc8] sm:$0xff]
        %v4445 = vld [vmem:[%s63 + $0xd0] sm:$0xff]
        %v4446 = vld [vmem:[%s63 + $0xd8] sm:$0xff]
        %v4447 = vld [vmem:[%s63 + $0xe0] sm:$0xff]
        %v4448 = vld [vmem:[%s63 + $0xe8] sm:$0xff]
        %v4449 = vld [vmem:[%s63 + $0xf0] sm:$0xff]
        %v4450 = vld [vmem:[%s63 + $0xf8] sm:$0xff]
        %v4451 = vld [vmem:[%s65] sm:$0x1]
        %4452 = vmatprep.subr.mxu0 0.0
        %4453 = vmatpush1.msra.mxu0 %v4419
        %4454 = vmatprep.subr.mxu0 0.0
        %4455 = vmatpush1.msra.mxu0 %v4420
        %4456 = vmatprep.subr.mxu0 0.0
        %4457 = vmatpush1.msra.mxu0 %v4421
        %4458 = vmatprep.subr.mxu0 0.0
        %4459 = vmatpush1.msra.mxu0 %v4422
        %4460 = vmatprep.subr.mxu0 0.0
        %4461 = vmatpush1.msra.mxu0 %v4423
        %4462 = vmatprep.subr.mxu0 0.0
        %4463 = vmatpush1.msra.mxu0 %v4424
        %4464 = vmatprep.subr.mxu0 0.0
        %4465 = vmatpush1.msra.mxu0 %v4425
        %4466 = vmatprep.subr.mxu0 0.0
        %4467 = vmatpush1.msra.mxu0 %v4426
        %4468 = vmatprep.subr.mxu0 0.0
        %4469 = vmatpush1.msra.mxu0 %v4427
        %4470 = vmatprep.subr.mxu0 0.0
        %4471 = vmatpush1.msra.mxu0 %v4428
        %4472 = vmatprep.subr.mxu0 0.0
        %4473 = vmatpush1.msra.mxu0 %v4429
        %4474 = vmatprep.subr.mxu0 0.0
        %4475 = vmatpush1.msra.mxu0 %v4430
        %4476 = vmatprep.subr.mxu0 0.0
        %4477 = vmatpush1.msra.mxu0 %v4431
        %4478 = vmatprep.subr.mxu0 0.0
        %4479 = vmatpush1.msra.mxu0 %v4432
        %4480 = vmatprep.subr.mxu0 0.0
        %4481 = vmatpush1.msra.mxu0 %v4433
        %4482 = vmatprep.subr.mxu0 0.0
        %4483 = vmatpush1.msra.mxu0 %v4434
        %4484 = vmatprep.subr.mxu0 0.0
        %4485 = vmatpush1.msra.mxu0 %v4435
        %4486 = vmatprep.subr.mxu0 0.0
        %4487 = vmatpush1.msra.mxu0 %v4436
        %4488 = vmatprep.subr.mxu0 0.0
        %4489 = vmatpush1.msra.mxu0 %v4437
        %4490 = vmatprep.subr.mxu0 0.0
        %4491 = vmatpush1.msra.mxu0 %v4438
        %4492 = vmatprep.subr.mxu0 0.0
        %4493 = vmatpush1.msra.mxu0 %v4439
        %4494 = vmatprep.subr.mxu0 0.0
        %4495 = vmatpush1.msra.mxu0 %v4440
        %4496 = vmatprep.subr.mxu0 0.0
        %4497 = vmatpush1.msra.mxu0 %v4441
        %4498 = vmatprep.subr.mxu0 0.0
        %4499 = vmatpush1.msra.mxu0 %v4442
        %4500 = vmatprep.subr.mxu0 0.0
        %4501 = vmatpush1.msra.mxu0 %v4443
        %4502 = vmatprep.subr.mxu0 0.0
        %4503 = vmatpush1.msra.mxu0 %v4444
        %4504 = vmatprep.subr.mxu0 0.0
        %4505 = vmatpush1.msra.mxu0 %v4445
        %4506 = vmatprep.subr.mxu0 0.0
        %4507 = vmatpush1.msra.mxu0 %v4446
        %4508 = vmatprep.subr.mxu0 0.0
        %4509 = vmatpush1.msra.mxu0 %v4447
        %4510 = vmatprep.subr.mxu0 0.0
        %4511 = vmatpush1.msra.mxu0 %v4448
        %4512 = vmatprep.subr.mxu0 0.0
        %4513 = vmatpush1.msra.mxu0 %v4449
        %4514 = vmatprep.subr.mxu0 0.0
        %4515 = vmatpush1.msra.mxu0 %v4450
        %4516 = vmatprep.mubr.f32.mxu0 %v4418
        %4517 = vmatmul.mubr.f32.gmra.mrb[0].mxu0 %v4417
        %v4518 = vpop.f32.mrb[0].mxu0
        %v4519 = vadd.f32 %v4451, %v4518
        %v4520 = vpop.f32.mrb[0].mxu0
        %4521 = vdwg.mxu0
        %vm4522 = vcmask 32768
        %4523 = vst.msk [vmem:[%s1298] sm:$0x1] %vm4522, %v4519
        %s4524 = sand.u32 %s799, 1
        %s4525 = scalar_lea.sflag [#allocation12], %s4524
        %s4526 = sand.u32 %s799, 1
        %s4527 = scalar_lea.vmem [#allocation45], %s4526
        // Predicated region
        $region241: #{cnn_surface_classifier.1} parent=151 // pred_check
          %p4528 = pneg %p809
        $region242: #{cnn_surface_classifier.1} parent=151 // pred_check_branch
          %4530 = sbr.rel (%p4528) target = $region244
        $region243: #{cnn_surface_classifier.1} parent=151 // pred_region
          %s4532 = ssub.s32 16, 16
          %4533 = vsyncadd %s4525, %s4532
          %s4534 = smul.addr %s93, 16
          %s4535 = scalar_lea.hbm %s67, %s4534
          %s4537 = sshll.u32 %s4527, 4
          %s4538 = int_to_ptr.vmem [resolvable:$true] %s4537
          %4540 = dma.vmem_to_hbm [thread:$0]  %s4538, 16, %s4535, %s4525
        $region244: #{cnn_surface_classifier.1} parent=151 // pred_fallthru
          _
      $region152: #{cnn_surface_classifier.1} parent=5 // pred_fallthru
        _
      %p4541 = scmp.le.s32.totalorder 2, %s88
      // Predicated region
      $region245: #{cnn_surface_classifier.1} parent=5 // pred_check
        %p4542 = pneg %p4541
      $region246: #{cnn_surface_classifier.1} parent=5 // pred_check_branch
        %4544 = sbr.rel (%p4542) target = $region248
      $region247: #{cnn_surface_classifier.1} parent=5 // pred_region
        %s4545 = ssub.s32 %s88, 2
        // Predicated region
        $region249: #{cnn_surface_classifier.1} parent=247 // pred_check
          %p4546 = pneg %p815
        $region250: #{cnn_surface_classifier.1} parent=247 // pred_check_branch
          %4548 = sbr.rel (%p4546) target = $region252
        $region251: #{cnn_surface_classifier.1} parent=247 // pred_region
          %s4549 = sand.u32 %s800, 1
          %s4550 = scalar_lea.sflag [#allocation12], %s4549
          %s4551 = sand.u32 %s800, 1
          %s4552 = scalar_lea.vmem [#allocation45], %s4551
          %4553 = dma.done %s4550, 16
        $region252: #{cnn_surface_classifier.1} parent=247 // pred_fallthru
          _
      $region248: #{cnn_surface_classifier.1} parent=5 // pred_fallthru
        _
    $region6: #{cnn_surface_classifier.1} parent=1 // loop_footer
      %s92 = sadd.s32 1, %s88
    $region7: #{cnn_surface_classifier.1} parent=1 // loop_footer_branch
      %87 = sbr.rel target = $region3
    $region8: #{cnn_surface_classifier.1} parent=1 // loop_exit
      _
    %4554 = vsyncpa [#allocation11], 1
    %s4555 = scalar_lea.sflag [#allocation11], 1
    %4556 = vsyncpa %s4555, 1
    %4557 = vsyncpa [#allocation14], 1
    %4558 = vsyncpa [#allocation17], 1
    %4559 = vsyncpa [#allocation20], 1
    %4560 = vsyncpa [#allocation23], 1
    %4561 = vsyncpa [#allocation26], 1
    %4562 = vsyncpa [#allocation29], 1
    %4563 = vsyncpa [#allocation32], 1
    %4564 = vsyncpa [#allocation35], 1
    %4565 = vsyncpa [#allocation38], 1
    %4566 = vsyncpa [#allocation41], 1
    %4567 = vsyncpa [#allocation44], 1
    %4568 = vsyncpa [#allocation12], 1
    %s4569 = scalar_lea.sflag [#allocation12], 1
    %4570 = vsyncpa %s4569, 1

</llo_original>
